<compile_context>
chip_gen: v7x
topology: tpu7x:2x2x1
jax: 0.10.0
libtpu: 0.0.40
codegen_flags: <defaults>
</compile_context>

<pallas_src>
import functools

import jax
import jax.numpy as jnp
import numpy as np
from jax.experimental import pallas as pl
from jax.experimental.pallas import tpu as pltpu

TERM = 16
SHIFT = 4                                  # TERM == 1 << SHIFT
N_BINS = int((255 - 0 + 1) / TERM + 1)     # 17, matches the module's self.n
N_SAMPLES = 625                            # samples per image (per channel)
PAD_SAMPLES = 640                          # sample axis padded to a multiple of 128 lanes
PAD_BINS = 128                             # lane-dense output; sliced to N_BINS outside
PAD_SENTINEL = -1                          # -1 >> 4 == -1 -> never matches a bin
ROW_DTYPE = jnp.int16                      # 0..255 and -1 fit; halves DMA vs int32
ROW_ALIGN = 16                             # 16-bit native tiling is (16, 128)
R_TILE_MAX_SINGLE_TC = 1024                # v4/v5e/v6e: amortize per-step overhead
R_TILE_MAX_MULTI_TC = 512                  # v7x: keep >=2 (even) grid steps for 2 TCs
FAST_PATH_MIN_ROWS = 64                    # below this, plain XLA beats kernel overhead

assert TERM == (1 << SHIFT)
assert PAD_SAMPLES % 128 == 0


def _round_up(x, m):
    return ((x + m - 1) // m) * m


def _cdiv(a, b):
    return -(-a // b)


def _tpu_generation():
    """Best-effort TPU generation (0 if unknown)."""
    try:
        kind = jax.devices()[0].device_kind.lower()
    except Exception:
        return 0
    if "v7" in kind or "7x" in kind:
        return 7
    if "v6" in kind:
        return 6
    if "v5" in kind:
        return 5
    if "v4" in kind:
        return 4
    return 0


def _choose_tiling(n_rows, generation):
    """Pick (r_tile, steps, rows_padded) per the perf review.

    Single-TC chips: one big tile (<=1024 rows).  v7x: >=2 steps and an even
    step count so both TensorCores of the 'parallel' grid axis get equal work.
    """
    rows_a = _round_up(max(n_rows, 1), ROW_ALIGN)
    multi_tc = generation >= 7
    r_tile_max = R_TILE_MAX_MULTI_TC if multi_tc else R_TILE_MAX_SINGLE_TC
    steps = max(1, _cdiv(rows_a, r_tile_max))
    if multi_tc:
        steps = max(2, steps)
        if steps % 2:
            steps += 1
    r_tile = _round_up(_cdiv(rows_a, steps), ROW_ALIGN)
    rows_padded = r_tile * steps
    return r_tile, steps, rows_padded


# ---------------------------------------------------------------------------
# Kernels
# ---------------------------------------------------------------------------
def _hist_kernel_vpu(vals_ref, out_ref):
    """VPU/XLU path (v5e & unknown gens).

    vals_ref: (r_tile, PAD_SAMPLES) int16 pixel values (-1 sentinel padding).
    out_ref:  (r_tile, PAD_BINS) f32; lanes 0..N_BINS-1 hold the histogram.
    """
    bins = vals_ref[...].astype(jnp.int32) >> SHIFT          # integer bin on the VPU
    lane = jax.lax.broadcasted_iota(jnp.int32, (1, PAD_BINS), 1)  # single tiny row, hoisted
    acc = jnp.zeros(out_ref.shape, jnp.float32)
    n_groups = PAD_SAMPLES // 128
    for k in range(N_BINS):                                  # unrolled: 17 bins
        m = jnp.where(bins == k, 1.0, 0.0)                   # (r_tile, PAD_SAMPLES) f32
        # Staged reduction: VPU-add the lane groups, then ONE 128-lane XLU reduce.
        part = m[:, 0:128]
        for g in range(1, n_groups):
            part = part + m[:, g * 128:(g + 1) * 128]
        cnt = jnp.sum(part, axis=-1, keepdims=True)          # (r_tile, 1)
        onehot_k = jnp.where(lane == k, 1.0, 0.0)            # (1, PAD_BINS) — one tiny vreg
        acc = acc + cnt * onehot_k                           # cheap mul+add deposit
    out_ref[...] = acc                                       # single lane-dense store / step


def _hist_kernel_mxu(vals_ref, sel_ref, out_ref):
    """MXU-offload path (v6e/v7x): per-bin mask @ constant selector.

    sel_ref: (N_BINS*PAD_SAMPLES, PAD_BINS) bf16; rows [k*640,(k+1)*640) have
    ones in column k only, so mask_k @ sel_k == count_k deposited in lane k.
    """
    bins = vals_ref[...].astype(jnp.int32) >> SHIFT
    one = jnp.ones((), jnp.bfloat16)
    zero = jnp.zeros((), jnp.bfloat16)
    acc = jnp.zeros(out_ref.shape, jnp.float32)
    for k in range(N_BINS):
        m = jnp.where(bins == k, one, zero)                  # (r_tile, PAD_SAMPLES) bf16
        sel_k = sel_ref[k * PAD_SAMPLES:(k + 1) * PAD_SAMPLES, :]   # static (640, 128) slice
        acc = acc + jnp.dot(m, sel_k, preferred_element_type=jnp.float32)
    out_ref[...] = acc


@functools.lru_cache(maxsize=1)
def _bin_selector():
    sel = np.zeros((N_BINS * PAD_SAMPLES, PAD_BINS), np.float32)
    for k in range(N_BINS):
        sel[k * PAD_SAMPLES:(k + 1) * PAD_SAMPLES, k] = 1.0
    return jnp.asarray(sel, dtype=jnp.bfloat16)


def _hist_rows_xla(row_vals):
    """Small-batch fast path: fixed pallas_call overhead dominates below ~64 rows."""
    bins = row_vals.astype(jnp.int32) >> SHIFT
    onehot = (bins[:, :, None] == jnp.arange(N_BINS, dtype=jnp.int32)).astype(jnp.float32)
    return jnp.sum(onehot, axis=1)


def rgb3d_hist_pallas(row_vals, *, use_mxu=None, min_pallas_rows=FAST_PATH_MIN_ROWS):
    """row_vals: (n_rows, PAD_SAMPLES) int (sentinel -1 padding).
       Returns (n_rows, N_BINS) float32 counts."""
    n_rows = row_vals.shape[0]
    if row_vals.dtype != ROW_DTYPE:
        row_vals = row_vals.astype(ROW_DTYPE)
    if n_rows < min_pallas_rows:
        return _hist_rows_xla(row_vals)

    gen = _tpu_generation()
    if use_mxu is None:
        # MXU offload wins on v6e/v7x's big MXUs; regresses on v5e's 4x128 MXU.
        use_mxu = gen >= 6
    r_tile, steps, rows_padded = _choose_tiling(n_rows, gen)
    if rows_padded != n_rows:
        row_vals = jnp.pad(row_vals, ((0, rows_padded - n_rows), (0, 0)),
                           constant_values=PAD_SENTINEL)

    cparams = pltpu.CompilerParams(
        dimension_semantics=("parallel",),
        vmem_limit_bytes=32 * 1024 * 1024,   # explicit: v5e's 16 MiB scoped default is too tight
    )
    out_shape = jax.ShapeDtypeStruct((rows_padded, PAD_BINS), jnp.float32)
    rows_spec = pl.BlockSpec((r_tile, PAD_SAMPLES), lambda r: (r, 0))
    out_spec = pl.BlockSpec((r_tile, PAD_BINS), lambda r: (r, 0))

    if use_mxu:
        sel = _bin_selector()
        out = pl.pallas_call(
            _hist_kernel_mxu,
            out_shape=out_shape,
            grid=(steps,),
            in_specs=[rows_spec,
                      # Same block every step -> fetched once, not re-DMA'd.
                      pl.BlockSpec((N_BINS * PAD_SAMPLES, PAD_BINS), lambda r: (0, 0))],
            out_specs=out_spec,
            compiler_params=cparams,
        )(row_vals, sel)
    else:
        out = pl.pallas_call(
            _hist_kernel_vpu,
            out_shape=out_shape,
            grid=(steps,),
            in_specs=[rows_spec],
            out_specs=out_spec,
            compiler_params=cparams,
        )(row_vals)
    return out[:n_rows, :N_BINS]


# ---------------------------------------------------------------------------
# Forward pass (sampling + gather stay in XLA; histogram in the Pallas kernel)
# ---------------------------------------------------------------------------
def sample_coords(key, batch, height, width):
    kx, ky = jax.random.split(key)
    xs = jax.random.randint(kx, (batch, N_SAMPLES), 0, height)
    ys = jax.random.randint(ky, (batch, N_SAMPLES), 0, width)
    return xs, ys


def rgb3d_from_coords(imgs, xs, ys, *, use_mxu=None, min_pallas_rows=FAST_PATH_MIN_ROWS):
    """imgs: (batch, H, W, C) values in [0, 255]; xs/ys: (batch, N_SAMPLES) int.
       Returns ((batch, C*N_BINS) float32 histogram, (batch*C, PAD_SAMPLES) int16 rows)."""
    batch, H, W, C = imgs.shape
    # Channel-major gather straight into (batch, C, N_SAMPLES): flat HWC index is
    # (x*W + y)*C + c, so no separate transpose / concat pass is materialized.
    # NOTE: int32 flat index overflows for H*W*C >= 2^31 (not realistic for images).
    # NOTE: binning assumes pixel values in [0, 255] (matches the PyTorch module).
    flat = imgs.reshape(batch, H * W * C)
    pix = xs * W + ys                                                  # (batch, N_SAMPLES)
    idx = pix[:, None, :] * C + jnp.arange(C, dtype=pix.dtype)[None, :, None]
    sampled = jnp.take_along_axis(flat, idx.reshape(batch, C * N_SAMPLES), axis=1)
    sampled = sampled.reshape(batch, C, N_SAMPLES).astype(ROW_DTYPE)   # truncation == floor for >=0
    rows = jnp.pad(sampled, ((0, 0), (0, 0), (0, PAD_SAMPLES - N_SAMPLES)),
                   constant_values=PAD_SENTINEL).reshape(batch * C, PAD_SAMPLES)
    hist = rgb3d_hist_pallas(rows, use_mxu=use_mxu, min_pallas_rows=min_pallas_rows)
    return hist.reshape(batch, C * N_BINS), rows


def rgb3d_forward(imgs, key, **kwargs):
    """Full forward: sample 625 random (x, y) per image, histogram R/G/B into 17 bins."""
    batch, H, W, _ = imgs.shape
    xs, ys = sample_coords(key, batch, H, W)
    out, _ = rgb3d_from_coords(imgs, xs, ys, **kwargs)
    return out


# ---------------------------------------------------------------------------
# Pure-numpy references for the self-test.
# ---------------------------------------------------------------------------
def reference_hist_rows(rows_np):
    bins = rows_np.astype(np.int32) >> SHIFT
    out = np.zeros((rows_np.shape[0], N_BINS), np.float32)
    for k in range(N_BINS):
        out[:, k] = (bins == k).sum(axis=-1)
    return out


def reference_forward(imgs, xs, ys):
    imgs = np.asarray(imgs); xs = np.asarray(xs); ys = np.asarray(ys)
    batch = imgs.shape[0]
    out = np.zeros((batch, 3, N_BINS), np.float32)
    for b in range(batch):
        for s in range(xs.shape[1]):
            px = imgs[b, xs[b, s], ys[b, s]]
            for c in range(3):
                out[b, c, int(px[c] // TERM)] += 1
    return out.reshape(batch, 3 * N_BINS)


if __name__ == "__main__":
    key = jax.random.PRNGKey(0)
    k_img, k_samp, k_img2, k_samp2 = jax.random.split(key, 4)

    # --- Config 1: small batch (module-scale shapes); may use the XLA fast path.
    batch, H, W = 2, 16, 16
    imgs = jax.random.randint(k_img, (batch, H, W, 3), 0, 256).astype(jnp.float32)
    xs, ys = sample_coords(k_samp, batch, H, W)
    out_small, _ = rgb3d_from_coords(imgs, xs, ys)
    out_small = jax.block_until_ready(out_small)
    assert out_small.shape == (batch, 3 * N_BINS), out_small.shape
    assert out_small.dtype == jnp.float32
    np.testing.assert_array_equal(np.asarray(out_small), reference_forward(imgs, xs, ys))

    # --- Config 2: larger batch that exercises the Pallas kernel (both variants).
    batch2 = 24
    imgs2 = jax.random.randint(k_img2, (batch2, H, W, 3), 0, 256).astype(jnp.float32)
    xs2, ys2 = sample_coords(k_samp2, batch2, H, W)
    ref2 = reference_forward(imgs2, xs2, ys2)
    for use_mxu in (False, True):   # test the VPU path and the MXU-offload path
        out2, rows2 = rgb3d_from_coords(imgs2, xs2, ys2,
                                        use_mxu=use_mxu, min_pallas_rows=0)
        out2 = jax.block_until_ready(out2)
        out2_np = np.asarray(out2)
        # Each channel histogram must sum to N_SAMPLES (padding never counted).
        np.testing.assert_allclose(out2_np.reshape(batch2, 3, N_BINS).sum(-1),
                                   np.full((batch2, 3), N_SAMPLES, np.float32))
        # Kernel matches a pure-numpy histogram of the same sampled rows.
        np.testing.assert_array_equal(out2_np.reshape(batch2 * 3, N_BINS),
                                      reference_hist_rows(np.asarray(rows2)))
        # And matches the loop-for-loop PyTorch-style reference on the same coords.
        np.testing.assert_array_equal(out2_np, ref2)

    print("KERNEL_OK")
</pallas_src>

<mosaic_0001>
module attributes {stable_mosaic.version = 11 : i64} {
  func.func @_hist_kernel_vpu(%arg0: i32, %arg1: memref<80x640xi16, #tpu.memory_space<vmem>>, %arg2: memref<80x128xf32, #tpu.memory_space<vmem>>) attributes {dimension_semantics = [#tpu.dimension_semantics<parallel>], iteration_bounds = array<i64: 1>, scalar_prefetch = 0 : i64, scratch_operands = 0 : i64, tpu.core_type = #tpu.core_type<tc>, window_params = [{transform_indices = @transform_0, window_bounds = array<i64: 80, 640>}, {transform_indices = @transform_1, window_bounds = array<i64: 80, 128>}]} {
    %c0 = arith.constant 0 : index
    %c0_0 = arith.constant 0 : index
    %0 = vector.load %arg1[%c0, %c0_0] : memref<80x640xi16, #tpu.memory_space<vmem>>, vector<80x640xi16>
    %1 = arith.extsi %0 : vector<80x640xi16> to vector<80x640xi32>
    %c4_i32 = arith.constant 4 : i32
    %2 = vector.broadcast %c4_i32 : i32 to vector<80x640xi32>
    %3 = arith.shrsi %1, %2 : vector<80x640xi32>
    %4 = tpu.iota {dimensions = array<i32: 1>} : vector<1x128xi32>
    %cst = arith.constant 0.000000e+00 : f32
    %5 = vector.broadcast %cst : f32 to vector<80x128xf32>
    %c0_i32 = arith.constant 0 : i32
    %6 = vector.broadcast %c0_i32 : i32 to vector<80x640xi32>
    %7 = arith.cmpi eq, %3, %6 : vector<80x640xi32>
    %cst_1 = arith.constant 1.000000e+00 : f32
    %cst_2 = arith.constant 0.000000e+00 : f32
    %8 = vector.broadcast %cst_1 : f32 to vector<80x640xf32>
    %9 = vector.broadcast %cst_2 : f32 to vector<80x640xf32>
    %10 = arith.select %7, %8, %9 : vector<80x640xi1>, vector<80x640xf32>
    %11 = vector.extract_strided_slice %10 {offsets = [0, 0], sizes = [80, 128], strides = [1, 1]} : vector<80x640xf32> to vector<80x128xf32>
    %12 = vector.extract_strided_slice %10 {offsets = [0, 128], sizes = [80, 128], strides = [1, 1]} : vector<80x640xf32> to vector<80x128xf32>
    %13 = arith.addf %11, %12 : vector<80x128xf32>
    %14 = vector.extract_strided_slice %10 {offsets = [0, 256], sizes = [80, 128], strides = [1, 1]} : vector<80x640xf32> to vector<80x128xf32>
    %15 = arith.addf %13, %14 : vector<80x128xf32>
    %16 = vector.extract_strided_slice %10 {offsets = [0, 384], sizes = [80, 128], strides = [1, 1]} : vector<80x640xf32> to vector<80x128xf32>
    %17 = arith.addf %15, %16 : vector<80x128xf32>
    %18 = vector.extract_strided_slice %10 {offsets = [0, 512], sizes = [80, 128], strides = [1, 1]} : vector<80x640xf32> to vector<80x128xf32>
    %19 = arith.addf %17, %18 : vector<80x128xf32>
    %cst_3 = arith.constant dense<0.000000e+00> : vector<80xf32>
    %20 = vector.multi_reduction <add>, %19, %cst_3 [1] : vector<80x128xf32> to vector<80xf32>
    %21 = vector.shape_cast %20 : vector<80xf32> to vector<80x1xf32>
    %c0_i32_4 = arith.constant 0 : i32
    %22 = vector.broadcast %c0_i32_4 : i32 to vector<1x128xi32>
    %23 = arith.cmpi eq, %4, %22 : vector<1x128xi32>
    %cst_5 = arith.constant 1.000000e+00 : f32
    %cst_6 = arith.constant 0.000000e+00 : f32
    %24 = vector.broadcast %cst_5 : f32 to vector<1x128xf32>
    %25 = vector.broadcast %cst_6 : f32 to vector<1x128xf32>
    %26 = arith.select %23, %24, %25 : vector<1x128xi1>, vector<1x128xf32>
    %27 = vector.broadcast %21 : vector<80x1xf32> to vector<80x128xf32>
    %28 = vector.broadcast %26 : vector<1x128xf32> to vector<80x128xf32>
    %29 = arith.mulf %27, %28 : vector<80x128xf32>
    %30 = arith.addf %5, %29 : vector<80x128xf32>
    %c1_i32 = arith.constant 1 : i32
    %31 = vector.broadcast %c1_i32 : i32 to vector<80x640xi32>
    %32 = arith.cmpi eq, %3, %31 : vector<80x640xi32>
    %cst_7 = arith.constant 1.000000e+00 : f32
    %cst_8 = arith.constant 0.000000e+00 : f32
    %33 = vector.broadcast %cst_7 : f32 to vector<80x640xf32>
    %34 = vector.broadcast %cst_8 : f32 to vector<80x640xf32>
    %35 = arith.select %32, %33, %34 : vector<80x640xi1>, vector<80x640xf32>
    %36 = vector.extract_strided_slice %35 {offsets = [0, 0], sizes = [80, 128], strides = [1, 1]} : vector<80x640xf32> to vector<80x128xf32>
    %37 = vector.extract_strided_slice %35 {offsets = [0, 128], sizes = [80, 128], strides = [1, 1]} : vector<80x640xf32> to vector<80x128xf32>
    %38 = arith.addf %36, %37 : vector<80x128xf32>
    %39 = vector.extract_strided_slice %35 {offsets = [0, 256], sizes = [80, 128], strides = [1, 1]} : vector<80x640xf32> to vector<80x128xf32>
    %40 = arith.addf %38, %39 : vector<80x128xf32>
    %41 = vector.extract_strided_slice %35 {offsets = [0, 384], sizes = [80, 128], strides = [1, 1]} : vector<80x640xf32> to vector<80x128xf32>
    %42 = arith.addf %40, %41 : vector<80x128xf32>
    %43 = vector.extract_strided_slice %35 {offsets = [0, 512], sizes = [80, 128], strides = [1, 1]} : vector<80x640xf32> to vector<80x128xf32>
    %44 = arith.addf %42, %43 : vector<80x128xf32>
    %cst_9 = arith.constant dense<0.000000e+00> : vector<80xf32>
    %45 = vector.multi_reduction <add>, %44, %cst_9 [1] : vector<80x128xf32> to vector<80xf32>
    %46 = vector.shape_cast %45 : vector<80xf32> to vector<80x1xf32>
    %c1_i32_10 = arith.constant 1 : i32
    %47 = vector.broadcast %c1_i32_10 : i32 to vector<1x128xi32>
    %48 = arith.cmpi eq, %4, %47 : vector<1x128xi32>
    %cst_11 = arith.constant 1.000000e+00 : f32
    %cst_12 = arith.constant 0.000000e+00 : f32
    %49 = vector.broadcast %cst_11 : f32 to vector<1x128xf32>
    %50 = vector.broadcast %cst_12 : f32 to vector<1x128xf32>
    %51 = arith.select %48, %49, %50 : vector<1x128xi1>, vector<1x128xf32>
    %52 = vector.broadcast %46 : vector<80x1xf32> to vector<80x128xf32>
    %53 = vector.broadcast %51 : vector<1x128xf32> to vector<80x128xf32>
    %54 = arith.mulf %52, %53 : vector<80x128xf32>
    %55 = arith.addf %30, %54 : vector<80x128xf32>
    %c2_i32 = arith.constant 2 : i32
    %56 = vector.broadcast %c2_i32 : i32 to vector<80x640xi32>
    %57 = arith.cmpi eq, %3, %56 : vector<80x640xi32>
    %cst_13 = arith.constant 1.000000e+00 : f32
    %cst_14 = arith.constant 0.000000e+00 : f32
    %58 = vector.broadcast %cst_13 : f32 to vector<80x640xf32>
    %59 = vector.broadcast %cst_14 : f32 to vector<80x640xf32>
    %60 = arith.select %57, %58, %59 : vector<80x640xi1>, vector<80x640xf32>
    %61 = vector.extract_strided_slice %60 {offsets = [0, 0], sizes = [80, 128], strides = [1, 1]} : vector<80x640xf32> to vector<80x128xf32>
    %62 = vector.extract_strided_slice %60 {offsets = [0, 128], sizes = [80, 128], strides = [1, 1]} : vector<80x640xf32> to vector<80x128xf32>
    %63 = arith.addf %61, %62 : vector<80x128xf32>
    %64 = vector.extract_strided_slice %60 {offsets = [0, 256], sizes = [80, 128], strides = [1, 1]} : vector<80x640xf32> to vector<80x128xf32>
    %65 = arith.addf %63, %64 : vector<80x128xf32>
    %66 = vector.extract_strided_slice %60 {offsets = [0, 384], sizes = [80, 128], strides = [1, 1]} : vector<80x640xf32> to vector<80x128xf32>
    %67 = arith.addf %65, %66 : vector<80x128xf32>
    %68 = vector.extract_strided_slice %60 {offsets = [0, 512], sizes = [80, 128], strides = [1, 1]} : vector<80x640xf32> to vector<80x128xf32>
    %69 = arith.addf %67, %68 : vector<80x128xf32>
    %cst_15 = arith.constant dense<0.000000e+00> : vector<80xf32>
    %70 = vector.multi_reduction <add>, %69, %cst_15 [1] : vector<80x128xf32> to vector<80xf32>
    %71 = vector.shape_cast %70 : vector<80xf32> to vector<80x1xf32>
    %c2_i32_16 = arith.constant 2 : i32
    %72 = vector.broadcast %c2_i32_16 : i32 to vector<1x128xi32>
    %73 = arith.cmpi eq, %4, %72 : vector<1x128xi32>
    %cst_17 = arith.constant 1.000000e+00 : f32
    %cst_18 = arith.constant 0.000000e+00 : f32
    %74 = vector.broadcast %cst_17 : f32 to vector<1x128xf32>
    %75 = vector.broadcast %cst_18 : f32 to vector<1x128xf32>
    %76 = arith.select %73, %74, %75 : vector<1x128xi1>, vector<1x128xf32>
    %77 = vector.broadcast %71 : vector<80x1xf32> to vector<80x128xf32>
    %78 = vector.broadcast %76 : vector<1x128xf32> to vector<80x128xf32>
    %79 = arith.mulf %77, %78 : vector<80x128xf32>
    %80 = arith.addf %55, %79 : vector<80x128xf32>
    %c3_i32 = arith.constant 3 : i32
    %81 = vector.broadcast %c3_i32 : i32 to vector<80x640xi32>
    %82 = arith.cmpi eq, %3, %81 : vector<80x640xi32>
    %cst_19 = arith.constant 1.000000e+00 : f32
    %cst_20 = arith.constant 0.000000e+00 : f32
    %83 = vector.broadcast %cst_19 : f32 to vector<80x640xf32>
    %84 = vector.broadcast %cst_20 : f32 to vector<80x640xf32>
    %85 = arith.select %82, %83, %84 : vector<80x640xi1>, vector<80x640xf32>
    %86 = vector.extract_strided_slice %85 {offsets = [0, 0], sizes = [80, 128], strides = [1, 1]} : vector<80x640xf32> to vector<80x128xf32>
    %87 = vector.extract_strided_slice %85 {offsets = [0, 128], sizes = [80, 128], strides = [1, 1]} : vector<80x640xf32> to vector<80x128xf32>
    %88 = arith.addf %86, %87 : vector<80x128xf32>
    %89 = vector.extract_strided_slice %85 {offsets = [0, 256], sizes = [80, 128], strides = [1, 1]} : vector<80x640xf32> to vector<80x128xf32>
    %90 = arith.addf %88, %89 : vector<80x128xf32>
    %91 = vector.extract_strided_slice %85 {offsets = [0, 384], sizes = [80, 128], strides = [1, 1]} : vector<80x640xf32> to vector<80x128xf32>
    %92 = arith.addf %90, %91 : vector<80x128xf32>
    %93 = vector.extract_strided_slice %85 {offsets = [0, 512], sizes = [80, 128], strides = [1, 1]} : vector<80x640xf32> to vector<80x128xf32>
    %94 = arith.addf %92, %93 : vector<80x128xf32>
    %cst_21 = arith.constant dense<0.000000e+00> : vector<80xf32>
    %95 = vector.multi_reduction <add>, %94, %cst_21 [1] : vector<80x128xf32> to vector<80xf32>
    %96 = vector.shape_cast %95 : vector<80xf32> to vector<80x1xf32>
    %c3_i32_22 = arith.constant 3 : i32
    %97 = vector.broadcast %c3_i32_22 : i32 to vector<1x128xi32>
    %98 = arith.cmpi eq, %4, %97 : vector<1x128xi32>
    %cst_23 = arith.constant 1.000000e+00 : f32
    %cst_24 = arith.constant 0.000000e+00 : f32
    %99 = vector.broadcast %cst_23 : f32 to vector<1x128xf32>
    %100 = vector.broadcast %cst_24 : f32 to vector<1x128xf32>
    %101 = arith.select %98, %99, %100 : vector<1x128xi1>, vector<1x128xf32>
    %102 = vector.broadcast %96 : vector<80x1xf32> to vector<80x128xf32>
    %103 = vector.broadcast %101 : vector<1x128xf32> to vector<80x128xf32>
    %104 = arith.mulf %102, %103 : vector<80x128xf32>
    %105 = arith.addf %80, %104 : vector<80x128xf32>
    %c4_i32_25 = arith.constant 4 : i32
    %106 = vector.broadcast %c4_i32_25 : i32 to vector<80x640xi32>
    %107 = arith.cmpi eq, %3, %106 : vector<80x640xi32>
    %cst_26 = arith.constant 1.000000e+00 : f32
    %cst_27 = arith.constant 0.000000e+00 : f32
    %108 = vector.broadcast %cst_26 : f32 to vector<80x640xf32>
    %109 = vector.broadcast %cst_27 : f32 to vector<80x640xf32>
    %110 = arith.select %107, %108, %109 : vector<80x640xi1>, vector<80x640xf32>
    %111 = vector.extract_strided_slice %110 {offsets = [0, 0], sizes = [80, 128], strides = [1, 1]} : vector<80x640xf32> to vector<80x128xf32>
    %112 = vector.extract_strided_slice %110 {offsets = [0, 128], sizes = [80, 128], strides = [1, 1]} : vector<80x640xf32> to vector<80x128xf32>
    %113 = arith.addf %111, %112 : vector<80x128xf32>
    %114 = vector.extract_strided_slice %110 {offsets = [0, 256], sizes = [80, 128], strides = [1, 1]} : vector<80x640xf32> to vector<80x128xf32>
    %115 = arith.addf %113, %114 : vector<80x128xf32>
    %116 = vector.extract_strided_slice %110 {offsets = [0, 384], sizes = [80, 128], strides = [1, 1]} : vector<80x640xf32> to vector<80x128xf32>
    %117 = arith.addf %115, %116 : vector<80x128xf32>
    %118 = vector.extract_strided_slice %110 {offsets = [0, 512], sizes = [80, 128], strides = [1, 1]} : vector<80x640xf32> to vector<80x128xf32>
    %119 = arith.addf %117, %118 : vector<80x128xf32>
    %cst_28 = arith.constant dense<0.000000e+00> : vector<80xf32>
    %120 = vector.multi_reduction <add>, %119, %cst_28 [1] : vector<80x128xf32> to vector<80xf32>
    %121 = vector.shape_cast %120 : vector<80xf32> to vector<80x1xf32>
    %c4_i32_29 = arith.constant 4 : i32
    %122 = vector.broadcast %c4_i32_29 : i32 to vector<1x128xi32>
    %123 = arith.cmpi eq, %4, %122 : vector<1x128xi32>
    %cst_30 = arith.constant 1.000000e+00 : f32
    %cst_31 = arith.constant 0.000000e+00 : f32
    %124 = vector.broadcast %cst_30 : f32 to vector<1x128xf32>
    %125 = vector.broadcast %cst_31 : f32 to vector<1x128xf32>
    %126 = arith.select %123, %124, %125 : vector<1x128xi1>, vector<1x128xf32>
    %127 = vector.broadcast %121 : vector<80x1xf32> to vector<80x128xf32>
    %128 = vector.broadcast %126 : vector<1x128xf32> to vector<80x128xf32>
    %129 = arith.mulf %127, %128 : vector<80x128xf32>
    %130 = arith.addf %105, %129 : vector<80x128xf32>
    %c5_i32 = arith.constant 5 : i32
    %131 = vector.broadcast %c5_i32 : i32 to vector<80x640xi32>
    %132 = arith.cmpi eq, %3, %131 : vector<80x640xi32>
    %cst_32 = arith.constant 1.000000e+00 : f32
    %cst_33 = arith.constant 0.000000e+00 : f32
    %133 = vector.broadcast %cst_32 : f32 to vector<80x640xf32>
    %134 = vector.broadcast %cst_33 : f32 to vector<80x640xf32>
    %135 = arith.select %132, %133, %134 : vector<80x640xi1>, vector<80x640xf32>
    %136 = vector.extract_strided_slice %135 {offsets = [0, 0], sizes = [80, 128], strides = [1, 1]} : vector<80x640xf32> to vector<80x128xf32>
    %137 = vector.extract_strided_slice %135 {offsets = [0, 128], sizes = [80, 128], strides = [1, 1]} : vector<80x640xf32> to vector<80x128xf32>
    %138 = arith.addf %136, %137 : vector<80x128xf32>
    %139 = vector.extract_strided_slice %135 {offsets = [0, 256], sizes = [80, 128], strides = [1, 1]} : vector<80x640xf32> to vector<80x128xf32>
    %140 = arith.addf %138, %139 : vector<80x128xf32>
    %141 = vector.extract_strided_slice %135 {offsets = [0, 384], sizes = [80, 128], strides = [1, 1]} : vector<80x640xf32> to vector<80x128xf32>
    %142 = arith.addf %140, %141 : vector<80x128xf32>
    %143 = vector.extract_strided_slice %135 {offsets = [0, 512], sizes = [80, 128], strides = [1, 1]} : vector<80x640xf32> to vector<80x128xf32>
    %144 = arith.addf %142, %143 : vector<80x128xf32>
    %cst_34 = arith.constant dense<0.000000e+00> : vector<80xf32>
    %145 = vector.multi_reduction <add>, %144, %cst_34 [1] : vector<80x128xf32> to vector<80xf32>
    %146 = vector.shape_cast %145 : vector<80xf32> to vector<80x1xf32>
    %c5_i32_35 = arith.constant 5 : i32
    %147 = vector.broadcast %c5_i32_35 : i32 to vector<1x128xi32>
    %148 = arith.cmpi eq, %4, %147 : vector<1x128xi32>
    %cst_36 = arith.constant 1.000000e+00 : f32
    %cst_37 = arith.constant 0.000000e+00 : f32
    %149 = vector.broadcast %cst_36 : f32 to vector<1x128xf32>
    %150 = vector.broadcast %cst_37 : f32 to vector<1x128xf32>
    %151 = arith.select %148, %149, %150 : vector<1x128xi1>, vector<1x128xf32>
    %152 = vector.broadcast %146 : vector<80x1xf32> to vector<80x128xf32>
    %153 = vector.broadcast %151 : vector<1x128xf32> to vector<80x128xf32>
    %154 = arith.mulf %152, %153 : vector<80x128xf32>
    %155 = arith.addf %130, %154 : vector<80x128xf32>
    %c6_i32 = arith.constant 6 : i32
    %156 = vector.broadcast %c6_i32 : i32 to vector<80x640xi32>
    %157 = arith.cmpi eq, %3, %156 : vector<80x640xi32>
    %cst_38 = arith.constant 1.000000e+00 : f32
    %cst_39 = arith.constant 0.000000e+00 : f32
    %158 = vector.broadcast %cst_38 : f32 to vector<80x640xf32>
    %159 = vector.broadcast %cst_39 : f32 to vector<80x640xf32>
    %160 = arith.select %157, %158, %159 : vector<80x640xi1>, vector<80x640xf32>
    %161 = vector.extract_strided_slice %160 {offsets = [0, 0], sizes = [80, 128], strides = [1, 1]} : vector<80x640xf32> to vector<80x128xf32>
    %162 = vector.extract_strided_slice %160 {offsets = [0, 128], sizes = [80, 128], strides = [1, 1]} : vector<80x640xf32> to vector<80x128xf32>
    %163 = arith.addf %161, %162 : vector<80x128xf32>
    %164 = vector.extract_strided_slice %160 {offsets = [0, 256], sizes = [80, 128], strides = [1, 1]} : vector<80x640xf32> to vector<80x128xf32>
    %165 = arith.addf %163, %164 : vector<80x128xf32>
    %166 = vector.extract_strided_slice %160 {offsets = [0, 384], sizes = [80, 128], strides = [1, 1]} : vector<80x640xf32> to vector<80x128xf32>
    %167 = arith.addf %165, %166 : vector<80x128xf32>
    %168 = vector.extract_strided_slice %160 {offsets = [0, 512], sizes = [80, 128], strides = [1, 1]} : vector<80x640xf32> to vector<80x128xf32>
    %169 = arith.addf %167, %168 : vector<80x128xf32>
    %cst_40 = arith.constant dense<0.000000e+00> : vector<80xf32>
    %170 = vector.multi_reduction <add>, %169, %cst_40 [1] : vector<80x128xf32> to vector<80xf32>
    %171 = vector.shape_cast %170 : vector<80xf32> to vector<80x1xf32>
    %c6_i32_41 = arith.constant 6 : i32
    %172 = vector.broadcast %c6_i32_41 : i32 to vector<1x128xi32>
    %173 = arith.cmpi eq, %4, %172 : vector<1x128xi32>
    %cst_42 = arith.constant 1.000000e+00 : f32
    %cst_43 = arith.constant 0.000000e+00 : f32
    %174 = vector.broadcast %cst_42 : f32 to vector<1x128xf32>
    %175 = vector.broadcast %cst_43 : f32 to vector<1x128xf32>
    %176 = arith.select %173, %174, %175 : vector<1x128xi1>, vector<1x128xf32>
    %177 = vector.broadcast %171 : vector<80x1xf32> to vector<80x128xf32>
    %178 = vector.broadcast %176 : vector<1x128xf32> to vector<80x128xf32>
    %179 = arith.mulf %177, %178 : vector<80x128xf32>
    %180 = arith.addf %155, %179 : vector<80x128xf32>
    %c7_i32 = arith.constant 7 : i32
    %181 = vector.broadcast %c7_i32 : i32 to vector<80x640xi32>
    %182 = arith.cmpi eq, %3, %181 : vector<80x640xi32>
    %cst_44 = arith.constant 1.000000e+00 : f32
    %cst_45 = arith.constant 0.000000e+00 : f32
    %183 = vector.broadcast %cst_44 : f32 to vector<80x640xf32>
    %184 = vector.broadcast %cst_45 : f32 to vector<80x640xf32>
    %185 = arith.select %182, %183, %184 : vector<80x640xi1>, vector<80x640xf32>
    %186 = vector.extract_strided_slice %185 {offsets = [0, 0], sizes = [80, 128], strides = [1, 1]} : vector<80x640xf32> to vector<80x128xf32>
    %187 = vector.extract_strided_slice %185 {offsets = [0, 128], sizes = [80, 128], strides = [1, 1]} : vector<80x640xf32> to vector<80x128xf32>
    %188 = arith.addf %186, %187 : vector<80x128xf32>
    %189 = vector.extract_strided_slice %185 {offsets = [0, 256], sizes = [80, 128], strides = [1, 1]} : vector<80x640xf32> to vector<80x128xf32>
    %190 = arith.addf %188, %189 : vector<80x128xf32>
    %191 = vector.extract_strided_slice %185 {offsets = [0, 384], sizes = [80, 128], strides = [1, 1]} : vector<80x640xf32> to vector<80x128xf32>
    %192 = arith.addf %190, %191 : vector<80x128xf32>
    %193 = vector.extract_strided_slice %185 {offsets = [0, 512], sizes = [80, 128], strides = [1, 1]} : vector<80x640xf32> to vector<80x128xf32>
    %194 = arith.addf %192, %193 : vector<80x128xf32>
    %cst_46 = arith.constant dense<0.000000e+00> : vector<80xf32>
    %195 = vector.multi_reduction <add>, %194, %cst_46 [1] : vector<80x128xf32> to vector<80xf32>
    %196 = vector.shape_cast %195 : vector<80xf32> to vector<80x1xf32>
    %c7_i32_47 = arith.constant 7 : i32
    %197 = vector.broadcast %c7_i32_47 : i32 to vector<1x128xi32>
    %198 = arith.cmpi eq, %4, %197 : vector<1x128xi32>
    %cst_48 = arith.constant 1.000000e+00 : f32
    %cst_49 = arith.constant 0.000000e+00 : f32
    %199 = vector.broadcast %cst_48 : f32 to vector<1x128xf32>
    %200 = vector.broadcast %cst_49 : f32 to vector<1x128xf32>
    %201 = arith.select %198, %199, %200 : vector<1x128xi1>, vector<1x128xf32>
    %202 = vector.broadcast %196 : vector<80x1xf32> to vector<80x128xf32>
    %203 = vector.broadcast %201 : vector<1x128xf32> to vector<80x128xf32>
    %204 = arith.mulf %202, %203 : vector<80x128xf32>
    %205 = arith.addf %180, %204 : vector<80x128xf32>
    %c8_i32 = arith.constant 8 : i32
    %206 = vector.broadcast %c8_i32 : i32 to vector<80x640xi32>
    %207 = arith.cmpi eq, %3, %206 : vector<80x640xi32>
    %cst_50 = arith.constant 1.000000e+00 : f32
    %cst_51 = arith.constant 0.000000e+00 : f32
    %208 = vector.broadcast %cst_50 : f32 to vector<80x640xf32>
    %209 = vector.broadcast %cst_51 : f32 to vector<80x640xf32>
    %210 = arith.select %207, %208, %209 : vector<80x640xi1>, vector<80x640xf32>
    %211 = vector.extract_strided_slice %210 {offsets = [0, 0], sizes = [80, 128], strides = [1, 1]} : vector<80x640xf32> to vector<80x128xf32>
    %212 = vector.extract_strided_slice %210 {offsets = [0, 128], sizes = [80, 128], strides = [1, 1]} : vector<80x640xf32> to vector<80x128xf32>
    %213 = arith.addf %211, %212 : vector<80x128xf32>
    %214 = vector.extract_strided_slice %210 {offsets = [0, 256], sizes = [80, 128], strides = [1, 1]} : vector<80x640xf32> to vector<80x128xf32>
    %215 = arith.addf %213, %214 : vector<80x128xf32>
    %216 = vector.extract_strided_slice %210 {offsets = [0, 384], sizes = [80, 128], strides = [1, 1]} : vector<80x640xf32> to vector<80x128xf32>
    %217 = arith.addf %215, %216 : vector<80x128xf32>
    %218 = vector.extract_strided_slice %210 {offsets = [0, 512], sizes = [80, 128], strides = [1, 1]} : vector<80x640xf32> to vector<80x128xf32>
    %219 = arith.addf %217, %218 : vector<80x128xf32>
    %cst_52 = arith.constant dense<0.000000e+00> : vector<80xf32>
    %220 = vector.multi_reduction <add>, %219, %cst_52 [1] : vector<80x128xf32> to vector<80xf32>
    %221 = vector.shape_cast %220 : vector<80xf32> to vector<80x1xf32>
    %c8_i32_53 = arith.constant 8 : i32
    %222 = vector.broadcast %c8_i32_53 : i32 to vector<1x128xi32>
    %223 = arith.cmpi eq, %4, %222 : vector<1x128xi32>
    %cst_54 = arith.constant 1.000000e+00 : f32
    %cst_55 = arith.constant 0.000000e+00 : f32
    %224 = vector.broadcast %cst_54 : f32 to vector<1x128xf32>
    %225 = vector.broadcast %cst_55 : f32 to vector<1x128xf32>
    %226 = arith.select %223, %224, %225 : vector<1x128xi1>, vector<1x128xf32>
    %227 = vector.broadcast %221 : vector<80x1xf32> to vector<80x128xf32>
    %228 = vector.broadcast %226 : vector<1x128xf32> to vector<80x128xf32>
    %229 = arith.mulf %227, %228 : vector<80x128xf32>
    %230 = arith.addf %205, %229 : vector<80x128xf32>
    %c9_i32 = arith.constant 9 : i32
    %231 = vector.broadcast %c9_i32 : i32 to vector<80x640xi32>
    %232 = arith.cmpi eq, %3, %231 : vector<80x640xi32>
    %cst_56 = arith.constant 1.000000e+00 : f32
    %cst_57 = arith.constant 0.000000e+00 : f32
    %233 = vector.broadcast %cst_56 : f32 to vector<80x640xf32>
    %234 = vector.broadcast %cst_57 : f32 to vector<80x640xf32>
    %235 = arith.select %232, %233, %234 : vector<80x640xi1>, vector<80x640xf32>
    %236 = vector.extract_strided_slice %235 {offsets = [0, 0], sizes = [80, 128], strides = [1, 1]} : vector<80x640xf32> to vector<80x128xf32>
    %237 = vector.extract_strided_slice %235 {offsets = [0, 128], sizes = [80, 128], strides = [1, 1]} : vector<80x640xf32> to vector<80x128xf32>
    %238 = arith.addf %236, %237 : vector<80x128xf32>
    %239 = vector.extract_strided_slice %235 {offsets = [0, 256], sizes = [80, 128], strides = [1, 1]} : vector<80x640xf32> to vector<80x128xf32>
    %240 = arith.addf %238, %239 : vector<80x128xf32>
    %241 = vector.extract_strided_slice %235 {offsets = [0, 384], sizes = [80, 128], strides = [1, 1]} : vector<80x640xf32> to vector<80x128xf32>
    %242 = arith.addf %240, %241 : vector<80x128xf32>
    %243 = vector.extract_strided_slice %235 {offsets = [0, 512], sizes = [80, 128], strides = [1, 1]} : vector<80x640xf32> to vector<80x128xf32>
    %244 = arith.addf %242, %243 : vector<80x128xf32>
    %cst_58 = arith.constant dense<0.000000e+00> : vector<80xf32>
    %245 = vector.multi_reduction <add>, %244, %cst_58 [1] : vector<80x128xf32> to vector<80xf32>
    %246 = vector.shape_cast %245 : vector<80xf32> to vector<80x1xf32>
    %c9_i32_59 = arith.constant 9 : i32
    %247 = vector.broadcast %c9_i32_59 : i32 to vector<1x128xi32>
    %248 = arith.cmpi eq, %4, %247 : vector<1x128xi32>
    %cst_60 = arith.constant 1.000000e+00 : f32
    %cst_61 = arith.constant 0.000000e+00 : f32
    %249 = vector.broadcast %cst_60 : f32 to vector<1x128xf32>
    %250 = vector.broadcast %cst_61 : f32 to vector<1x128xf32>
    %251 = arith.select %248, %249, %250 : vector<1x128xi1>, vector<1x128xf32>
    %252 = vector.broadcast %246 : vector<80x1xf32> to vector<80x128xf32>
    %253 = vector.broadcast %251 : vector<1x128xf32> to vector<80x128xf32>
    %254 = arith.mulf %252, %253 : vector<80x128xf32>
    %255 = arith.addf %230, %254 : vector<80x128xf32>
    %c10_i32 = arith.constant 10 : i32
    %256 = vector.broadcast %c10_i32 : i32 to vector<80x640xi32>
    %257 = arith.cmpi eq, %3, %256 : vector<80x640xi32>
    %cst_62 = arith.constant 1.000000e+00 : f32
    %cst_63 = arith.constant 0.000000e+00 : f32
    %258 = vector.broadcast %cst_62 : f32 to vector<80x640xf32>
    %259 = vector.broadcast %cst_63 : f32 to vector<80x640xf32>
    %260 = arith.select %257, %258, %259 : vector<80x640xi1>, vector<80x640xf32>
    %261 = vector.extract_strided_slice %260 {offsets = [0, 0], sizes = [80, 128], strides = [1, 1]} : vector<80x640xf32> to vector<80x128xf32>
    %262 = vector.extract_strided_slice %260 {offsets = [0, 128], sizes = [80, 128], strides = [1, 1]} : vector<80x640xf32> to vector<80x128xf32>
    %263 = arith.addf %261, %262 : vector<80x128xf32>
    %264 = vector.extract_strided_slice %260 {offsets = [0, 256], sizes = [80, 128], strides = [1, 1]} : vector<80x640xf32> to vector<80x128xf32>
    %265 = arith.addf %263, %264 : vector<80x128xf32>
    %266 = vector.extract_strided_slice %260 {offsets = [0, 384], sizes = [80, 128], strides = [1, 1]} : vector<80x640xf32> to vector<80x128xf32>
    %267 = arith.addf %265, %266 : vector<80x128xf32>
    %268 = vector.extract_strided_slice %260 {offsets = [0, 512], sizes = [80, 128], strides = [1, 1]} : vector<80x640xf32> to vector<80x128xf32>
    %269 = arith.addf %267, %268 : vector<80x128xf32>
    %cst_64 = arith.constant dense<0.000000e+00> : vector<80xf32>
    %270 = vector.multi_reduction <add>, %269, %cst_64 [1] : vector<80x128xf32> to vector<80xf32>
    %271 = vector.shape_cast %270 : vector<80xf32> to vector<80x1xf32>
    %c10_i32_65 = arith.constant 10 : i32
    %272 = vector.broadcast %c10_i32_65 : i32 to vector<1x128xi32>
    %273 = arith.cmpi eq, %4, %272 : vector<1x128xi32>
    %cst_66 = arith.constant 1.000000e+00 : f32
    %cst_67 = arith.constant 0.000000e+00 : f32
    %274 = vector.broadcast %cst_66 : f32 to vector<1x128xf32>
    %275 = vector.broadcast %cst_67 : f32 to vector<1x128xf32>
    %276 = arith.select %273, %274, %275 : vector<1x128xi1>, vector<1x128xf32>
    %277 = vector.broadcast %271 : vector<80x1xf32> to vector<80x128xf32>
    %278 = vector.broadcast %276 : vector<1x128xf32> to vector<80x128xf32>
    %279 = arith.mulf %277, %278 : vector<80x128xf32>
    %280 = arith.addf %255, %279 : vector<80x128xf32>
    %c11_i32 = arith.constant 11 : i32
    %281 = vector.broadcast %c11_i32 : i32 to vector<80x640xi32>
    %282 = arith.cmpi eq, %3, %281 : vector<80x640xi32>
    %cst_68 = arith.constant 1.000000e+00 : f32
    %cst_69 = arith.constant 0.000000e+00 : f32
    %283 = vector.broadcast %cst_68 : f32 to vector<80x640xf32>
    %284 = vector.broadcast %cst_69 : f32 to vector<80x640xf32>
    %285 = arith.select %282, %283, %284 : vector<80x640xi1>, vector<80x640xf32>
    %286 = vector.extract_strided_slice %285 {offsets = [0, 0], sizes = [80, 128], strides = [1, 1]} : vector<80x640xf32> to vector<80x128xf32>
    %287 = vector.extract_strided_slice %285 {offsets = [0, 128], sizes = [80, 128], strides = [1, 1]} : vector<80x640xf32> to vector<80x128xf32>
    %288 = arith.addf %286, %287 : vector<80x128xf32>
    %289 = vector.extract_strided_slice %285 {offsets = [0, 256], sizes = [80, 128], strides = [1, 1]} : vector<80x640xf32> to vector<80x128xf32>
    %290 = arith.addf %288, %289 : vector<80x128xf32>
    %291 = vector.extract_strided_slice %285 {offsets = [0, 384], sizes = [80, 128], strides = [1, 1]} : vector<80x640xf32> to vector<80x128xf32>
    %292 = arith.addf %290, %291 : vector<80x128xf32>
    %293 = vector.extract_strided_slice %285 {offsets = [0, 512], sizes = [80, 128], strides = [1, 1]} : vector<80x640xf32> to vector<80x128xf32>
    %294 = arith.addf %292, %293 : vector<80x128xf32>
    %cst_70 = arith.constant dense<0.000000e+00> : vector<80xf32>
    %295 = vector.multi_reduction <add>, %294, %cst_70 [1] : vector<80x128xf32> to vector<80xf32>
    %296 = vector.shape_cast %295 : vector<80xf32> to vector<80x1xf32>
    %c11_i32_71 = arith.constant 11 : i32
    %297 = vector.broadcast %c11_i32_71 : i32 to vector<1x128xi32>
    %298 = arith.cmpi eq, %4, %297 : vector<1x128xi32>
    %cst_72 = arith.constant 1.000000e+00 : f32
    %cst_73 = arith.constant 0.000000e+00 : f32
    %299 = vector.broadcast %cst_72 : f32 to vector<1x128xf32>
    %300 = vector.broadcast %cst_73 : f32 to vector<1x128xf32>
    %301 = arith.select %298, %299, %300 : vector<1x128xi1>, vector<1x128xf32>
    %302 = vector.broadcast %296 : vector<80x1xf32> to vector<80x128xf32>
    %303 = vector.broadcast %301 : vector<1x128xf32> to vector<80x128xf32>
    %304 = arith.mulf %302, %303 : vector<80x128xf32>
    %305 = arith.addf %280, %304 : vector<80x128xf32>
    %c12_i32 = arith.constant 12 : i32
    %306 = vector.broadcast %c12_i32 : i32 to vector<80x640xi32>
    %307 = arith.cmpi eq, %3, %306 : vector<80x640xi32>
    %cst_74 = arith.constant 1.000000e+00 : f32
    %cst_75 = arith.constant 0.000000e+00 : f32
    %308 = vector.broadcast %cst_74 : f32 to vector<80x640xf32>
    %309 = vector.broadcast %cst_75 : f32 to vector<80x640xf32>
    %310 = arith.select %307, %308, %309 : vector<80x640xi1>, vector<80x640xf32>
    %311 = vector.extract_strided_slice %310 {offsets = [0, 0], sizes = [80, 128], strides = [1, 1]} : vector<80x640xf32> to vector<80x128xf32>
    %312 = vector.extract_strided_slice %310 {offsets = [0, 128], sizes = [80, 128], strides = [1, 1]} : vector<80x640xf32> to vector<80x128xf32>
    %313 = arith.addf %311, %312 : vector<80x128xf32>
    %314 = vector.extract_strided_slice %310 {offsets = [0, 256], sizes = [80, 128], strides = [1, 1]} : vector<80x640xf32> to vector<80x128xf32>
    %315 = arith.addf %313, %314 : vector<80x128xf32>
    %316 = vector.extract_strided_slice %310 {offsets = [0, 384], sizes = [80, 128], strides = [1, 1]} : vector<80x640xf32> to vector<80x128xf32>
    %317 = arith.addf %315, %316 : vector<80x128xf32>
    %318 = vector.extract_strided_slice %310 {offsets = [0, 512], sizes = [80, 128], strides = [1, 1]} : vector<80x640xf32> to vector<80x128xf32>
    %319 = arith.addf %317, %318 : vector<80x128xf32>
    %cst_76 = arith.constant dense<0.000000e+00> : vector<80xf32>
    %320 = vector.multi_reduction <add>, %319, %cst_76 [1] : vector<80x128xf32> to vector<80xf32>
    %321 = vector.shape_cast %320 : vector<80xf32> to vector<80x1xf32>
    %c12_i32_77 = arith.constant 12 : i32
    %322 = vector.broadcast %c12_i32_77 : i32 to vector<1x128xi32>
    %323 = arith.cmpi eq, %4, %322 : vector<1x128xi32>
    %cst_78 = arith.constant 1.000000e+00 : f32
    %cst_79 = arith.constant 0.000000e+00 : f32
    %324 = vector.broadcast %cst_78 : f32 to vector<1x128xf32>
    %325 = vector.broadcast %cst_79 : f32 to vector<1x128xf32>
    %326 = arith.select %323, %324, %325 : vector<1x128xi1>, vector<1x128xf32>
    %327 = vector.broadcast %321 : vector<80x1xf32> to vector<80x128xf32>
    %328 = vector.broadcast %326 : vector<1x128xf32> to vector<80x128xf32>
    %329 = arith.mulf %327, %328 : vector<80x128xf32>
    %330 = arith.addf %305, %329 : vector<80x128xf32>
    %c13_i32 = arith.constant 13 : i32
    %331 = vector.broadcast %c13_i32 : i32 to vector<80x640xi32>
    %332 = arith.cmpi eq, %3, %331 : vector<80x640xi32>
    %cst_80 = arith.constant 1.000000e+00 : f32
    %cst_81 = arith.constant 0.000000e+00 : f32
    %333 = vector.broadcast %cst_80 : f32 to vector<80x640xf32>
    %334 = vector.broadcast %cst_81 : f32 to vector<80x640xf32>
    %335 = arith.select %332, %333, %334 : vector<80x640xi1>, vector<80x640xf32>
    %336 = vector.extract_strided_slice %335 {offsets = [0, 0], sizes = [80, 128], strides = [1, 1]} : vector<80x640xf32> to vector<80x128xf32>
    %337 = vector.extract_strided_slice %335 {offsets = [0, 128], sizes = [80, 128], strides = [1, 1]} : vector<80x640xf32> to vector<80x128xf32>
    %338 = arith.addf %336, %337 : vector<80x128xf32>
    %339 = vector.extract_strided_slice %335 {offsets = [0, 256], sizes = [80, 128], strides = [1, 1]} : vector<80x640xf32> to vector<80x128xf32>
    %340 = arith.addf %338, %339 : vector<80x128xf32>
    %341 = vector.extract_strided_slice %335 {offsets = [0, 384], sizes = [80, 128], strides = [1, 1]} : vector<80x640xf32> to vector<80x128xf32>
    %342 = arith.addf %340, %341 : vector<80x128xf32>
    %343 = vector.extract_strided_slice %335 {offsets = [0, 512], sizes = [80, 128], strides = [1, 1]} : vector<80x640xf32> to vector<80x128xf32>
    %344 = arith.addf %342, %343 : vector<80x128xf32>
    %cst_82 = arith.constant dense<0.000000e+00> : vector<80xf32>
    %345 = vector.multi_reduction <add>, %344, %cst_82 [1] : vector<80x128xf32> to vector<80xf32>
    %346 = vector.shape_cast %345 : vector<80xf32> to vector<80x1xf32>
    %c13_i32_83 = arith.constant 13 : i32
    %347 = vector.broadcast %c13_i32_83 : i32 to vector<1x128xi32>
    %348 = arith.cmpi eq, %4, %347 : vector<1x128xi32>
    %cst_84 = arith.constant 1.000000e+00 : f32
    %cst_85 = arith.constant 0.000000e+00 : f32
    %349 = vector.broadcast %cst_84 : f32 to vector<1x128xf32>
    %350 = vector.broadcast %cst_85 : f32 to vector<1x128xf32>
    %351 = arith.select %348, %349, %350 : vector<1x128xi1>, vector<1x128xf32>
    %352 = vector.broadcast %346 : vector<80x1xf32> to vector<80x128xf32>
    %353 = vector.broadcast %351 : vector<1x128xf32> to vector<80x128xf32>
    %354 = arith.mulf %352, %353 : vector<80x128xf32>
    %355 = arith.addf %330, %354 : vector<80x128xf32>
    %c14_i32 = arith.constant 14 : i32
    %356 = vector.broadcast %c14_i32 : i32 to vector<80x640xi32>
    %357 = arith.cmpi eq, %3, %356 : vector<80x640xi32>
    %cst_86 = arith.constant 1.000000e+00 : f32
    %cst_87 = arith.constant 0.000000e+00 : f32
    %358 = vector.broadcast %cst_86 : f32 to vector<80x640xf32>
    %359 = vector.broadcast %cst_87 : f32 to vector<80x640xf32>
    %360 = arith.select %357, %358, %359 : vector<80x640xi1>, vector<80x640xf32>
    %361 = vector.extract_strided_slice %360 {offsets = [0, 0], sizes = [80, 128], strides = [1, 1]} : vector<80x640xf32> to vector<80x128xf32>
    %362 = vector.extract_strided_slice %360 {offsets = [0, 128], sizes = [80, 128], strides = [1, 1]} : vector<80x640xf32> to vector<80x128xf32>
    %363 = arith.addf %361, %362 : vector<80x128xf32>
    %364 = vector.extract_strided_slice %360 {offsets = [0, 256], sizes = [80, 128], strides = [1, 1]} : vector<80x640xf32> to vector<80x128xf32>
    %365 = arith.addf %363, %364 : vector<80x128xf32>
    %366 = vector.extract_strided_slice %360 {offsets = [0, 384], sizes = [80, 128], strides = [1, 1]} : vector<80x640xf32> to vector<80x128xf32>
    %367 = arith.addf %365, %366 : vector<80x128xf32>
    %368 = vector.extract_strided_slice %360 {offsets = [0, 512], sizes = [80, 128], strides = [1, 1]} : vector<80x640xf32> to vector<80x128xf32>
    %369 = arith.addf %367, %368 : vector<80x128xf32>
    %cst_88 = arith.constant dense<0.000000e+00> : vector<80xf32>
    %370 = vector.multi_reduction <add>, %369, %cst_88 [1] : vector<80x128xf32> to vector<80xf32>
    %371 = vector.shape_cast %370 : vector<80xf32> to vector<80x1xf32>
    %c14_i32_89 = arith.constant 14 : i32
    %372 = vector.broadcast %c14_i32_89 : i32 to vector<1x128xi32>
    %373 = arith.cmpi eq, %4, %372 : vector<1x128xi32>
    %cst_90 = arith.constant 1.000000e+00 : f32
    %cst_91 = arith.constant 0.000000e+00 : f32
    %374 = vector.broadcast %cst_90 : f32 to vector<1x128xf32>
    %375 = vector.broadcast %cst_91 : f32 to vector<1x128xf32>
    %376 = arith.select %373, %374, %375 : vector<1x128xi1>, vector<1x128xf32>
    %377 = vector.broadcast %371 : vector<80x1xf32> to vector<80x128xf32>
    %378 = vector.broadcast %376 : vector<1x128xf32> to vector<80x128xf32>
    %379 = arith.mulf %377, %378 : vector<80x128xf32>
    %380 = arith.addf %355, %379 : vector<80x128xf32>
    %c15_i32 = arith.constant 15 : i32
    %381 = vector.broadcast %c15_i32 : i32 to vector<80x640xi32>
    %382 = arith.cmpi eq, %3, %381 : vector<80x640xi32>
    %cst_92 = arith.constant 1.000000e+00 : f32
    %cst_93 = arith.constant 0.000000e+00 : f32
    %383 = vector.broadcast %cst_92 : f32 to vector<80x640xf32>
    %384 = vector.broadcast %cst_93 : f32 to vector<80x640xf32>
    %385 = arith.select %382, %383, %384 : vector<80x640xi1>, vector<80x640xf32>
    %386 = vector.extract_strided_slice %385 {offsets = [0, 0], sizes = [80, 128], strides = [1, 1]} : vector<80x640xf32> to vector<80x128xf32>
    %387 = vector.extract_strided_slice %385 {offsets = [0, 128], sizes = [80, 128], strides = [1, 1]} : vector<80x640xf32> to vector<80x128xf32>
    %388 = arith.addf %386, %387 : vector<80x128xf32>
    %389 = vector.extract_strided_slice %385 {offsets = [0, 256], sizes = [80, 128], strides = [1, 1]} : vector<80x640xf32> to vector<80x128xf32>
    %390 = arith.addf %388, %389 : vector<80x128xf32>
    %391 = vector.extract_strided_slice %385 {offsets = [0, 384], sizes = [80, 128], strides = [1, 1]} : vector<80x640xf32> to vector<80x128xf32>
    %392 = arith.addf %390, %391 : vector<80x128xf32>
    %393 = vector.extract_strided_slice %385 {offsets = [0, 512], sizes = [80, 128], strides = [1, 1]} : vector<80x640xf32> to vector<80x128xf32>
    %394 = arith.addf %392, %393 : vector<80x128xf32>
    %cst_94 = arith.constant dense<0.000000e+00> : vector<80xf32>
    %395 = vector.multi_reduction <add>, %394, %cst_94 [1] : vector<80x128xf32> to vector<80xf32>
    %396 = vector.shape_cast %395 : vector<80xf32> to vector<80x1xf32>
    %c15_i32_95 = arith.constant 15 : i32
    %397 = vector.broadcast %c15_i32_95 : i32 to vector<1x128xi32>
    %398 = arith.cmpi eq, %4, %397 : vector<1x128xi32>
    %cst_96 = arith.constant 1.000000e+00 : f32
    %cst_97 = arith.constant 0.000000e+00 : f32
    %399 = vector.broadcast %cst_96 : f32 to vector<1x128xf32>
    %400 = vector.broadcast %cst_97 : f32 to vector<1x128xf32>
    %401 = arith.select %398, %399, %400 : vector<1x128xi1>, vector<1x128xf32>
    %402 = vector.broadcast %396 : vector<80x1xf32> to vector<80x128xf32>
    %403 = vector.broadcast %401 : vector<1x128xf32> to vector<80x128xf32>
    %404 = arith.mulf %402, %403 : vector<80x128xf32>
    %405 = arith.addf %380, %404 : vector<80x128xf32>
    %c16_i32 = arith.constant 16 : i32
    %406 = vector.broadcast %c16_i32 : i32 to vector<80x640xi32>
    %407 = arith.cmpi eq, %3, %406 : vector<80x640xi32>
    %cst_98 = arith.constant 1.000000e+00 : f32
    %cst_99 = arith.constant 0.000000e+00 : f32
    %408 = vector.broadcast %cst_98 : f32 to vector<80x640xf32>
    %409 = vector.broadcast %cst_99 : f32 to vector<80x640xf32>
    %410 = arith.select %407, %408, %409 : vector<80x640xi1>, vector<80x640xf32>
    %411 = vector.extract_strided_slice %410 {offsets = [0, 0], sizes = [80, 128], strides = [1, 1]} : vector<80x640xf32> to vector<80x128xf32>
    %412 = vector.extract_strided_slice %410 {offsets = [0, 128], sizes = [80, 128], strides = [1, 1]} : vector<80x640xf32> to vector<80x128xf32>
    %413 = arith.addf %411, %412 : vector<80x128xf32>
    %414 = vector.extract_strided_slice %410 {offsets = [0, 256], sizes = [80, 128], strides = [1, 1]} : vector<80x640xf32> to vector<80x128xf32>
    %415 = arith.addf %413, %414 : vector<80x128xf32>
    %416 = vector.extract_strided_slice %410 {offsets = [0, 384], sizes = [80, 128], strides = [1, 1]} : vector<80x640xf32> to vector<80x128xf32>
    %417 = arith.addf %415, %416 : vector<80x128xf32>
    %418 = vector.extract_strided_slice %410 {offsets = [0, 512], sizes = [80, 128], strides = [1, 1]} : vector<80x640xf32> to vector<80x128xf32>
    %419 = arith.addf %417, %418 : vector<80x128xf32>
    %cst_100 = arith.constant dense<0.000000e+00> : vector<80xf32>
    %420 = vector.multi_reduction <add>, %419, %cst_100 [1] : vector<80x128xf32> to vector<80xf32>
    %421 = vector.shape_cast %420 : vector<80xf32> to vector<80x1xf32>
    %c16_i32_101 = arith.constant 16 : i32
    %422 = vector.broadcast %c16_i32_101 : i32 to vector<1x128xi32>
    %423 = arith.cmpi eq, %4, %422 : vector<1x128xi32>
    %cst_102 = arith.constant 1.000000e+00 : f32
    %cst_103 = arith.constant 0.000000e+00 : f32
    %424 = vector.broadcast %cst_102 : f32 to vector<1x128xf32>
    %425 = vector.broadcast %cst_103 : f32 to vector<1x128xf32>
    %426 = arith.select %423, %424, %425 : vector<1x128xi1>, vector<1x128xf32>
    %427 = vector.broadcast %421 : vector<80x1xf32> to vector<80x128xf32>
    %428 = vector.broadcast %426 : vector<1x128xf32> to vector<80x128xf32>
    %429 = arith.mulf %427, %428 : vector<80x128xf32>
    %430 = arith.addf %405, %429 : vector<80x128xf32>
    %c0_104 = arith.constant 0 : index
    %c0_105 = arith.constant 0 : index
    %431 = vector.load %arg2[%c0_104, %c0_105] : memref<80x128xf32, #tpu.memory_space<vmem>>, vector<80x128xf32>
    tpu.vector_store %arg2[%c0_104, %c0_105], %430 {strides = array<i32>} : memref<80x128xf32, #tpu.memory_space<vmem>>, vector<80x128xf32>,
    return
  }
  func.func @transform_0(%arg0: i32) -> (i32, i32) {
    %c0_i32 = arith.constant 0 : i32
    %c0_i32_0 = arith.constant 0 : i32
    return %arg0, %c0_i32 : i32, i32
  }
  func.func @transform_1(%arg0: i32) -> (i32, i32) {
    %c0_i32 = arith.constant 0 : i32
    %c0_i32_0 = arith.constant 0 : i32
    return %arg0, %c0_i32 : i32, i32
  }
}

</mosaic_0001>

<llo_original>
// kernel: tpu_custom_call.1
$region0: #{tpu_custom_call.1}
  #allocation0 [shape = 'u32[]', space=smem, size = 0x4, offset = 0x4, fixed_abs, tag = 'smem constant byte address 0x4 - core index']
  #allocation1 [shape = 'u32[144,128]{1,0:T(1,128)}', space=vmem, size = 0x12000, scoped, tag = 'internal scratch']
  %s0 = inlined_call_operand.hbm [shape: s16[80,640], index: 0, kind: input, shape index: {}]
  %s1 = inlined_call_operand.hbm [shape: f32[80,128], index: 1, kind: output, shape index: {}]
  %s2 = sld [smem:[#allocation0]]
  $region18: #{tpu_custom_call.1} parent=0
    _
  %s4 = ssub.s32 1, %s2
  %s5 = scalar_select 0, %s4, %s2
  $region1: #{tpu_custom_call.1} parent=0
    #allocation2 [shape = 'u8[102400]{0}', space=vmem, size = 0x19000, scoped, tag = 'input window, operand 0, single buffered']
    #allocation3 [shape = 's32[1]{0}', space=sflag, size = 0x4, scoped, tag = 'scoped memory for tpu_custom_call.1']
    #allocation4 [shape = 's32[1]{0}', space=sflag, size = 0x4, scoped, tag = 'scoped memory for tpu_custom_call.1']
    #allocation5 [shape = 'u8[40960]{0}', space=vmem, size = 0xa000, scoped, tag = 'output window, operand 0, single buffered']
    %6 = vsyncpa [#allocation3], 0
    %7 = vsyncpa [#allocation4], 0
    // Predicated region
    $region2: #{tpu_custom_call.1} parent=1 // pred_check
      _
    $region3: #{tpu_custom_call.1} parent=1 // pred_check_branch
      %9 = sbr.rel (0) target = $region5
    $region4: #{tpu_custom_call.1} parent=1 // pred_region
      %s11 = ssub.s32 3200, 3200
      %12 = vsyncadd [#allocation3], %s11
      %s13 = sshll.u32 [#allocation2], 4
      %s14 = int_to_ptr.vmem [resolvable:$true] %s13
      %19 = dma.hbm_to_vmem [thread:$0]  %s0, 3200, %s14, [#allocation3], 320, 320, 20
    $region5: #{tpu_custom_call.1} parent=1 // pred_fallthru
      _
    // Predicated region
    $region6: #{tpu_custom_call.1} parent=1 // pred_check
      _
    $region7: #{tpu_custom_call.1} parent=1 // pred_check_branch
      %21 = sbr.rel (0) target = $region9
    $region8: #{tpu_custom_call.1} parent=1 // pred_region
      %22 = dma.done [#allocation3], 3200
    $region9: #{tpu_custom_call.1} parent=1 // pred_fallthru
      _
    %v23 = vld [vmem:[#allocation2] sm:$0xff]
    %v24 = vld [vmem:[#allocation2 + $0x8] sm:$0xff]
    %v25 = vld [vmem:[#allocation2 + $0x10] sm:$0xf]
    %v26 = vld [vmem:[#allocation2 + $0x14] sm:$0xff]
    %v27 = vld [vmem:[#allocation2 + $0x1c] sm:$0xff]
    %v28 = vld [vmem:[#allocation2 + $0x24] sm:$0xf]
    %v29 = vld [vmem:[#allocation2 + $0x28] sm:$0xff]
    %v30 = vld [vmem:[#allocation2 + $0x30] sm:$0xff]
    %v31 = vld [vmem:[#allocation2 + $0x38] sm:$0xf]
    %v32 = vld [vmem:[#allocation2 + $0x3c] sm:$0xff]
    %v33 = vld [vmem:[#allocation2 + $0x44] sm:$0xff]
    %v34 = vld [vmem:[#allocation2 + $0x4c] sm:$0xf]
    %v35 = vld [vmem:[#allocation2 + $0x50] sm:$0xff]
    %v36 = vld [vmem:[#allocation2 + $0x58] sm:$0xff]
    %v37 = vld [vmem:[#allocation2 + $0x60] sm:$0xf]
    %v38 = vld [vmem:[#allocation2 + $0x64] sm:$0xff]
    %v39 = vld [vmem:[#allocation2 + $0x6c] sm:$0xff]
    %v40 = vld [vmem:[#allocation2 + $0x74] sm:$0xf]
    %v41 = vld [vmem:[#allocation2 + $0x78] sm:$0xff]
    %v42 = vld [vmem:[#allocation2 + $0x80] sm:$0xff]
    %v43 = vld [vmem:[#allocation2 + $0x88] sm:$0xf]
    %v44 = vld [vmem:[#allocation2 + $0x8c] sm:$0xff]
    %v45 = vld [vmem:[#allocation2 + $0x94] sm:$0xff]
    %v46 = vld [vmem:[#allocation2 + $0x9c] sm:$0xf]
    %v47 = vld [vmem:[#allocation2 + $0xa0] sm:$0xff]
    %v48 = vld [vmem:[#allocation2 + $0xa8] sm:$0xff]
    %v49 = vld [vmem:[#allocation2 + $0xb0] sm:$0xf]
    %v50 = vld [vmem:[#allocation2 + $0xb4] sm:$0xff]
    %v51 = vld [vmem:[#allocation2 + $0xbc] sm:$0xff]
    %v52 = vld [vmem:[#allocation2 + $0xc4] sm:$0xf]
    %v53 = vunpack.c.l.b16 %v23
    %v54 = vunpack.c.h.b16 %v23
    %v55 = vunpack.c.l.b16 %v24
    %v56 = vunpack.c.h.b16 %v24
    %v57 = vunpack.c.l.b16 %v25
    %v58 = vunpack.c.l.b16 %v26
    %v59 = vunpack.c.h.b16 %v26
    %v60 = vunpack.c.l.b16 %v27
    %v61 = vunpack.c.h.b16 %v27
    %v62 = vunpack.c.l.b16 %v28
    %v63 = vunpack.c.l.b16 %v29
    %v64 = vunpack.c.h.b16 %v29
    %v65 = vunpack.c.l.b16 %v30
    %v66 = vunpack.c.h.b16 %v30
    %v67 = vunpack.c.l.b16 %v31
    %v68 = vunpack.c.l.b16 %v32
    %v69 = vunpack.c.h.b16 %v32
    %v70 = vunpack.c.l.b16 %v33
    %v71 = vunpack.c.h.b16 %v33
    %v72 = vunpack.c.l.b16 %v34
    %v73 = vunpack.c.l.b16 %v35
    %v74 = vunpack.c.h.b16 %v35
    %v75 = vunpack.c.l.b16 %v36
    %v76 = vunpack.c.h.b16 %v36
    %v77 = vunpack.c.l.b16 %v37
    %v78 = vunpack.c.l.b16 %v38
    %v79 = vunpack.c.h.b16 %v38
    %v80 = vunpack.c.l.b16 %v39
    %v81 = vunpack.c.h.b16 %v39
    %v82 = vunpack.c.l.b16 %v40
    %v83 = vunpack.c.l.b16 %v41
    %v84 = vunpack.c.h.b16 %v41
    %v85 = vunpack.c.l.b16 %v42
    %v86 = vunpack.c.h.b16 %v42
    %v87 = vunpack.c.l.b16 %v43
    %v88 = vunpack.c.l.b16 %v44
    %v89 = vunpack.c.h.b16 %v44
    %v90 = vunpack.c.l.b16 %v45
    %v91 = vunpack.c.h.b16 %v45
    %v92 = vunpack.c.l.b16 %v46
    %v93 = vunpack.c.l.b16 %v47
    %v94 = vunpack.c.h.b16 %v47
    %v95 = vunpack.c.l.b16 %v48
    %v96 = vunpack.c.h.b16 %v48
    %v97 = vunpack.c.l.b16 %v49
    %v98 = vunpack.c.l.b16 %v50
    %v99 = vunpack.c.h.b16 %v50
    %v100 = vunpack.c.l.b16 %v51
    %v101 = vunpack.c.h.b16 %v51
    %v102 = vunpack.c.l.b16 %v52
    %v103 = vshra.s32 %v53, 4
    %v104 = vshra.s32 %v54, 4
    %v105 = vshra.s32 %v55, 4
    %v106 = vshra.s32 %v56, 4
    %v107 = vshra.s32 %v57, 4
    %v108 = vshra.s32 %v58, 4
    %v109 = vshra.s32 %v59, 4
    %v110 = vshra.s32 %v60, 4
    %v111 = vshra.s32 %v61, 4
    %v112 = vshra.s32 %v62, 4
    %v113 = vshra.s32 %v63, 4
    %v114 = vshra.s32 %v64, 4
    %v115 = vshra.s32 %v65, 4
    %v116 = vshra.s32 %v66, 4
    %v117 = vshra.s32 %v67, 4
    %v118 = vshra.s32 %v68, 4
    %v119 = vshra.s32 %v69, 4
    %v120 = vshra.s32 %v70, 4
    %v121 = vshra.s32 %v71, 4
    %v122 = vshra.s32 %v72, 4
    %v123 = vshra.s32 %v73, 4
    %v124 = vshra.s32 %v74, 4
    %v125 = vshra.s32 %v75, 4
    %v126 = vshra.s32 %v76, 4
    %v127 = vshra.s32 %v77, 4
    %v128 = vshra.s32 %v78, 4
    %v129 = vshra.s32 %v79, 4
    %v130 = vshra.s32 %v80, 4
    %v131 = vshra.s32 %v81, 4
    %v132 = vshra.s32 %v82, 4
    %v133 = vshra.s32 %v83, 4
    %v134 = vshra.s32 %v84, 4
    %v135 = vshra.s32 %v85, 4
    %v136 = vshra.s32 %v86, 4
    %v137 = vshra.s32 %v87, 4
    %v138 = vshra.s32 %v88, 4
    %v139 = vshra.s32 %v89, 4
    %v140 = vshra.s32 %v90, 4
    %v141 = vshra.s32 %v91, 4
    %v142 = vshra.s32 %v92, 4
    %v143 = vshra.s32 %v93, 4
    %v144 = vshra.s32 %v94, 4
    %v145 = vshra.s32 %v95, 4
    %v146 = vshra.s32 %v96, 4
    %v147 = vshra.s32 %v97, 4
    %v148 = vshra.s32 %v98, 4
    %v149 = vshra.s32 %v99, 4
    %v150 = vshra.s32 %v100, 4
    %v151 = vshra.s32 %v101, 4
    %v152 = vshra.s32 %v102, 4
    %v153 = vlaneseq
    %v154 = vand.u32 %v153, 127
    %vm155 = vcmp.eq.s32.totalorder %v103, 0
    %vm156 = vcmp.eq.s32.totalorder %v104, 0
    %vm157 = vcmp.eq.s32.totalorder %v105, 0
    %vm158 = vcmp.eq.s32.totalorder %v106, 0
    %vm159 = vcmp.eq.s32.totalorder %v107, 0
    %vm160 = vcmp.eq.s32.totalorder %v108, 0
    %vm161 = vcmp.eq.s32.totalorder %v109, 0
    %vm162 = vcmp.eq.s32.totalorder %v110, 0
    %vm163 = vcmp.eq.s32.totalorder %v111, 0
    %vm164 = vcmp.eq.s32.totalorder %v112, 0
    %vm165 = vcmp.eq.s32.totalorder %v113, 0
    %vm166 = vcmp.eq.s32.totalorder %v114, 0
    %vm167 = vcmp.eq.s32.totalorder %v115, 0
    %vm168 = vcmp.eq.s32.totalorder %v116, 0
    %vm169 = vcmp.eq.s32.totalorder %v117, 0
    %vm170 = vcmp.eq.s32.totalorder %v118, 0
    %vm171 = vcmp.eq.s32.totalorder %v119, 0
    %vm172 = vcmp.eq.s32.totalorder %v120, 0
    %vm173 = vcmp.eq.s32.totalorder %v121, 0
    %vm174 = vcmp.eq.s32.totalorder %v122, 0
    %vm175 = vcmp.eq.s32.totalorder %v123, 0
    %vm176 = vcmp.eq.s32.totalorder %v124, 0
    %vm177 = vcmp.eq.s32.totalorder %v125, 0
    %vm178 = vcmp.eq.s32.totalorder %v126, 0
    %vm179 = vcmp.eq.s32.totalorder %v127, 0
    %vm180 = vcmp.eq.s32.totalorder %v128, 0
    %vm181 = vcmp.eq.s32.totalorder %v129, 0
    %vm182 = vcmp.eq.s32.totalorder %v130, 0
    %vm183 = vcmp.eq.s32.totalorder %v131, 0
    %vm184 = vcmp.eq.s32.totalorder %v132, 0
    %vm185 = vcmp.eq.s32.totalorder %v133, 0
    %vm186 = vcmp.eq.s32.totalorder %v134, 0
    %vm187 = vcmp.eq.s32.totalorder %v135, 0
    %vm188 = vcmp.eq.s32.totalorder %v136, 0
    %vm189 = vcmp.eq.s32.totalorder %v137, 0
    %vm190 = vcmp.eq.s32.totalorder %v138, 0
    %vm191 = vcmp.eq.s32.totalorder %v139, 0
    %vm192 = vcmp.eq.s32.totalorder %v140, 0
    %vm193 = vcmp.eq.s32.totalorder %v141, 0
    %vm194 = vcmp.eq.s32.totalorder %v142, 0
    %vm195 = vcmp.eq.s32.totalorder %v143, 0
    %vm196 = vcmp.eq.s32.totalorder %v144, 0
    %vm197 = vcmp.eq.s32.totalorder %v145, 0
    %vm198 = vcmp.eq.s32.totalorder %v146, 0
    %vm199 = vcmp.eq.s32.totalorder %v147, 0
    %vm200 = vcmp.eq.s32.totalorder %v148, 0
    %vm201 = vcmp.eq.s32.totalorder %v149, 0
    %vm202 = vcmp.eq.s32.totalorder %v150, 0
    %vm203 = vcmp.eq.s32.totalorder %v151, 0
    %vm204 = vcmp.eq.s32.totalorder %v152, 0
    %v205 = vsel %vm155, 1.0, 0.0
    %v206 = vsel %vm156, 1.0, 0.0
    %v207 = vsel %vm157, 1.0, 0.0
    %v208 = vsel %vm158, 1.0, 0.0
    %v209 = vsel %vm159, 1.0, 0.0
    %v210 = vsel %vm160, 1.0, 0.0
    %v211 = vsel %vm161, 1.0, 0.0
    %v212 = vsel %vm162, 1.0, 0.0
    %v213 = vsel %vm163, 1.0, 0.0
    %v214 = vsel %vm164, 1.0, 0.0
    %v215 = vsel %vm165, 1.0, 0.0
    %v216 = vsel %vm166, 1.0, 0.0
    %v217 = vsel %vm167, 1.0, 0.0
    %v218 = vsel %vm168, 1.0, 0.0
    %v219 = vsel %vm169, 1.0, 0.0
    %v220 = vsel %vm170, 1.0, 0.0
    %v221 = vsel %vm171, 1.0, 0.0
    %v222 = vsel %vm172, 1.0, 0.0
    %v223 = vsel %vm173, 1.0, 0.0
    %v224 = vsel %vm174, 1.0, 0.0
    %v225 = vsel %vm175, 1.0, 0.0
    %v226 = vsel %vm176, 1.0, 0.0
    %v227 = vsel %vm177, 1.0, 0.0
    %v228 = vsel %vm178, 1.0, 0.0
    %v229 = vsel %vm179, 1.0, 0.0
    %v230 = vsel %vm180, 1.0, 0.0
    %v231 = vsel %vm181, 1.0, 0.0
    %v232 = vsel %vm182, 1.0, 0.0
    %v233 = vsel %vm183, 1.0, 0.0
    %v234 = vsel %vm184, 1.0, 0.0
    %v235 = vsel %vm185, 1.0, 0.0
    %v236 = vsel %vm186, 1.0, 0.0
    %v237 = vsel %vm187, 1.0, 0.0
    %v238 = vsel %vm188, 1.0, 0.0
    %v239 = vsel %vm189, 1.0, 0.0
    %v240 = vsel %vm190, 1.0, 0.0
    %v241 = vsel %vm191, 1.0, 0.0
    %v242 = vsel %vm192, 1.0, 0.0
    %v243 = vsel %vm193, 1.0, 0.0
    %v244 = vsel %vm194, 1.0, 0.0
    %v245 = vsel %vm195, 1.0, 0.0
    %v246 = vsel %vm196, 1.0, 0.0
    %v247 = vsel %vm197, 1.0, 0.0
    %v248 = vsel %vm198, 1.0, 0.0
    %v249 = vsel %vm199, 1.0, 0.0
    %v250 = vsel %vm200, 1.0, 0.0
    %v251 = vsel %vm201, 1.0, 0.0
    %v252 = vsel %vm202, 1.0, 0.0
    %v253 = vsel %vm203, 1.0, 0.0
    %v254 = vsel %vm204, 1.0, 0.0
    %v255 = vadd.f32 %v205, %v206
    %v256 = vadd.f32 %v210, %v211
    %v257 = vadd.f32 %v215, %v216
    %v258 = vadd.f32 %v220, %v221
    %v259 = vadd.f32 %v225, %v226
    %v260 = vadd.f32 %v230, %v231
    %v261 = vadd.f32 %v235, %v236
    %v262 = vadd.f32 %v240, %v241
    %v263 = vadd.f32 %v245, %v246
    %v264 = vadd.f32 %v250, %v251
    %v265 = vadd.f32 %v255, %v207
    %v266 = vadd.f32 %v256, %v212
    %v267 = vadd.f32 %v257, %v217
    %v268 = vadd.f32 %v258, %v222
    %v269 = vadd.f32 %v259, %v227
    %v270 = vadd.f32 %v260, %v232
    %v271 = vadd.f32 %v261, %v237
    %v272 = vadd.f32 %v262, %v242
    %v273 = vadd.f32 %v263, %v247
    %v274 = vadd.f32 %v264, %v252
    %v275 = vadd.f32 %v265, %v208
    %v276 = vadd.f32 %v266, %v213
    %v277 = vadd.f32 %v267, %v218
    %v278 = vadd.f32 %v268, %v223
    %v279 = vadd.f32 %v269, %v228
    %v280 = vadd.f32 %v270, %v233
    %v281 = vadd.f32 %v271, %v238
    %v282 = vadd.f32 %v272, %v243
    %v283 = vadd.f32 %v273, %v248
    %v284 = vadd.f32 %v274, %v253
    %v285 = vadd.f32 %v275, %v209
    %v286 = vadd.f32 %v276, %v214
    %v287 = vadd.f32 %v277, %v219
    %v288 = vadd.f32 %v278, %v224
    %v289 = vadd.f32 %v279, %v229
    %v290 = vadd.f32 %v280, %v234
    %v291 = vadd.f32 %v281, %v239
    %v292 = vadd.f32 %v282, %v244
    %v293 = vadd.f32 %v283, %v249
    %v294 = vadd.f32 %v284, %v254
    %295 = vadd.xlane.f32.xlu0 %v285
    %v296 = vpop.xlane.xlu0 %295
    %297 = vadd.xlane.f32.xlu0 %v286
    %v298 = vpop.xlane.xlu0 %297
    %299 = vadd.xlane.f32.xlu0 %v287
    %v300 = vpop.xlane.xlu0 %299
    %301 = vadd.xlane.f32.xlu0 %v288
    %v302 = vpop.xlane.xlu0 %301
    %303 = vadd.xlane.f32.xlu0 %v289
    %v304 = vpop.xlane.xlu0 %303
    %305 = vadd.xlane.f32.xlu0 %v290
    %v306 = vpop.xlane.xlu0 %305
    %307 = vadd.xlane.f32.xlu0 %v291
    %v308 = vpop.xlane.xlu0 %307
    %309 = vadd.xlane.f32.xlu0 %v292
    %v310 = vpop.xlane.xlu0 %309
    %311 = vadd.xlane.f32.xlu0 %v293
    %v312 = vpop.xlane.xlu0 %311
    %313 = vadd.xlane.f32.xlu0 %v294
    %v314 = vpop.xlane.xlu0 %313
    %vm315 = vcmp.eq.s32.totalorder %v154, 0
    %v316 = vsel %vm315, 1.0, 0.0
    %v317 = vmul.f32 %v296, %v316
    %v318 = vmul.f32 %v298, %v316
    %v319 = vmul.f32 %v300, %v316
    %v320 = vmul.f32 %v302, %v316
    %v321 = vmul.f32 %v304, %v316
    %v322 = vmul.f32 %v306, %v316
    %v323 = vmul.f32 %v308, %v316
    %v324 = vmul.f32 %v310, %v316
    %v325 = vmul.f32 %v312, %v316
    %v326 = vmul.f32 %v314, %v316
    %v327 = vadd.f32 %v317, 0.0
    %v328 = vadd.f32 %v318, 0.0
    %v329 = vadd.f32 %v319, 0.0
    %v330 = vadd.f32 %v320, 0.0
    %v331 = vadd.f32 %v321, 0.0
    %v332 = vadd.f32 %v322, 0.0
    %v333 = vadd.f32 %v323, 0.0
    %v334 = vadd.f32 %v324, 0.0
    %v335 = vadd.f32 %v325, 0.0
    %v336 = vadd.f32 %v326, 0.0
    %vm337 = vcmp.eq.s32.totalorder %v103, 1
    %vm338 = vcmp.eq.s32.totalorder %v104, 1
    %vm339 = vcmp.eq.s32.totalorder %v105, 1
    %vm340 = vcmp.eq.s32.totalorder %v106, 1
    %vm341 = vcmp.eq.s32.totalorder %v107, 1
    %vm342 = vcmp.eq.s32.totalorder %v108, 1
    %vm343 = vcmp.eq.s32.totalorder %v109, 1
    %vm344 = vcmp.eq.s32.totalorder %v110, 1
    %vm345 = vcmp.eq.s32.totalorder %v111, 1
    %vm346 = vcmp.eq.s32.totalorder %v112, 1
    %vm347 = vcmp.eq.s32.totalorder %v113, 1
    %vm348 = vcmp.eq.s32.totalorder %v114, 1
    %vm349 = vcmp.eq.s32.totalorder %v115, 1
    %vm350 = vcmp.eq.s32.totalorder %v116, 1
    %vm351 = vcmp.eq.s32.totalorder %v117, 1
    %vm352 = vcmp.eq.s32.totalorder %v118, 1
    %vm353 = vcmp.eq.s32.totalorder %v119, 1
    %vm354 = vcmp.eq.s32.totalorder %v120, 1
    %vm355 = vcmp.eq.s32.totalorder %v121, 1
    %vm356 = vcmp.eq.s32.totalorder %v122, 1
    %vm357 = vcmp.eq.s32.totalorder %v123, 1
    %vm358 = vcmp.eq.s32.totalorder %v124, 1
    %vm359 = vcmp.eq.s32.totalorder %v125, 1
    %vm360 = vcmp.eq.s32.totalorder %v126, 1
    %vm361 = vcmp.eq.s32.totalorder %v127, 1
    %vm362 = vcmp.eq.s32.totalorder %v128, 1
    %vm363 = vcmp.eq.s32.totalorder %v129, 1
    %vm364 = vcmp.eq.s32.totalorder %v130, 1
    %vm365 = vcmp.eq.s32.totalorder %v131, 1
    %vm366 = vcmp.eq.s32.totalorder %v132, 1
    %vm367 = vcmp.eq.s32.totalorder %v133, 1
    %vm368 = vcmp.eq.s32.totalorder %v134, 1
    %vm369 = vcmp.eq.s32.totalorder %v135, 1
    %vm370 = vcmp.eq.s32.totalorder %v136, 1
    %vm371 = vcmp.eq.s32.totalorder %v137, 1
    %vm372 = vcmp.eq.s32.totalorder %v138, 1
    %vm373 = vcmp.eq.s32.totalorder %v139, 1
    %vm374 = vcmp.eq.s32.totalorder %v140, 1
    %vm375 = vcmp.eq.s32.totalorder %v141, 1
    %vm376 = vcmp.eq.s32.totalorder %v142, 1
    %vm377 = vcmp.eq.s32.totalorder %v143, 1
    %vm378 = vcmp.eq.s32.totalorder %v144, 1
    %vm379 = vcmp.eq.s32.totalorder %v145, 1
    %vm380 = vcmp.eq.s32.totalorder %v146, 1
    %vm381 = vcmp.eq.s32.totalorder %v147, 1
    %vm382 = vcmp.eq.s32.totalorder %v148, 1
    %vm383 = vcmp.eq.s32.totalorder %v149, 1
    %vm384 = vcmp.eq.s32.totalorder %v150, 1
    %vm385 = vcmp.eq.s32.totalorder %v151, 1
    %vm386 = vcmp.eq.s32.totalorder %v152, 1
    %v387 = vsel %vm337, 1.0, 0.0
    %v388 = vsel %vm338, 1.0, 0.0
    %v389 = vsel %vm339, 1.0, 0.0
    %v390 = vsel %vm340, 1.0, 0.0
    %v391 = vsel %vm341, 1.0, 0.0
    %v392 = vsel %vm342, 1.0, 0.0
    %v393 = vsel %vm343, 1.0, 0.0
    %v394 = vsel %vm344, 1.0, 0.0
    %v395 = vsel %vm345, 1.0, 0.0
    %v396 = vsel %vm346, 1.0, 0.0
    %v397 = vsel %vm347, 1.0, 0.0
    %v398 = vsel %vm348, 1.0, 0.0
    %v399 = vsel %vm349, 1.0, 0.0
    %v400 = vsel %vm350, 1.0, 0.0
    %v401 = vsel %vm351, 1.0, 0.0
    %v402 = vsel %vm352, 1.0, 0.0
    %v403 = vsel %vm353, 1.0, 0.0
    %v404 = vsel %vm354, 1.0, 0.0
    %v405 = vsel %vm355, 1.0, 0.0
    %v406 = vsel %vm356, 1.0, 0.0
    %v407 = vsel %vm357, 1.0, 0.0
    %v408 = vsel %vm358, 1.0, 0.0
    %v409 = vsel %vm359, 1.0, 0.0
    %v410 = vsel %vm360, 1.0, 0.0
    %v411 = vsel %vm361, 1.0, 0.0
    %v412 = vsel %vm362, 1.0, 0.0
    %v413 = vsel %vm363, 1.0, 0.0
    %v414 = vsel %vm364, 1.0, 0.0
    %v415 = vsel %vm365, 1.0, 0.0
    %v416 = vsel %vm366, 1.0, 0.0
    %v417 = vsel %vm367, 1.0, 0.0
    %v418 = vsel %vm368, 1.0, 0.0
    %v419 = vsel %vm369, 1.0, 0.0
    %v420 = vsel %vm370, 1.0, 0.0
    %v421 = vsel %vm371, 1.0, 0.0
    %v422 = vsel %vm372, 1.0, 0.0
    %v423 = vsel %vm373, 1.0, 0.0
    %v424 = vsel %vm374, 1.0, 0.0
    %v425 = vsel %vm375, 1.0, 0.0
    %v426 = vsel %vm376, 1.0, 0.0
    %v427 = vsel %vm377, 1.0, 0.0
    %v428 = vsel %vm378, 1.0, 0.0
    %v429 = vsel %vm379, 1.0, 0.0
    %v430 = vsel %vm380, 1.0, 0.0
    %v431 = vsel %vm381, 1.0, 0.0
    %v432 = vsel %vm382, 1.0, 0.0
    %v433 = vsel %vm383, 1.0, 0.0
    %v434 = vsel %vm384, 1.0, 0.0
    %v435 = vsel %vm385, 1.0, 0.0
    %v436 = vsel %vm386, 1.0, 0.0
    %v437 = vadd.f32 %v387, %v388
    %v438 = vadd.f32 %v392, %v393
    %v439 = vadd.f32 %v397, %v398
    %v440 = vadd.f32 %v402, %v403
    %v441 = vadd.f32 %v407, %v408
    %v442 = vadd.f32 %v412, %v413
    %v443 = vadd.f32 %v417, %v418
    %v444 = vadd.f32 %v422, %v423
    %v445 = vadd.f32 %v427, %v428
    %v446 = vadd.f32 %v432, %v433
    %v447 = vadd.f32 %v437, %v389
    %v448 = vadd.f32 %v438, %v394
    %v449 = vadd.f32 %v439, %v399
    %v450 = vadd.f32 %v440, %v404
    %v451 = vadd.f32 %v441, %v409
    %v452 = vadd.f32 %v442, %v414
    %v453 = vadd.f32 %v443, %v419
    %v454 = vadd.f32 %v444, %v424
    %v455 = vadd.f32 %v445, %v429
    %v456 = vadd.f32 %v446, %v434
    %v457 = vadd.f32 %v447, %v390
    %v458 = vadd.f32 %v448, %v395
    %v459 = vadd.f32 %v449, %v400
    %v460 = vadd.f32 %v450, %v405
    %v461 = vadd.f32 %v451, %v410
    %v462 = vadd.f32 %v452, %v415
    %v463 = vadd.f32 %v453, %v420
    %v464 = vadd.f32 %v454, %v425
    %v465 = vadd.f32 %v455, %v430
    %v466 = vadd.f32 %v456, %v435
    %v467 = vadd.f32 %v457, %v391
    %v468 = vadd.f32 %v458, %v396
    %v469 = vadd.f32 %v459, %v401
    %v470 = vadd.f32 %v460, %v406
    %v471 = vadd.f32 %v461, %v411
    %v472 = vadd.f32 %v462, %v416
    %v473 = vadd.f32 %v463, %v421
    %v474 = vadd.f32 %v464, %v426
    %v475 = vadd.f32 %v465, %v431
    %v476 = vadd.f32 %v466, %v436
    %477 = vadd.xlane.f32.xlu0 %v467
    %v478 = vpop.xlane.xlu0 %477
    %479 = vadd.xlane.f32.xlu0 %v468
    %v480 = vpop.xlane.xlu0 %479
    %481 = vadd.xlane.f32.xlu0 %v469
    %v482 = vpop.xlane.xlu0 %481
    %483 = vadd.xlane.f32.xlu0 %v470
    %v484 = vpop.xlane.xlu0 %483
    %485 = vadd.xlane.f32.xlu0 %v471
    %v486 = vpop.xlane.xlu0 %485
    %487 = vadd.xlane.f32.xlu0 %v472
    %v488 = vpop.xlane.xlu0 %487
    %489 = vadd.xlane.f32.xlu0 %v473
    %v490 = vpop.xlane.xlu0 %489
    %491 = vadd.xlane.f32.xlu0 %v474
    %v492 = vpop.xlane.xlu0 %491
    %493 = vadd.xlane.f32.xlu0 %v475
    %v494 = vpop.xlane.xlu0 %493
    %495 = vadd.xlane.f32.xlu0 %v476
    %v496 = vpop.xlane.xlu0 %495
    %vm497 = vcmp.eq.s32.totalorder %v154, 1
    %v498 = vsel %vm497, 1.0, 0.0
    %v499 = vmul.f32 %v478, %v498
    %v500 = vmul.f32 %v480, %v498
    %v501 = vmul.f32 %v482, %v498
    %v502 = vmul.f32 %v484, %v498
    %v503 = vmul.f32 %v486, %v498
    %v504 = vmul.f32 %v488, %v498
    %v505 = vmul.f32 %v490, %v498
    %v506 = vmul.f32 %v492, %v498
    %v507 = vmul.f32 %v494, %v498
    %v508 = vmul.f32 %v496, %v498
    %v509 = vadd.f32 %v327, %v499
    %v510 = vadd.f32 %v328, %v500
    %v511 = vadd.f32 %v329, %v501
    %v512 = vadd.f32 %v330, %v502
    %v513 = vadd.f32 %v331, %v503
    %v514 = vadd.f32 %v332, %v504
    %v515 = vadd.f32 %v333, %v505
    %v516 = vadd.f32 %v334, %v506
    %v517 = vadd.f32 %v335, %v507
    %v518 = vadd.f32 %v336, %v508
    %vm519 = vcmp.eq.s32.totalorder %v103, 2
    %vm520 = vcmp.eq.s32.totalorder %v104, 2
    %vm521 = vcmp.eq.s32.totalorder %v105, 2
    %vm522 = vcmp.eq.s32.totalorder %v106, 2
    %vm523 = vcmp.eq.s32.totalorder %v107, 2
    %vm524 = vcmp.eq.s32.totalorder %v108, 2
    %vm525 = vcmp.eq.s32.totalorder %v109, 2
    %vm526 = vcmp.eq.s32.totalorder %v110, 2
    %vm527 = vcmp.eq.s32.totalorder %v111, 2
    %vm528 = vcmp.eq.s32.totalorder %v112, 2
    %vm529 = vcmp.eq.s32.totalorder %v113, 2
    %vm530 = vcmp.eq.s32.totalorder %v114, 2
    %vm531 = vcmp.eq.s32.totalorder %v115, 2
    %vm532 = vcmp.eq.s32.totalorder %v116, 2
    %vm533 = vcmp.eq.s32.totalorder %v117, 2
    %vm534 = vcmp.eq.s32.totalorder %v118, 2
    %vm535 = vcmp.eq.s32.totalorder %v119, 2
    %vm536 = vcmp.eq.s32.totalorder %v120, 2
    %vm537 = vcmp.eq.s32.totalorder %v121, 2
    %vm538 = vcmp.eq.s32.totalorder %v122, 2
    %vm539 = vcmp.eq.s32.totalorder %v123, 2
    %vm540 = vcmp.eq.s32.totalorder %v124, 2
    %vm541 = vcmp.eq.s32.totalorder %v125, 2
    %vm542 = vcmp.eq.s32.totalorder %v126, 2
    %vm543 = vcmp.eq.s32.totalorder %v127, 2
    %vm544 = vcmp.eq.s32.totalorder %v128, 2
    %vm545 = vcmp.eq.s32.totalorder %v129, 2
    %vm546 = vcmp.eq.s32.totalorder %v130, 2
    %vm547 = vcmp.eq.s32.totalorder %v131, 2
    %vm548 = vcmp.eq.s32.totalorder %v132, 2
    %vm549 = vcmp.eq.s32.totalorder %v133, 2
    %vm550 = vcmp.eq.s32.totalorder %v134, 2
    %vm551 = vcmp.eq.s32.totalorder %v135, 2
    %vm552 = vcmp.eq.s32.totalorder %v136, 2
    %vm553 = vcmp.eq.s32.totalorder %v137, 2
    %vm554 = vcmp.eq.s32.totalorder %v138, 2
    %vm555 = vcmp.eq.s32.totalorder %v139, 2
    %vm556 = vcmp.eq.s32.totalorder %v140, 2
    %vm557 = vcmp.eq.s32.totalorder %v141, 2
    %vm558 = vcmp.eq.s32.totalorder %v142, 2
    %vm559 = vcmp.eq.s32.totalorder %v143, 2
    %vm560 = vcmp.eq.s32.totalorder %v144, 2
    %vm561 = vcmp.eq.s32.totalorder %v145, 2
    %vm562 = vcmp.eq.s32.totalorder %v146, 2
    %vm563 = vcmp.eq.s32.totalorder %v147, 2
    %vm564 = vcmp.eq.s32.totalorder %v148, 2
    %vm565 = vcmp.eq.s32.totalorder %v149, 2
    %vm566 = vcmp.eq.s32.totalorder %v150, 2
    %vm567 = vcmp.eq.s32.totalorder %v151, 2
    %vm568 = vcmp.eq.s32.totalorder %v152, 2
    %v569 = vsel %vm519, 1.0, 0.0
    %v570 = vsel %vm520, 1.0, 0.0
    %v571 = vsel %vm521, 1.0, 0.0
    %v572 = vsel %vm522, 1.0, 0.0
    %v573 = vsel %vm523, 1.0, 0.0
    %v574 = vsel %vm524, 1.0, 0.0
    %v575 = vsel %vm525, 1.0, 0.0
    %v576 = vsel %vm526, 1.0, 0.0
    %v577 = vsel %vm527, 1.0, 0.0
    %v578 = vsel %vm528, 1.0, 0.0
    %v579 = vsel %vm529, 1.0, 0.0
    %v580 = vsel %vm530, 1.0, 0.0
    %v581 = vsel %vm531, 1.0, 0.0
    %v582 = vsel %vm532, 1.0, 0.0
    %v583 = vsel %vm533, 1.0, 0.0
    %v584 = vsel %vm534, 1.0, 0.0
    %v585 = vsel %vm535, 1.0, 0.0
    %v586 = vsel %vm536, 1.0, 0.0
    %v587 = vsel %vm537, 1.0, 0.0
    %v588 = vsel %vm538, 1.0, 0.0
    %v589 = vsel %vm539, 1.0, 0.0
    %v590 = vsel %vm540, 1.0, 0.0
    %v591 = vsel %vm541, 1.0, 0.0
    %v592 = vsel %vm542, 1.0, 0.0
    %v593 = vsel %vm543, 1.0, 0.0
    %v594 = vsel %vm544, 1.0, 0.0
    %v595 = vsel %vm545, 1.0, 0.0
    %v596 = vsel %vm546, 1.0, 0.0
    %v597 = vsel %vm547, 1.0, 0.0
    %v598 = vsel %vm548, 1.0, 0.0
    %v599 = vsel %vm549, 1.0, 0.0
    %v600 = vsel %vm550, 1.0, 0.0
    %v601 = vsel %vm551, 1.0, 0.0
    %v602 = vsel %vm552, 1.0, 0.0
    %v603 = vsel %vm553, 1.0, 0.0
    %v604 = vsel %vm554, 1.0, 0.0
    %v605 = vsel %vm555, 1.0, 0.0
    %v606 = vsel %vm556, 1.0, 0.0
    %v607 = vsel %vm557, 1.0, 0.0
    %v608 = vsel %vm558, 1.0, 0.0
    %v609 = vsel %vm559, 1.0, 0.0
    %v610 = vsel %vm560, 1.0, 0.0
    %v611 = vsel %vm561, 1.0, 0.0
    %v612 = vsel %vm562, 1.0, 0.0
    %v613 = vsel %vm563, 1.0, 0.0
    %v614 = vsel %vm564, 1.0, 0.0
    %v615 = vsel %vm565, 1.0, 0.0
    %v616 = vsel %vm566, 1.0, 0.0
    %v617 = vsel %vm567, 1.0, 0.0
    %v618 = vsel %vm568, 1.0, 0.0
    %v619 = vadd.f32 %v569, %v570
    %v620 = vadd.f32 %v574, %v575
    %v621 = vadd.f32 %v579, %v580
    %v622 = vadd.f32 %v584, %v585
    %v623 = vadd.f32 %v589, %v590
    %v624 = vadd.f32 %v594, %v595
    %v625 = vadd.f32 %v599, %v600
    %v626 = vadd.f32 %v604, %v605
    %v627 = vadd.f32 %v609, %v610
    %v628 = vadd.f32 %v614, %v615
    %v629 = vadd.f32 %v619, %v571
    %v630 = vadd.f32 %v620, %v576
    %v631 = vadd.f32 %v621, %v581
    %v632 = vadd.f32 %v622, %v586
    %v633 = vadd.f32 %v623, %v591
    %v634 = vadd.f32 %v624, %v596
    %v635 = vadd.f32 %v625, %v601
    %v636 = vadd.f32 %v626, %v606
    %v637 = vadd.f32 %v627, %v611
    %v638 = vadd.f32 %v628, %v616
    %v639 = vadd.f32 %v629, %v572
    %v640 = vadd.f32 %v630, %v577
    %v641 = vadd.f32 %v631, %v582
    %v642 = vadd.f32 %v632, %v587
    %v643 = vadd.f32 %v633, %v592
    %v644 = vadd.f32 %v634, %v597
    %v645 = vadd.f32 %v635, %v602
    %v646 = vadd.f32 %v636, %v607
    %v647 = vadd.f32 %v637, %v612
    %v648 = vadd.f32 %v638, %v617
    %v649 = vadd.f32 %v639, %v573
    %v650 = vadd.f32 %v640, %v578
    %v651 = vadd.f32 %v641, %v583
    %v652 = vadd.f32 %v642, %v588
    %v653 = vadd.f32 %v643, %v593
    %v654 = vadd.f32 %v644, %v598
    %v655 = vadd.f32 %v645, %v603
    %v656 = vadd.f32 %v646, %v608
    %v657 = vadd.f32 %v647, %v613
    %v658 = vadd.f32 %v648, %v618
    %659 = vadd.xlane.f32.xlu0 %v649
    %v660 = vpop.xlane.xlu0 %659
    %661 = vadd.xlane.f32.xlu0 %v650
    %v662 = vpop.xlane.xlu0 %661
    %663 = vadd.xlane.f32.xlu0 %v651
    %v664 = vpop.xlane.xlu0 %663
    %665 = vadd.xlane.f32.xlu0 %v652
    %v666 = vpop.xlane.xlu0 %665
    %667 = vadd.xlane.f32.xlu0 %v653
    %v668 = vpop.xlane.xlu0 %667
    %669 = vadd.xlane.f32.xlu0 %v654
    %v670 = vpop.xlane.xlu0 %669
    %671 = vadd.xlane.f32.xlu0 %v655
    %v672 = vpop.xlane.xlu0 %671
    %673 = vadd.xlane.f32.xlu0 %v656
    %v674 = vpop.xlane.xlu0 %673
    %675 = vadd.xlane.f32.xlu0 %v657
    %v676 = vpop.xlane.xlu0 %675
    %677 = vadd.xlane.f32.xlu0 %v658
    %v678 = vpop.xlane.xlu0 %677
    %vm679 = vcmp.eq.s32.totalorder %v154, 2
    %v680 = vsel %vm679, 1.0, 0.0
    %v681 = vmul.f32 %v660, %v680
    %v682 = vmul.f32 %v662, %v680
    %v683 = vmul.f32 %v664, %v680
    %v684 = vmul.f32 %v666, %v680
    %v685 = vmul.f32 %v668, %v680
    %v686 = vmul.f32 %v670, %v680
    %v687 = vmul.f32 %v672, %v680
    %v688 = vmul.f32 %v674, %v680
    %v689 = vmul.f32 %v676, %v680
    %v690 = vmul.f32 %v678, %v680
    %v691 = vadd.f32 %v509, %v681
    %v692 = vadd.f32 %v510, %v682
    %v693 = vadd.f32 %v511, %v683
    %v694 = vadd.f32 %v512, %v684
    %v695 = vadd.f32 %v513, %v685
    %v696 = vadd.f32 %v514, %v686
    %v697 = vadd.f32 %v515, %v687
    %v698 = vadd.f32 %v516, %v688
    %v699 = vadd.f32 %v517, %v689
    %v700 = vadd.f32 %v518, %v690
    %vm701 = vcmp.eq.s32.totalorder %v103, 3
    %vm702 = vcmp.eq.s32.totalorder %v104, 3
    %vm703 = vcmp.eq.s32.totalorder %v105, 3
    %vm704 = vcmp.eq.s32.totalorder %v106, 3
    %vm705 = vcmp.eq.s32.totalorder %v107, 3
    %vm706 = vcmp.eq.s32.totalorder %v108, 3
    %vm707 = vcmp.eq.s32.totalorder %v109, 3
    %vm708 = vcmp.eq.s32.totalorder %v110, 3
    %vm709 = vcmp.eq.s32.totalorder %v111, 3
    %vm710 = vcmp.eq.s32.totalorder %v112, 3
    %vm711 = vcmp.eq.s32.totalorder %v113, 3
    %vm712 = vcmp.eq.s32.totalorder %v114, 3
    %vm713 = vcmp.eq.s32.totalorder %v115, 3
    %vm714 = vcmp.eq.s32.totalorder %v116, 3
    %vm715 = vcmp.eq.s32.totalorder %v117, 3
    %vm716 = vcmp.eq.s32.totalorder %v118, 3
    %vm717 = vcmp.eq.s32.totalorder %v119, 3
    %vm718 = vcmp.eq.s32.totalorder %v120, 3
    %vm719 = vcmp.eq.s32.totalorder %v121, 3
    %vm720 = vcmp.eq.s32.totalorder %v122, 3
    %vm721 = vcmp.eq.s32.totalorder %v123, 3
    %vm722 = vcmp.eq.s32.totalorder %v124, 3
    %vm723 = vcmp.eq.s32.totalorder %v125, 3
    %vm724 = vcmp.eq.s32.totalorder %v126, 3
    %vm725 = vcmp.eq.s32.totalorder %v127, 3
    %vm726 = vcmp.eq.s32.totalorder %v128, 3
    %vm727 = vcmp.eq.s32.totalorder %v129, 3
    %vm728 = vcmp.eq.s32.totalorder %v130, 3
    %vm729 = vcmp.eq.s32.totalorder %v131, 3
    %vm730 = vcmp.eq.s32.totalorder %v132, 3
    %vm731 = vcmp.eq.s32.totalorder %v133, 3
    %vm732 = vcmp.eq.s32.totalorder %v134, 3
    %vm733 = vcmp.eq.s32.totalorder %v135, 3
    %vm734 = vcmp.eq.s32.totalorder %v136, 3
    %vm735 = vcmp.eq.s32.totalorder %v137, 3
    %vm736 = vcmp.eq.s32.totalorder %v138, 3
    %vm737 = vcmp.eq.s32.totalorder %v139, 3
    %vm738 = vcmp.eq.s32.totalorder %v140, 3
    %vm739 = vcmp.eq.s32.totalorder %v141, 3
    %vm740 = vcmp.eq.s32.totalorder %v142, 3
    %vm741 = vcmp.eq.s32.totalorder %v143, 3
    %vm742 = vcmp.eq.s32.totalorder %v144, 3
    %vm743 = vcmp.eq.s32.totalorder %v145, 3
    %vm744 = vcmp.eq.s32.totalorder %v146, 3
    %vm745 = vcmp.eq.s32.totalorder %v147, 3
    %vm746 = vcmp.eq.s32.totalorder %v148, 3
    %vm747 = vcmp.eq.s32.totalorder %v149, 3
    %vm748 = vcmp.eq.s32.totalorder %v150, 3
    %vm749 = vcmp.eq.s32.totalorder %v151, 3
    %vm750 = vcmp.eq.s32.totalorder %v152, 3
    %v751 = vsel %vm701, 1.0, 0.0
    %v752 = vsel %vm702, 1.0, 0.0
    %v753 = vsel %vm703, 1.0, 0.0
    %v754 = vsel %vm704, 1.0, 0.0
    %v755 = vsel %vm705, 1.0, 0.0
    %v756 = vsel %vm706, 1.0, 0.0
    %v757 = vsel %vm707, 1.0, 0.0
    %v758 = vsel %vm708, 1.0, 0.0
    %v759 = vsel %vm709, 1.0, 0.0
    %v760 = vsel %vm710, 1.0, 0.0
    %v761 = vsel %vm711, 1.0, 0.0
    %v762 = vsel %vm712, 1.0, 0.0
    %v763 = vsel %vm713, 1.0, 0.0
    %v764 = vsel %vm714, 1.0, 0.0
    %v765 = vsel %vm715, 1.0, 0.0
    %v766 = vsel %vm716, 1.0, 0.0
    %v767 = vsel %vm717, 1.0, 0.0
    %v768 = vsel %vm718, 1.0, 0.0
    %v769 = vsel %vm719, 1.0, 0.0
    %v770 = vsel %vm720, 1.0, 0.0
    %v771 = vsel %vm721, 1.0, 0.0
    %v772 = vsel %vm722, 1.0, 0.0
    %v773 = vsel %vm723, 1.0, 0.0
    %v774 = vsel %vm724, 1.0, 0.0
    %v775 = vsel %vm725, 1.0, 0.0
    %v776 = vsel %vm726, 1.0, 0.0
    %v777 = vsel %vm727, 1.0, 0.0
    %v778 = vsel %vm728, 1.0, 0.0
    %v779 = vsel %vm729, 1.0, 0.0
    %v780 = vsel %vm730, 1.0, 0.0
    %v781 = vsel %vm731, 1.0, 0.0
    %v782 = vsel %vm732, 1.0, 0.0
    %v783 = vsel %vm733, 1.0, 0.0
    %v784 = vsel %vm734, 1.0, 0.0
    %v785 = vsel %vm735, 1.0, 0.0
    %v786 = vsel %vm736, 1.0, 0.0
    %v787 = vsel %vm737, 1.0, 0.0
    %v788 = vsel %vm738, 1.0, 0.0
    %v789 = vsel %vm739, 1.0, 0.0
    %v790 = vsel %vm740, 1.0, 0.0
    %v791 = vsel %vm741, 1.0, 0.0
    %v792 = vsel %vm742, 1.0, 0.0
    %v793 = vsel %vm743, 1.0, 0.0
    %v794 = vsel %vm744, 1.0, 0.0
    %v795 = vsel %vm745, 1.0, 0.0
    %v796 = vsel %vm746, 1.0, 0.0
    %v797 = vsel %vm747, 1.0, 0.0
    %v798 = vsel %vm748, 1.0, 0.0
    %v799 = vsel %vm749, 1.0, 0.0
    %v800 = vsel %vm750, 1.0, 0.0
    %v801 = vadd.f32 %v751, %v752
    %v802 = vadd.f32 %v756, %v757
    %v803 = vadd.f32 %v761, %v762
    %v804 = vadd.f32 %v766, %v767
    %v805 = vadd.f32 %v771, %v772
    %v806 = vadd.f32 %v776, %v777
    %v807 = vadd.f32 %v781, %v782
    %v808 = vadd.f32 %v786, %v787
    %v809 = vadd.f32 %v791, %v792
    %v810 = vadd.f32 %v796, %v797
    %v811 = vadd.f32 %v801, %v753
    %v812 = vadd.f32 %v802, %v758
    %v813 = vadd.f32 %v803, %v763
    %v814 = vadd.f32 %v804, %v768
    %v815 = vadd.f32 %v805, %v773
    %v816 = vadd.f32 %v806, %v778
    %v817 = vadd.f32 %v807, %v783
    %v818 = vadd.f32 %v808, %v788
    %v819 = vadd.f32 %v809, %v793
    %v820 = vadd.f32 %v810, %v798
    %v821 = vadd.f32 %v811, %v754
    %v822 = vadd.f32 %v812, %v759
    %v823 = vadd.f32 %v813, %v764
    %v824 = vadd.f32 %v814, %v769
    %v825 = vadd.f32 %v815, %v774
    %v826 = vadd.f32 %v816, %v779
    %v827 = vadd.f32 %v817, %v784
    %v828 = vadd.f32 %v818, %v789
    %v829 = vadd.f32 %v819, %v794
    %v830 = vadd.f32 %v820, %v799
    %v831 = vadd.f32 %v821, %v755
    %v832 = vadd.f32 %v822, %v760
    %v833 = vadd.f32 %v823, %v765
    %v834 = vadd.f32 %v824, %v770
    %v835 = vadd.f32 %v825, %v775
    %v836 = vadd.f32 %v826, %v780
    %v837 = vadd.f32 %v827, %v785
    %v838 = vadd.f32 %v828, %v790
    %v839 = vadd.f32 %v829, %v795
    %v840 = vadd.f32 %v830, %v800
    %841 = vadd.xlane.f32.xlu0 %v831
    %v842 = vpop.xlane.xlu0 %841
    %843 = vadd.xlane.f32.xlu0 %v832
    %v844 = vpop.xlane.xlu0 %843
    %845 = vadd.xlane.f32.xlu0 %v833
    %v846 = vpop.xlane.xlu0 %845
    %847 = vadd.xlane.f32.xlu0 %v834
    %v848 = vpop.xlane.xlu0 %847
    %849 = vadd.xlane.f32.xlu0 %v835
    %v850 = vpop.xlane.xlu0 %849
    %851 = vadd.xlane.f32.xlu0 %v836
    %v852 = vpop.xlane.xlu0 %851
    %853 = vadd.xlane.f32.xlu0 %v837
    %v854 = vpop.xlane.xlu0 %853
    %855 = vadd.xlane.f32.xlu0 %v838
    %v856 = vpop.xlane.xlu0 %855
    %857 = vadd.xlane.f32.xlu0 %v839
    %v858 = vpop.xlane.xlu0 %857
    %859 = vadd.xlane.f32.xlu0 %v840
    %v860 = vpop.xlane.xlu0 %859
    %vm861 = vcmp.eq.s32.totalorder %v154, 3
    %v862 = vsel %vm861, 1.0, 0.0
    %v863 = vmul.f32 %v842, %v862
    %v864 = vmul.f32 %v844, %v862
    %v865 = vmul.f32 %v846, %v862
    %v866 = vmul.f32 %v848, %v862
    %v867 = vmul.f32 %v850, %v862
    %v868 = vmul.f32 %v852, %v862
    %v869 = vmul.f32 %v854, %v862
    %v870 = vmul.f32 %v856, %v862
    %v871 = vmul.f32 %v858, %v862
    %v872 = vmul.f32 %v860, %v862
    %v873 = vadd.f32 %v691, %v863
    %v874 = vadd.f32 %v692, %v864
    %v875 = vadd.f32 %v693, %v865
    %v876 = vadd.f32 %v694, %v866
    %v877 = vadd.f32 %v695, %v867
    %v878 = vadd.f32 %v696, %v868
    %v879 = vadd.f32 %v697, %v869
    %v880 = vadd.f32 %v698, %v870
    %v881 = vadd.f32 %v699, %v871
    %v882 = vadd.f32 %v700, %v872
    %vm883 = vcmp.eq.s32.totalorder %v103, 4
    %vm884 = vcmp.eq.s32.totalorder %v104, 4
    %vm885 = vcmp.eq.s32.totalorder %v105, 4
    %vm886 = vcmp.eq.s32.totalorder %v106, 4
    %vm887 = vcmp.eq.s32.totalorder %v107, 4
    %vm888 = vcmp.eq.s32.totalorder %v108, 4
    %vm889 = vcmp.eq.s32.totalorder %v109, 4
    %vm890 = vcmp.eq.s32.totalorder %v110, 4
    %vm891 = vcmp.eq.s32.totalorder %v111, 4
    %vm892 = vcmp.eq.s32.totalorder %v112, 4
    %vm893 = vcmp.eq.s32.totalorder %v113, 4
    %vm894 = vcmp.eq.s32.totalorder %v114, 4
    %vm895 = vcmp.eq.s32.totalorder %v115, 4
    %vm896 = vcmp.eq.s32.totalorder %v116, 4
    %vm897 = vcmp.eq.s32.totalorder %v117, 4
    %vm898 = vcmp.eq.s32.totalorder %v118, 4
    %vm899 = vcmp.eq.s32.totalorder %v119, 4
    %vm900 = vcmp.eq.s32.totalorder %v120, 4
    %vm901 = vcmp.eq.s32.totalorder %v121, 4
    %vm902 = vcmp.eq.s32.totalorder %v122, 4
    %vm903 = vcmp.eq.s32.totalorder %v123, 4
    %vm904 = vcmp.eq.s32.totalorder %v124, 4
    %vm905 = vcmp.eq.s32.totalorder %v125, 4
    %vm906 = vcmp.eq.s32.totalorder %v126, 4
    %vm907 = vcmp.eq.s32.totalorder %v127, 4
    %vm908 = vcmp.eq.s32.totalorder %v128, 4
    %vm909 = vcmp.eq.s32.totalorder %v129, 4
    %vm910 = vcmp.eq.s32.totalorder %v130, 4
    %vm911 = vcmp.eq.s32.totalorder %v131, 4
    %vm912 = vcmp.eq.s32.totalorder %v132, 4
    %vm913 = vcmp.eq.s32.totalorder %v133, 4
    %vm914 = vcmp.eq.s32.totalorder %v134, 4
    %vm915 = vcmp.eq.s32.totalorder %v135, 4
    %vm916 = vcmp.eq.s32.totalorder %v136, 4
    %vm917 = vcmp.eq.s32.totalorder %v137, 4
    %vm918 = vcmp.eq.s32.totalorder %v138, 4
    %vm919 = vcmp.eq.s32.totalorder %v139, 4
    %vm920 = vcmp.eq.s32.totalorder %v140, 4
    %vm921 = vcmp.eq.s32.totalorder %v141, 4
    %vm922 = vcmp.eq.s32.totalorder %v142, 4
    %vm923 = vcmp.eq.s32.totalorder %v143, 4
    %vm924 = vcmp.eq.s32.totalorder %v144, 4
    %vm925 = vcmp.eq.s32.totalorder %v145, 4
    %vm926 = vcmp.eq.s32.totalorder %v146, 4
    %vm927 = vcmp.eq.s32.totalorder %v147, 4
    %vm928 = vcmp.eq.s32.totalorder %v148, 4
    %vm929 = vcmp.eq.s32.totalorder %v149, 4
    %vm930 = vcmp.eq.s32.totalorder %v150, 4
    %vm931 = vcmp.eq.s32.totalorder %v151, 4
    %vm932 = vcmp.eq.s32.totalorder %v152, 4
    %v933 = vsel %vm883, 1.0, 0.0
    %v934 = vsel %vm884, 1.0, 0.0
    %v935 = vsel %vm885, 1.0, 0.0
    %v936 = vsel %vm886, 1.0, 0.0
    %v937 = vsel %vm887, 1.0, 0.0
    %v938 = vsel %vm888, 1.0, 0.0
    %v939 = vsel %vm889, 1.0, 0.0
    %v940 = vsel %vm890, 1.0, 0.0
    %v941 = vsel %vm891, 1.0, 0.0
    %v942 = vsel %vm892, 1.0, 0.0
    %v943 = vsel %vm893, 1.0, 0.0
    %v944 = vsel %vm894, 1.0, 0.0
    %v945 = vsel %vm895, 1.0, 0.0
    %v946 = vsel %vm896, 1.0, 0.0
    %v947 = vsel %vm897, 1.0, 0.0
    %v948 = vsel %vm898, 1.0, 0.0
    %v949 = vsel %vm899, 1.0, 0.0
    %v950 = vsel %vm900, 1.0, 0.0
    %v951 = vsel %vm901, 1.0, 0.0
    %v952 = vsel %vm902, 1.0, 0.0
    %v953 = vsel %vm903, 1.0, 0.0
    %v954 = vsel %vm904, 1.0, 0.0
    %v955 = vsel %vm905, 1.0, 0.0
    %v956 = vsel %vm906, 1.0, 0.0
    %v957 = vsel %vm907, 1.0, 0.0
    %v958 = vsel %vm908, 1.0, 0.0
    %v959 = vsel %vm909, 1.0, 0.0
    %v960 = vsel %vm910, 1.0, 0.0
    %v961 = vsel %vm911, 1.0, 0.0
    %v962 = vsel %vm912, 1.0, 0.0
    %v963 = vsel %vm913, 1.0, 0.0
    %v964 = vsel %vm914, 1.0, 0.0
    %v965 = vsel %vm915, 1.0, 0.0
    %v966 = vsel %vm916, 1.0, 0.0
    %v967 = vsel %vm917, 1.0, 0.0
    %v968 = vsel %vm918, 1.0, 0.0
    %v969 = vsel %vm919, 1.0, 0.0
    %v970 = vsel %vm920, 1.0, 0.0
    %v971 = vsel %vm921, 1.0, 0.0
    %v972 = vsel %vm922, 1.0, 0.0
    %v973 = vsel %vm923, 1.0, 0.0
    %v974 = vsel %vm924, 1.0, 0.0
    %v975 = vsel %vm925, 1.0, 0.0
    %v976 = vsel %vm926, 1.0, 0.0
    %v977 = vsel %vm927, 1.0, 0.0
    %v978 = vsel %vm928, 1.0, 0.0
    %v979 = vsel %vm929, 1.0, 0.0
    %v980 = vsel %vm930, 1.0, 0.0
    %v981 = vsel %vm931, 1.0, 0.0
    %v982 = vsel %vm932, 1.0, 0.0
    %v983 = vadd.f32 %v933, %v934
    %v984 = vadd.f32 %v938, %v939
    %v985 = vadd.f32 %v943, %v944
    %v986 = vadd.f32 %v948, %v949
    %v987 = vadd.f32 %v953, %v954
    %v988 = vadd.f32 %v958, %v959
    %v989 = vadd.f32 %v963, %v964
    %v990 = vadd.f32 %v968, %v969
    %v991 = vadd.f32 %v973, %v974
    %v992 = vadd.f32 %v978, %v979
    %v993 = vadd.f32 %v983, %v935
    %v994 = vadd.f32 %v984, %v940
    %v995 = vadd.f32 %v985, %v945
    %v996 = vadd.f32 %v986, %v950
    %v997 = vadd.f32 %v987, %v955
    %v998 = vadd.f32 %v988, %v960
    %v999 = vadd.f32 %v989, %v965
    %v1000 = vadd.f32 %v990, %v970
    %v1001 = vadd.f32 %v991, %v975
    %v1002 = vadd.f32 %v992, %v980
    %v1003 = vadd.f32 %v993, %v936
    %v1004 = vadd.f32 %v994, %v941
    %v1005 = vadd.f32 %v995, %v946
    %v1006 = vadd.f32 %v996, %v951
    %v1007 = vadd.f32 %v997, %v956
    %v1008 = vadd.f32 %v998, %v961
    %v1009 = vadd.f32 %v999, %v966
    %v1010 = vadd.f32 %v1000, %v971
    %v1011 = vadd.f32 %v1001, %v976
    %v1012 = vadd.f32 %v1002, %v981
    %v1013 = vadd.f32 %v1003, %v937
    %v1014 = vadd.f32 %v1004, %v942
    %v1015 = vadd.f32 %v1005, %v947
    %v1016 = vadd.f32 %v1006, %v952
    %v1017 = vadd.f32 %v1007, %v957
    %v1018 = vadd.f32 %v1008, %v962
    %v1019 = vadd.f32 %v1009, %v967
    %v1020 = vadd.f32 %v1010, %v972
    %v1021 = vadd.f32 %v1011, %v977
    %v1022 = vadd.f32 %v1012, %v982
    %1023 = vadd.xlane.f32.xlu0 %v1013
    %v1024 = vpop.xlane.xlu0 %1023
    %1025 = vadd.xlane.f32.xlu0 %v1014
    %v1026 = vpop.xlane.xlu0 %1025
    %1027 = vadd.xlane.f32.xlu0 %v1015
    %v1028 = vpop.xlane.xlu0 %1027
    %1029 = vadd.xlane.f32.xlu0 %v1016
    %v1030 = vpop.xlane.xlu0 %1029
    %1031 = vadd.xlane.f32.xlu0 %v1017
    %v1032 = vpop.xlane.xlu0 %1031
    %1033 = vadd.xlane.f32.xlu0 %v1018
    %v1034 = vpop.xlane.xlu0 %1033
    %1035 = vadd.xlane.f32.xlu0 %v1019
    %v1036 = vpop.xlane.xlu0 %1035
    %1037 = vadd.xlane.f32.xlu0 %v1020
    %v1038 = vpop.xlane.xlu0 %1037
    %1039 = vadd.xlane.f32.xlu0 %v1021
    %v1040 = vpop.xlane.xlu0 %1039
    %1041 = vadd.xlane.f32.xlu0 %v1022
    %v1042 = vpop.xlane.xlu0 %1041
    %vm1043 = vcmp.eq.s32.totalorder %v154, 4
    %v1044 = vsel %vm1043, 1.0, 0.0
    %v1045 = vmul.f32 %v1024, %v1044
    %v1046 = vmul.f32 %v1026, %v1044
    %v1047 = vmul.f32 %v1028, %v1044
    %v1048 = vmul.f32 %v1030, %v1044
    %v1049 = vmul.f32 %v1032, %v1044
    %v1050 = vmul.f32 %v1034, %v1044
    %v1051 = vmul.f32 %v1036, %v1044
    %v1052 = vmul.f32 %v1038, %v1044
    %v1053 = vmul.f32 %v1040, %v1044
    %v1054 = vmul.f32 %v1042, %v1044
    %v1055 = vadd.f32 %v873, %v1045
    %v1056 = vadd.f32 %v874, %v1046
    %v1057 = vadd.f32 %v875, %v1047
    %v1058 = vadd.f32 %v876, %v1048
    %v1059 = vadd.f32 %v877, %v1049
    %v1060 = vadd.f32 %v878, %v1050
    %v1061 = vadd.f32 %v879, %v1051
    %v1062 = vadd.f32 %v880, %v1052
    %v1063 = vadd.f32 %v881, %v1053
    %v1064 = vadd.f32 %v882, %v1054
    %vm1065 = vcmp.eq.s32.totalorder %v103, 5
    %vm1066 = vcmp.eq.s32.totalorder %v104, 5
    %vm1067 = vcmp.eq.s32.totalorder %v105, 5
    %vm1068 = vcmp.eq.s32.totalorder %v106, 5
    %vm1069 = vcmp.eq.s32.totalorder %v107, 5
    %vm1070 = vcmp.eq.s32.totalorder %v108, 5
    %vm1071 = vcmp.eq.s32.totalorder %v109, 5
    %vm1072 = vcmp.eq.s32.totalorder %v110, 5
    %vm1073 = vcmp.eq.s32.totalorder %v111, 5
    %vm1074 = vcmp.eq.s32.totalorder %v112, 5
    %vm1075 = vcmp.eq.s32.totalorder %v113, 5
    %vm1076 = vcmp.eq.s32.totalorder %v114, 5
    %vm1077 = vcmp.eq.s32.totalorder %v115, 5
    %vm1078 = vcmp.eq.s32.totalorder %v116, 5
    %vm1079 = vcmp.eq.s32.totalorder %v117, 5
    %vm1080 = vcmp.eq.s32.totalorder %v118, 5
    %vm1081 = vcmp.eq.s32.totalorder %v119, 5
    %vm1082 = vcmp.eq.s32.totalorder %v120, 5
    %vm1083 = vcmp.eq.s32.totalorder %v121, 5
    %vm1084 = vcmp.eq.s32.totalorder %v122, 5
    %vm1085 = vcmp.eq.s32.totalorder %v123, 5
    %vm1086 = vcmp.eq.s32.totalorder %v124, 5
    %vm1087 = vcmp.eq.s32.totalorder %v125, 5
    %vm1088 = vcmp.eq.s32.totalorder %v126, 5
    %vm1089 = vcmp.eq.s32.totalorder %v127, 5
    %vm1090 = vcmp.eq.s32.totalorder %v128, 5
    %vm1091 = vcmp.eq.s32.totalorder %v129, 5
    %vm1092 = vcmp.eq.s32.totalorder %v130, 5
    %vm1093 = vcmp.eq.s32.totalorder %v131, 5
    %vm1094 = vcmp.eq.s32.totalorder %v132, 5
    %vm1095 = vcmp.eq.s32.totalorder %v133, 5
    %vm1096 = vcmp.eq.s32.totalorder %v134, 5
    %vm1097 = vcmp.eq.s32.totalorder %v135, 5
    %vm1098 = vcmp.eq.s32.totalorder %v136, 5
    %vm1099 = vcmp.eq.s32.totalorder %v137, 5
    %vm1100 = vcmp.eq.s32.totalorder %v138, 5
    %vm1101 = vcmp.eq.s32.totalorder %v139, 5
    %vm1102 = vcmp.eq.s32.totalorder %v140, 5
    %vm1103 = vcmp.eq.s32.totalorder %v141, 5
    %vm1104 = vcmp.eq.s32.totalorder %v142, 5
    %vm1105 = vcmp.eq.s32.totalorder %v143, 5
    %vm1106 = vcmp.eq.s32.totalorder %v144, 5
    %vm1107 = vcmp.eq.s32.totalorder %v145, 5
    %vm1108 = vcmp.eq.s32.totalorder %v146, 5
    %vm1109 = vcmp.eq.s32.totalorder %v147, 5
    %vm1110 = vcmp.eq.s32.totalorder %v148, 5
    %vm1111 = vcmp.eq.s32.totalorder %v149, 5
    %vm1112 = vcmp.eq.s32.totalorder %v150, 5
    %vm1113 = vcmp.eq.s32.totalorder %v151, 5
    %vm1114 = vcmp.eq.s32.totalorder %v152, 5
    %v1115 = vsel %vm1065, 1.0, 0.0
    %v1116 = vsel %vm1066, 1.0, 0.0
    %v1117 = vsel %vm1067, 1.0, 0.0
    %v1118 = vsel %vm1068, 1.0, 0.0
    %v1119 = vsel %vm1069, 1.0, 0.0
    %v1120 = vsel %vm1070, 1.0, 0.0
    %v1121 = vsel %vm1071, 1.0, 0.0
    %v1122 = vsel %vm1072, 1.0, 0.0
    %v1123 = vsel %vm1073, 1.0, 0.0
    %v1124 = vsel %vm1074, 1.0, 0.0
    %v1125 = vsel %vm1075, 1.0, 0.0
    %v1126 = vsel %vm1076, 1.0, 0.0
    %v1127 = vsel %vm1077, 1.0, 0.0
    %v1128 = vsel %vm1078, 1.0, 0.0
    %v1129 = vsel %vm1079, 1.0, 0.0
    %v1130 = vsel %vm1080, 1.0, 0.0
    %v1131 = vsel %vm1081, 1.0, 0.0
    %v1132 = vsel %vm1082, 1.0, 0.0
    %v1133 = vsel %vm1083, 1.0, 0.0
    %v1134 = vsel %vm1084, 1.0, 0.0
    %v1135 = vsel %vm1085, 1.0, 0.0
    %v1136 = vsel %vm1086, 1.0, 0.0
    %v1137 = vsel %vm1087, 1.0, 0.0
    %v1138 = vsel %vm1088, 1.0, 0.0
    %v1139 = vsel %vm1089, 1.0, 0.0
    %v1140 = vsel %vm1090, 1.0, 0.0
    %v1141 = vsel %vm1091, 1.0, 0.0
    %v1142 = vsel %vm1092, 1.0, 0.0
    %v1143 = vsel %vm1093, 1.0, 0.0
    %v1144 = vsel %vm1094, 1.0, 0.0
    %v1145 = vsel %vm1095, 1.0, 0.0
    %v1146 = vsel %vm1096, 1.0, 0.0
    %v1147 = vsel %vm1097, 1.0, 0.0
    %v1148 = vsel %vm1098, 1.0, 0.0
    %v1149 = vsel %vm1099, 1.0, 0.0
    %v1150 = vsel %vm1100, 1.0, 0.0
    %v1151 = vsel %vm1101, 1.0, 0.0
    %v1152 = vsel %vm1102, 1.0, 0.0
    %v1153 = vsel %vm1103, 1.0, 0.0
    %v1154 = vsel %vm1104, 1.0, 0.0
    %v1155 = vsel %vm1105, 1.0, 0.0
    %v1156 = vsel %vm1106, 1.0, 0.0
    %v1157 = vsel %vm1107, 1.0, 0.0
    %v1158 = vsel %vm1108, 1.0, 0.0
    %v1159 = vsel %vm1109, 1.0, 0.0
    %v1160 = vsel %vm1110, 1.0, 0.0
    %v1161 = vsel %vm1111, 1.0, 0.0
    %v1162 = vsel %vm1112, 1.0, 0.0
    %v1163 = vsel %vm1113, 1.0, 0.0
    %v1164 = vsel %vm1114, 1.0, 0.0
    %v1165 = vadd.f32 %v1115, %v1116
    %v1166 = vadd.f32 %v1120, %v1121
    %v1167 = vadd.f32 %v1125, %v1126
    %v1168 = vadd.f32 %v1130, %v1131
    %v1169 = vadd.f32 %v1135, %v1136
    %v1170 = vadd.f32 %v1140, %v1141
    %v1171 = vadd.f32 %v1145, %v1146
    %v1172 = vadd.f32 %v1150, %v1151
    %v1173 = vadd.f32 %v1155, %v1156
    %v1174 = vadd.f32 %v1160, %v1161
    %v1175 = vadd.f32 %v1165, %v1117
    %v1176 = vadd.f32 %v1166, %v1122
    %v1177 = vadd.f32 %v1167, %v1127
    %v1178 = vadd.f32 %v1168, %v1132
    %v1179 = vadd.f32 %v1169, %v1137
    %v1180 = vadd.f32 %v1170, %v1142
    %v1181 = vadd.f32 %v1171, %v1147
    %v1182 = vadd.f32 %v1172, %v1152
    %v1183 = vadd.f32 %v1173, %v1157
    %v1184 = vadd.f32 %v1174, %v1162
    %v1185 = vadd.f32 %v1175, %v1118
    %v1186 = vadd.f32 %v1176, %v1123
    %v1187 = vadd.f32 %v1177, %v1128
    %v1188 = vadd.f32 %v1178, %v1133
    %v1189 = vadd.f32 %v1179, %v1138
    %v1190 = vadd.f32 %v1180, %v1143
    %v1191 = vadd.f32 %v1181, %v1148
    %v1192 = vadd.f32 %v1182, %v1153
    %v1193 = vadd.f32 %v1183, %v1158
    %v1194 = vadd.f32 %v1184, %v1163
    %v1195 = vadd.f32 %v1185, %v1119
    %v1196 = vadd.f32 %v1186, %v1124
    %v1197 = vadd.f32 %v1187, %v1129
    %v1198 = vadd.f32 %v1188, %v1134
    %v1199 = vadd.f32 %v1189, %v1139
    %v1200 = vadd.f32 %v1190, %v1144
    %v1201 = vadd.f32 %v1191, %v1149
    %v1202 = vadd.f32 %v1192, %v1154
    %v1203 = vadd.f32 %v1193, %v1159
    %v1204 = vadd.f32 %v1194, %v1164
    %1205 = vadd.xlane.f32.xlu0 %v1195
    %v1206 = vpop.xlane.xlu0 %1205
    %1207 = vadd.xlane.f32.xlu0 %v1196
    %v1208 = vpop.xlane.xlu0 %1207
    %1209 = vadd.xlane.f32.xlu0 %v1197
    %v1210 = vpop.xlane.xlu0 %1209
    %1211 = vadd.xlane.f32.xlu0 %v1198
    %v1212 = vpop.xlane.xlu0 %1211
    %1213 = vadd.xlane.f32.xlu0 %v1199
    %v1214 = vpop.xlane.xlu0 %1213
    %1215 = vadd.xlane.f32.xlu0 %v1200
    %v1216 = vpop.xlane.xlu0 %1215
    %1217 = vadd.xlane.f32.xlu0 %v1201
    %v1218 = vpop.xlane.xlu0 %1217
    %1219 = vadd.xlane.f32.xlu0 %v1202
    %v1220 = vpop.xlane.xlu0 %1219
    %1221 = vadd.xlane.f32.xlu0 %v1203
    %v1222 = vpop.xlane.xlu0 %1221
    %1223 = vadd.xlane.f32.xlu0 %v1204
    %v1224 = vpop.xlane.xlu0 %1223
    %vm1225 = vcmp.eq.s32.totalorder %v154, 5
    %v1226 = vsel %vm1225, 1.0, 0.0
    %v1227 = vmul.f32 %v1206, %v1226
    %v1228 = vmul.f32 %v1208, %v1226
    %v1229 = vmul.f32 %v1210, %v1226
    %v1230 = vmul.f32 %v1212, %v1226
    %v1231 = vmul.f32 %v1214, %v1226
    %v1232 = vmul.f32 %v1216, %v1226
    %v1233 = vmul.f32 %v1218, %v1226
    %v1234 = vmul.f32 %v1220, %v1226
    %v1235 = vmul.f32 %v1222, %v1226
    %v1236 = vmul.f32 %v1224, %v1226
    %v1237 = vadd.f32 %v1055, %v1227
    %v1238 = vadd.f32 %v1056, %v1228
    %v1239 = vadd.f32 %v1057, %v1229
    %v1240 = vadd.f32 %v1058, %v1230
    %v1241 = vadd.f32 %v1059, %v1231
    %v1242 = vadd.f32 %v1060, %v1232
    %v1243 = vadd.f32 %v1061, %v1233
    %v1244 = vadd.f32 %v1062, %v1234
    %v1245 = vadd.f32 %v1063, %v1235
    %v1246 = vadd.f32 %v1064, %v1236
    %vm1247 = vcmp.eq.s32.totalorder %v103, 6
    %vm1248 = vcmp.eq.s32.totalorder %v104, 6
    %vm1249 = vcmp.eq.s32.totalorder %v105, 6
    %vm1250 = vcmp.eq.s32.totalorder %v106, 6
    %vm1251 = vcmp.eq.s32.totalorder %v107, 6
    %vm1252 = vcmp.eq.s32.totalorder %v108, 6
    %vm1253 = vcmp.eq.s32.totalorder %v109, 6
    %vm1254 = vcmp.eq.s32.totalorder %v110, 6
    %vm1255 = vcmp.eq.s32.totalorder %v111, 6
    %vm1256 = vcmp.eq.s32.totalorder %v112, 6
    %vm1257 = vcmp.eq.s32.totalorder %v113, 6
    %vm1258 = vcmp.eq.s32.totalorder %v114, 6
    %vm1259 = vcmp.eq.s32.totalorder %v115, 6
    %vm1260 = vcmp.eq.s32.totalorder %v116, 6
    %vm1261 = vcmp.eq.s32.totalorder %v117, 6
    %vm1262 = vcmp.eq.s32.totalorder %v118, 6
    %vm1263 = vcmp.eq.s32.totalorder %v119, 6
    %vm1264 = vcmp.eq.s32.totalorder %v120, 6
    %vm1265 = vcmp.eq.s32.totalorder %v121, 6
    %vm1266 = vcmp.eq.s32.totalorder %v122, 6
    %vm1267 = vcmp.eq.s32.totalorder %v123, 6
    %vm1268 = vcmp.eq.s32.totalorder %v124, 6
    %vm1269 = vcmp.eq.s32.totalorder %v125, 6
    %vm1270 = vcmp.eq.s32.totalorder %v126, 6
    %vm1271 = vcmp.eq.s32.totalorder %v127, 6
    %vm1272 = vcmp.eq.s32.totalorder %v128, 6
    %vm1273 = vcmp.eq.s32.totalorder %v129, 6
    %vm1274 = vcmp.eq.s32.totalorder %v130, 6
    %vm1275 = vcmp.eq.s32.totalorder %v131, 6
    %vm1276 = vcmp.eq.s32.totalorder %v132, 6
    %vm1277 = vcmp.eq.s32.totalorder %v133, 6
    %vm1278 = vcmp.eq.s32.totalorder %v134, 6
    %vm1279 = vcmp.eq.s32.totalorder %v135, 6
    %vm1280 = vcmp.eq.s32.totalorder %v136, 6
    %vm1281 = vcmp.eq.s32.totalorder %v137, 6
    %vm1282 = vcmp.eq.s32.totalorder %v138, 6
    %vm1283 = vcmp.eq.s32.totalorder %v139, 6
    %vm1284 = vcmp.eq.s32.totalorder %v140, 6
    %vm1285 = vcmp.eq.s32.totalorder %v141, 6
    %vm1286 = vcmp.eq.s32.totalorder %v142, 6
    %vm1287 = vcmp.eq.s32.totalorder %v143, 6
    %vm1288 = vcmp.eq.s32.totalorder %v144, 6
    %vm1289 = vcmp.eq.s32.totalorder %v145, 6
    %vm1290 = vcmp.eq.s32.totalorder %v146, 6
    %vm1291 = vcmp.eq.s32.totalorder %v147, 6
    %vm1292 = vcmp.eq.s32.totalorder %v148, 6
    %vm1293 = vcmp.eq.s32.totalorder %v149, 6
    %vm1294 = vcmp.eq.s32.totalorder %v150, 6
    %vm1295 = vcmp.eq.s32.totalorder %v151, 6
    %vm1296 = vcmp.eq.s32.totalorder %v152, 6
    %v1297 = vsel %vm1247, 1.0, 0.0
    %v1298 = vsel %vm1248, 1.0, 0.0
    %v1299 = vsel %vm1249, 1.0, 0.0
    %v1300 = vsel %vm1250, 1.0, 0.0
    %v1301 = vsel %vm1251, 1.0, 0.0
    %v1302 = vsel %vm1252, 1.0, 0.0
    %v1303 = vsel %vm1253, 1.0, 0.0
    %v1304 = vsel %vm1254, 1.0, 0.0
    %v1305 = vsel %vm1255, 1.0, 0.0
    %v1306 = vsel %vm1256, 1.0, 0.0
    %v1307 = vsel %vm1257, 1.0, 0.0
    %v1308 = vsel %vm1258, 1.0, 0.0
    %v1309 = vsel %vm1259, 1.0, 0.0
    %v1310 = vsel %vm1260, 1.0, 0.0
    %v1311 = vsel %vm1261, 1.0, 0.0
    %v1312 = vsel %vm1262, 1.0, 0.0
    %v1313 = vsel %vm1263, 1.0, 0.0
    %v1314 = vsel %vm1264, 1.0, 0.0
    %v1315 = vsel %vm1265, 1.0, 0.0
    %v1316 = vsel %vm1266, 1.0, 0.0
    %v1317 = vsel %vm1267, 1.0, 0.0
    %v1318 = vsel %vm1268, 1.0, 0.0
    %v1319 = vsel %vm1269, 1.0, 0.0
    %v1320 = vsel %vm1270, 1.0, 0.0
    %v1321 = vsel %vm1271, 1.0, 0.0
    %v1322 = vsel %vm1272, 1.0, 0.0
    %v1323 = vsel %vm1273, 1.0, 0.0
    %v1324 = vsel %vm1274, 1.0, 0.0
    %v1325 = vsel %vm1275, 1.0, 0.0
    %v1326 = vsel %vm1276, 1.0, 0.0
    %v1327 = vsel %vm1277, 1.0, 0.0
    %v1328 = vsel %vm1278, 1.0, 0.0
    %v1329 = vsel %vm1279, 1.0, 0.0
    %v1330 = vsel %vm1280, 1.0, 0.0
    %v1331 = vsel %vm1281, 1.0, 0.0
    %v1332 = vsel %vm1282, 1.0, 0.0
    %v1333 = vsel %vm1283, 1.0, 0.0
    %v1334 = vsel %vm1284, 1.0, 0.0
    %v1335 = vsel %vm1285, 1.0, 0.0
    %v1336 = vsel %vm1286, 1.0, 0.0
    %v1337 = vsel %vm1287, 1.0, 0.0
    %v1338 = vsel %vm1288, 1.0, 0.0
    %v1339 = vsel %vm1289, 1.0, 0.0
    %v1340 = vsel %vm1290, 1.0, 0.0
    %v1341 = vsel %vm1291, 1.0, 0.0
    %v1342 = vsel %vm1292, 1.0, 0.0
    %v1343 = vsel %vm1293, 1.0, 0.0
    %v1344 = vsel %vm1294, 1.0, 0.0
    %v1345 = vsel %vm1295, 1.0, 0.0
    %v1346 = vsel %vm1296, 1.0, 0.0
    %v1347 = vadd.f32 %v1297, %v1298
    %v1348 = vadd.f32 %v1302, %v1303
    %v1349 = vadd.f32 %v1307, %v1308
    %v1350 = vadd.f32 %v1312, %v1313
    %v1351 = vadd.f32 %v1317, %v1318
    %v1352 = vadd.f32 %v1322, %v1323
    %v1353 = vadd.f32 %v1327, %v1328
    %v1354 = vadd.f32 %v1332, %v1333
    %v1355 = vadd.f32 %v1337, %v1338
    %v1356 = vadd.f32 %v1342, %v1343
    %v1357 = vadd.f32 %v1347, %v1299
    %v1358 = vadd.f32 %v1348, %v1304
    %v1359 = vadd.f32 %v1349, %v1309
    %v1360 = vadd.f32 %v1350, %v1314
    %v1361 = vadd.f32 %v1351, %v1319
    %v1362 = vadd.f32 %v1352, %v1324
    %v1363 = vadd.f32 %v1353, %v1329
    %v1364 = vadd.f32 %v1354, %v1334
    %v1365 = vadd.f32 %v1355, %v1339
    %v1366 = vadd.f32 %v1356, %v1344
    %v1367 = vadd.f32 %v1357, %v1300
    %v1368 = vadd.f32 %v1358, %v1305
    %v1369 = vadd.f32 %v1359, %v1310
    %v1370 = vadd.f32 %v1360, %v1315
    %v1371 = vadd.f32 %v1361, %v1320
    %v1372 = vadd.f32 %v1362, %v1325
    %v1373 = vadd.f32 %v1363, %v1330
    %v1374 = vadd.f32 %v1364, %v1335
    %v1375 = vadd.f32 %v1365, %v1340
    %v1376 = vadd.f32 %v1366, %v1345
    %v1377 = vadd.f32 %v1367, %v1301
    %v1378 = vadd.f32 %v1368, %v1306
    %v1379 = vadd.f32 %v1369, %v1311
    %v1380 = vadd.f32 %v1370, %v1316
    %v1381 = vadd.f32 %v1371, %v1321
    %v1382 = vadd.f32 %v1372, %v1326
    %v1383 = vadd.f32 %v1373, %v1331
    %v1384 = vadd.f32 %v1374, %v1336
    %v1385 = vadd.f32 %v1375, %v1341
    %v1386 = vadd.f32 %v1376, %v1346
    %1387 = vadd.xlane.f32.xlu0 %v1377
    %v1388 = vpop.xlane.xlu0 %1387
    %1389 = vadd.xlane.f32.xlu0 %v1378
    %v1390 = vpop.xlane.xlu0 %1389
    %1391 = vadd.xlane.f32.xlu0 %v1379
    %v1392 = vpop.xlane.xlu0 %1391
    %1393 = vadd.xlane.f32.xlu0 %v1380
    %v1394 = vpop.xlane.xlu0 %1393
    %1395 = vadd.xlane.f32.xlu0 %v1381
    %v1396 = vpop.xlane.xlu0 %1395
    %1397 = vadd.xlane.f32.xlu0 %v1382
    %v1398 = vpop.xlane.xlu0 %1397
    %1399 = vadd.xlane.f32.xlu0 %v1383
    %v1400 = vpop.xlane.xlu0 %1399
    %1401 = vadd.xlane.f32.xlu0 %v1384
    %v1402 = vpop.xlane.xlu0 %1401
    %1403 = vadd.xlane.f32.xlu0 %v1385
    %v1404 = vpop.xlane.xlu0 %1403
    %1405 = vadd.xlane.f32.xlu0 %v1386
    %v1406 = vpop.xlane.xlu0 %1405
    %vm1407 = vcmp.eq.s32.totalorder %v154, 6
    %v1408 = vsel %vm1407, 1.0, 0.0
    %v1409 = vmul.f32 %v1388, %v1408
    %v1410 = vmul.f32 %v1390, %v1408
    %v1411 = vmul.f32 %v1392, %v1408
    %v1412 = vmul.f32 %v1394, %v1408
    %v1413 = vmul.f32 %v1396, %v1408
    %v1414 = vmul.f32 %v1398, %v1408
    %v1415 = vmul.f32 %v1400, %v1408
    %v1416 = vmul.f32 %v1402, %v1408
    %v1417 = vmul.f32 %v1404, %v1408
    %v1418 = vmul.f32 %v1406, %v1408
    %v1419 = vadd.f32 %v1237, %v1409
    %v1420 = vadd.f32 %v1238, %v1410
    %v1421 = vadd.f32 %v1239, %v1411
    %v1422 = vadd.f32 %v1240, %v1412
    %v1423 = vadd.f32 %v1241, %v1413
    %v1424 = vadd.f32 %v1242, %v1414
    %v1425 = vadd.f32 %v1243, %v1415
    %v1426 = vadd.f32 %v1244, %v1416
    %v1427 = vadd.f32 %v1245, %v1417
    %v1428 = vadd.f32 %v1246, %v1418
    %vm1429 = vcmp.eq.s32.totalorder %v103, 7
    %vm1430 = vcmp.eq.s32.totalorder %v104, 7
    %vm1431 = vcmp.eq.s32.totalorder %v105, 7
    %vm1432 = vcmp.eq.s32.totalorder %v106, 7
    %vm1433 = vcmp.eq.s32.totalorder %v107, 7
    %vm1434 = vcmp.eq.s32.totalorder %v108, 7
    %vm1435 = vcmp.eq.s32.totalorder %v109, 7
    %vm1436 = vcmp.eq.s32.totalorder %v110, 7
    %vm1437 = vcmp.eq.s32.totalorder %v111, 7
    %vm1438 = vcmp.eq.s32.totalorder %v112, 7
    %vm1439 = vcmp.eq.s32.totalorder %v113, 7
    %vm1440 = vcmp.eq.s32.totalorder %v114, 7
    %vm1441 = vcmp.eq.s32.totalorder %v115, 7
    %vm1442 = vcmp.eq.s32.totalorder %v116, 7
    %vm1443 = vcmp.eq.s32.totalorder %v117, 7
    %vm1444 = vcmp.eq.s32.totalorder %v118, 7
    %vm1445 = vcmp.eq.s32.totalorder %v119, 7
    %vm1446 = vcmp.eq.s32.totalorder %v120, 7
    %vm1447 = vcmp.eq.s32.totalorder %v121, 7
    %vm1448 = vcmp.eq.s32.totalorder %v122, 7
    %vm1449 = vcmp.eq.s32.totalorder %v123, 7
    %vm1450 = vcmp.eq.s32.totalorder %v124, 7
    %vm1451 = vcmp.eq.s32.totalorder %v125, 7
    %vm1452 = vcmp.eq.s32.totalorder %v126, 7
    %vm1453 = vcmp.eq.s32.totalorder %v127, 7
    %vm1454 = vcmp.eq.s32.totalorder %v128, 7
    %vm1455 = vcmp.eq.s32.totalorder %v129, 7
    %vm1456 = vcmp.eq.s32.totalorder %v130, 7
    %vm1457 = vcmp.eq.s32.totalorder %v131, 7
    %vm1458 = vcmp.eq.s32.totalorder %v132, 7
    %vm1459 = vcmp.eq.s32.totalorder %v133, 7
    %vm1460 = vcmp.eq.s32.totalorder %v134, 7
    %vm1461 = vcmp.eq.s32.totalorder %v135, 7
    %vm1462 = vcmp.eq.s32.totalorder %v136, 7
    %vm1463 = vcmp.eq.s32.totalorder %v137, 7
    %vm1464 = vcmp.eq.s32.totalorder %v138, 7
    %vm1465 = vcmp.eq.s32.totalorder %v139, 7
    %vm1466 = vcmp.eq.s32.totalorder %v140, 7
    %vm1467 = vcmp.eq.s32.totalorder %v141, 7
    %vm1468 = vcmp.eq.s32.totalorder %v142, 7
    %vm1469 = vcmp.eq.s32.totalorder %v143, 7
    %vm1470 = vcmp.eq.s32.totalorder %v144, 7
    %vm1471 = vcmp.eq.s32.totalorder %v145, 7
    %vm1472 = vcmp.eq.s32.totalorder %v146, 7
    %vm1473 = vcmp.eq.s32.totalorder %v147, 7
    %vm1474 = vcmp.eq.s32.totalorder %v148, 7
    %vm1475 = vcmp.eq.s32.totalorder %v149, 7
    %vm1476 = vcmp.eq.s32.totalorder %v150, 7
    %vm1477 = vcmp.eq.s32.totalorder %v151, 7
    %vm1478 = vcmp.eq.s32.totalorder %v152, 7
    %v1479 = vsel %vm1429, 1.0, 0.0
    %v1480 = vsel %vm1430, 1.0, 0.0
    %v1481 = vsel %vm1431, 1.0, 0.0
    %v1482 = vsel %vm1432, 1.0, 0.0
    %v1483 = vsel %vm1433, 1.0, 0.0
    %v1484 = vsel %vm1434, 1.0, 0.0
    %v1485 = vsel %vm1435, 1.0, 0.0
    %v1486 = vsel %vm1436, 1.0, 0.0
    %v1487 = vsel %vm1437, 1.0, 0.0
    %v1488 = vsel %vm1438, 1.0, 0.0
    %v1489 = vsel %vm1439, 1.0, 0.0
    %v1490 = vsel %vm1440, 1.0, 0.0
    %v1491 = vsel %vm1441, 1.0, 0.0
    %v1492 = vsel %vm1442, 1.0, 0.0
    %v1493 = vsel %vm1443, 1.0, 0.0
    %v1494 = vsel %vm1444, 1.0, 0.0
    %v1495 = vsel %vm1445, 1.0, 0.0
    %v1496 = vsel %vm1446, 1.0, 0.0
    %v1497 = vsel %vm1447, 1.0, 0.0
    %v1498 = vsel %vm1448, 1.0, 0.0
    %v1499 = vsel %vm1449, 1.0, 0.0
    %v1500 = vsel %vm1450, 1.0, 0.0
    %v1501 = vsel %vm1451, 1.0, 0.0
    %v1502 = vsel %vm1452, 1.0, 0.0
    %v1503 = vsel %vm1453, 1.0, 0.0
    %v1504 = vsel %vm1454, 1.0, 0.0
    %v1505 = vsel %vm1455, 1.0, 0.0
    %v1506 = vsel %vm1456, 1.0, 0.0
    %v1507 = vsel %vm1457, 1.0, 0.0
    %v1508 = vsel %vm1458, 1.0, 0.0
    %v1509 = vsel %vm1459, 1.0, 0.0
    %v1510 = vsel %vm1460, 1.0, 0.0
    %v1511 = vsel %vm1461, 1.0, 0.0
    %v1512 = vsel %vm1462, 1.0, 0.0
    %v1513 = vsel %vm1463, 1.0, 0.0
    %v1514 = vsel %vm1464, 1.0, 0.0
    %v1515 = vsel %vm1465, 1.0, 0.0
    %v1516 = vsel %vm1466, 1.0, 0.0
    %v1517 = vsel %vm1467, 1.0, 0.0
    %v1518 = vsel %vm1468, 1.0, 0.0
    %v1519 = vsel %vm1469, 1.0, 0.0
    %v1520 = vsel %vm1470, 1.0, 0.0
    %v1521 = vsel %vm1471, 1.0, 0.0
    %v1522 = vsel %vm1472, 1.0, 0.0
    %v1523 = vsel %vm1473, 1.0, 0.0
    %v1524 = vsel %vm1474, 1.0, 0.0
    %v1525 = vsel %vm1475, 1.0, 0.0
    %v1526 = vsel %vm1476, 1.0, 0.0
    %v1527 = vsel %vm1477, 1.0, 0.0
    %v1528 = vsel %vm1478, 1.0, 0.0
    %v1529 = vadd.f32 %v1479, %v1480
    %v1530 = vadd.f32 %v1484, %v1485
    %v1531 = vadd.f32 %v1489, %v1490
    %v1532 = vadd.f32 %v1494, %v1495
    %v1533 = vadd.f32 %v1499, %v1500
    %v1534 = vadd.f32 %v1504, %v1505
    %v1535 = vadd.f32 %v1509, %v1510
    %v1536 = vadd.f32 %v1514, %v1515
    %v1537 = vadd.f32 %v1519, %v1520
    %v1538 = vadd.f32 %v1524, %v1525
    %v1539 = vadd.f32 %v1529, %v1481
    %v1540 = vadd.f32 %v1530, %v1486
    %v1541 = vadd.f32 %v1531, %v1491
    %v1542 = vadd.f32 %v1532, %v1496
    %v1543 = vadd.f32 %v1533, %v1501
    %v1544 = vadd.f32 %v1534, %v1506
    %v1545 = vadd.f32 %v1535, %v1511
    %v1546 = vadd.f32 %v1536, %v1516
    %v1547 = vadd.f32 %v1537, %v1521
    %v1548 = vadd.f32 %v1538, %v1526
    %v1549 = vadd.f32 %v1539, %v1482
    %v1550 = vadd.f32 %v1540, %v1487
    %v1551 = vadd.f32 %v1541, %v1492
    %v1552 = vadd.f32 %v1542, %v1497
    %v1553 = vadd.f32 %v1543, %v1502
    %v1554 = vadd.f32 %v1544, %v1507
    %v1555 = vadd.f32 %v1545, %v1512
    %v1556 = vadd.f32 %v1546, %v1517
    %v1557 = vadd.f32 %v1547, %v1522
    %v1558 = vadd.f32 %v1548, %v1527
    %v1559 = vadd.f32 %v1549, %v1483
    %v1560 = vadd.f32 %v1550, %v1488
    %v1561 = vadd.f32 %v1551, %v1493
    %v1562 = vadd.f32 %v1552, %v1498
    %v1563 = vadd.f32 %v1553, %v1503
    %v1564 = vadd.f32 %v1554, %v1508
    %v1565 = vadd.f32 %v1555, %v1513
    %v1566 = vadd.f32 %v1556, %v1518
    %v1567 = vadd.f32 %v1557, %v1523
    %v1568 = vadd.f32 %v1558, %v1528
    %1569 = vadd.xlane.f32.xlu0 %v1559
    %v1570 = vpop.xlane.xlu0 %1569
    %1571 = vadd.xlane.f32.xlu0 %v1560
    %v1572 = vpop.xlane.xlu0 %1571
    %1573 = vadd.xlane.f32.xlu0 %v1561
    %v1574 = vpop.xlane.xlu0 %1573
    %1575 = vadd.xlane.f32.xlu0 %v1562
    %v1576 = vpop.xlane.xlu0 %1575
    %1577 = vadd.xlane.f32.xlu0 %v1563
    %v1578 = vpop.xlane.xlu0 %1577
    %1579 = vadd.xlane.f32.xlu0 %v1564
    %v1580 = vpop.xlane.xlu0 %1579
    %1581 = vadd.xlane.f32.xlu0 %v1565
    %v1582 = vpop.xlane.xlu0 %1581
    %1583 = vadd.xlane.f32.xlu0 %v1566
    %v1584 = vpop.xlane.xlu0 %1583
    %1585 = vadd.xlane.f32.xlu0 %v1567
    %v1586 = vpop.xlane.xlu0 %1585
    %1587 = vadd.xlane.f32.xlu0 %v1568
    %v1588 = vpop.xlane.xlu0 %1587
    %vm1589 = vcmp.eq.s32.totalorder %v154, 7
    %v1590 = vsel %vm1589, 1.0, 0.0
    %v1591 = vmul.f32 %v1570, %v1590
    %v1592 = vmul.f32 %v1572, %v1590
    %v1593 = vmul.f32 %v1574, %v1590
    %v1594 = vmul.f32 %v1576, %v1590
    %v1595 = vmul.f32 %v1578, %v1590
    %v1596 = vmul.f32 %v1580, %v1590
    %v1597 = vmul.f32 %v1582, %v1590
    %v1598 = vmul.f32 %v1584, %v1590
    %v1599 = vmul.f32 %v1586, %v1590
    %v1600 = vmul.f32 %v1588, %v1590
    %v1601 = vadd.f32 %v1419, %v1591
    %v1602 = vadd.f32 %v1420, %v1592
    %v1603 = vadd.f32 %v1421, %v1593
    %v1604 = vadd.f32 %v1422, %v1594
    %v1605 = vadd.f32 %v1423, %v1595
    %v1606 = vadd.f32 %v1424, %v1596
    %v1607 = vadd.f32 %v1425, %v1597
    %v1608 = vadd.f32 %v1426, %v1598
    %v1609 = vadd.f32 %v1427, %v1599
    %v1610 = vadd.f32 %v1428, %v1600
    %vm1611 = vcmp.eq.s32.totalorder %v103, 8
    %vm1612 = vcmp.eq.s32.totalorder %v104, 8
    %vm1613 = vcmp.eq.s32.totalorder %v105, 8
    %vm1614 = vcmp.eq.s32.totalorder %v106, 8
    %vm1615 = vcmp.eq.s32.totalorder %v107, 8
    %vm1616 = vcmp.eq.s32.totalorder %v108, 8
    %vm1617 = vcmp.eq.s32.totalorder %v109, 8
    %vm1618 = vcmp.eq.s32.totalorder %v110, 8
    %vm1619 = vcmp.eq.s32.totalorder %v111, 8
    %vm1620 = vcmp.eq.s32.totalorder %v112, 8
    %vm1621 = vcmp.eq.s32.totalorder %v113, 8
    %vm1622 = vcmp.eq.s32.totalorder %v114, 8
    %vm1623 = vcmp.eq.s32.totalorder %v115, 8
    %vm1624 = vcmp.eq.s32.totalorder %v116, 8
    %vm1625 = vcmp.eq.s32.totalorder %v117, 8
    %vm1626 = vcmp.eq.s32.totalorder %v118, 8
    %vm1627 = vcmp.eq.s32.totalorder %v119, 8
    %vm1628 = vcmp.eq.s32.totalorder %v120, 8
    %vm1629 = vcmp.eq.s32.totalorder %v121, 8
    %vm1630 = vcmp.eq.s32.totalorder %v122, 8
    %vm1631 = vcmp.eq.s32.totalorder %v123, 8
    %vm1632 = vcmp.eq.s32.totalorder %v124, 8
    %vm1633 = vcmp.eq.s32.totalorder %v125, 8
    %vm1634 = vcmp.eq.s32.totalorder %v126, 8
    %vm1635 = vcmp.eq.s32.totalorder %v127, 8
    %vm1636 = vcmp.eq.s32.totalorder %v128, 8
    %vm1637 = vcmp.eq.s32.totalorder %v129, 8
    %vm1638 = vcmp.eq.s32.totalorder %v130, 8
    %vm1639 = vcmp.eq.s32.totalorder %v131, 8
    %vm1640 = vcmp.eq.s32.totalorder %v132, 8
    %vm1641 = vcmp.eq.s32.totalorder %v133, 8
    %vm1642 = vcmp.eq.s32.totalorder %v134, 8
    %vm1643 = vcmp.eq.s32.totalorder %v135, 8
    %vm1644 = vcmp.eq.s32.totalorder %v136, 8
    %vm1645 = vcmp.eq.s32.totalorder %v137, 8
    %vm1646 = vcmp.eq.s32.totalorder %v138, 8
    %vm1647 = vcmp.eq.s32.totalorder %v139, 8
    %vm1648 = vcmp.eq.s32.totalorder %v140, 8
    %vm1649 = vcmp.eq.s32.totalorder %v141, 8
    %vm1650 = vcmp.eq.s32.totalorder %v142, 8
    %vm1651 = vcmp.eq.s32.totalorder %v143, 8
    %vm1652 = vcmp.eq.s32.totalorder %v144, 8
    %vm1653 = vcmp.eq.s32.totalorder %v145, 8
    %vm1654 = vcmp.eq.s32.totalorder %v146, 8
    %vm1655 = vcmp.eq.s32.totalorder %v147, 8
    %vm1656 = vcmp.eq.s32.totalorder %v148, 8
    %vm1657 = vcmp.eq.s32.totalorder %v149, 8
    %vm1658 = vcmp.eq.s32.totalorder %v150, 8
    %vm1659 = vcmp.eq.s32.totalorder %v151, 8
    %vm1660 = vcmp.eq.s32.totalorder %v152, 8
    %v1661 = vsel %vm1611, 1.0, 0.0
    %v1662 = vsel %vm1612, 1.0, 0.0
    %v1663 = vsel %vm1613, 1.0, 0.0
    %v1664 = vsel %vm1614, 1.0, 0.0
    %v1665 = vsel %vm1615, 1.0, 0.0
    %v1666 = vsel %vm1616, 1.0, 0.0
    %v1667 = vsel %vm1617, 1.0, 0.0
    %v1668 = vsel %vm1618, 1.0, 0.0
    %v1669 = vsel %vm1619, 1.0, 0.0
    %v1670 = vsel %vm1620, 1.0, 0.0
    %v1671 = vsel %vm1621, 1.0, 0.0
    %v1672 = vsel %vm1622, 1.0, 0.0
    %v1673 = vsel %vm1623, 1.0, 0.0
    %v1674 = vsel %vm1624, 1.0, 0.0
    %v1675 = vsel %vm1625, 1.0, 0.0
    %v1676 = vsel %vm1626, 1.0, 0.0
    %v1677 = vsel %vm1627, 1.0, 0.0
    %v1678 = vsel %vm1628, 1.0, 0.0
    %v1679 = vsel %vm1629, 1.0, 0.0
    %v1680 = vsel %vm1630, 1.0, 0.0
    %v1681 = vsel %vm1631, 1.0, 0.0
    %v1682 = vsel %vm1632, 1.0, 0.0
    %v1683 = vsel %vm1633, 1.0, 0.0
    %v1684 = vsel %vm1634, 1.0, 0.0
    %v1685 = vsel %vm1635, 1.0, 0.0
    %v1686 = vsel %vm1636, 1.0, 0.0
    %v1687 = vsel %vm1637, 1.0, 0.0
    %v1688 = vsel %vm1638, 1.0, 0.0
    %v1689 = vsel %vm1639, 1.0, 0.0
    %v1690 = vsel %vm1640, 1.0, 0.0
    %v1691 = vsel %vm1641, 1.0, 0.0
    %v1692 = vsel %vm1642, 1.0, 0.0
    %v1693 = vsel %vm1643, 1.0, 0.0
    %v1694 = vsel %vm1644, 1.0, 0.0
    %v1695 = vsel %vm1645, 1.0, 0.0
    %v1696 = vsel %vm1646, 1.0, 0.0
    %v1697 = vsel %vm1647, 1.0, 0.0
    %v1698 = vsel %vm1648, 1.0, 0.0
    %v1699 = vsel %vm1649, 1.0, 0.0
    %v1700 = vsel %vm1650, 1.0, 0.0
    %v1701 = vsel %vm1651, 1.0, 0.0
    %v1702 = vsel %vm1652, 1.0, 0.0
    %v1703 = vsel %vm1653, 1.0, 0.0
    %v1704 = vsel %vm1654, 1.0, 0.0
    %v1705 = vsel %vm1655, 1.0, 0.0
    %v1706 = vsel %vm1656, 1.0, 0.0
    %v1707 = vsel %vm1657, 1.0, 0.0
    %v1708 = vsel %vm1658, 1.0, 0.0
    %v1709 = vsel %vm1659, 1.0, 0.0
    %v1710 = vsel %vm1660, 1.0, 0.0
    %v1711 = vadd.f32 %v1661, %v1662
    %v1712 = vadd.f32 %v1666, %v1667
    %v1713 = vadd.f32 %v1671, %v1672
    %v1714 = vadd.f32 %v1676, %v1677
    %v1715 = vadd.f32 %v1681, %v1682
    %v1716 = vadd.f32 %v1686, %v1687
    %v1717 = vadd.f32 %v1691, %v1692
    %v1718 = vadd.f32 %v1696, %v1697
    %v1719 = vadd.f32 %v1701, %v1702
    %v1720 = vadd.f32 %v1706, %v1707
    %v1721 = vadd.f32 %v1711, %v1663
    %v1722 = vadd.f32 %v1712, %v1668
    %v1723 = vadd.f32 %v1713, %v1673
    %v1724 = vadd.f32 %v1714, %v1678
    %v1725 = vadd.f32 %v1715, %v1683
    %v1726 = vadd.f32 %v1716, %v1688
    %v1727 = vadd.f32 %v1717, %v1693
    %v1728 = vadd.f32 %v1718, %v1698
    %v1729 = vadd.f32 %v1719, %v1703
    %v1730 = vadd.f32 %v1720, %v1708
    %v1731 = vadd.f32 %v1721, %v1664
    %v1732 = vadd.f32 %v1722, %v1669
    %v1733 = vadd.f32 %v1723, %v1674
    %v1734 = vadd.f32 %v1724, %v1679
    %v1735 = vadd.f32 %v1725, %v1684
    %v1736 = vadd.f32 %v1726, %v1689
    %v1737 = vadd.f32 %v1727, %v1694
    %v1738 = vadd.f32 %v1728, %v1699
    %v1739 = vadd.f32 %v1729, %v1704
    %v1740 = vadd.f32 %v1730, %v1709
    %v1741 = vadd.f32 %v1731, %v1665
    %v1742 = vadd.f32 %v1732, %v1670
    %v1743 = vadd.f32 %v1733, %v1675
    %v1744 = vadd.f32 %v1734, %v1680
    %v1745 = vadd.f32 %v1735, %v1685
    %v1746 = vadd.f32 %v1736, %v1690
    %v1747 = vadd.f32 %v1737, %v1695
    %v1748 = vadd.f32 %v1738, %v1700
    %v1749 = vadd.f32 %v1739, %v1705
    %v1750 = vadd.f32 %v1740, %v1710
    %1751 = vadd.xlane.f32.xlu0 %v1741
    %v1752 = vpop.xlane.xlu0 %1751
    %1753 = vadd.xlane.f32.xlu0 %v1742
    %v1754 = vpop.xlane.xlu0 %1753
    %1755 = vadd.xlane.f32.xlu0 %v1743
    %v1756 = vpop.xlane.xlu0 %1755
    %1757 = vadd.xlane.f32.xlu0 %v1744
    %v1758 = vpop.xlane.xlu0 %1757
    %1759 = vadd.xlane.f32.xlu0 %v1745
    %v1760 = vpop.xlane.xlu0 %1759
    %1761 = vadd.xlane.f32.xlu0 %v1746
    %v1762 = vpop.xlane.xlu0 %1761
    %1763 = vadd.xlane.f32.xlu0 %v1747
    %v1764 = vpop.xlane.xlu0 %1763
    %1765 = vadd.xlane.f32.xlu0 %v1748
    %v1766 = vpop.xlane.xlu0 %1765
    %1767 = vadd.xlane.f32.xlu0 %v1749
    %v1768 = vpop.xlane.xlu0 %1767
    %1769 = vadd.xlane.f32.xlu0 %v1750
    %v1770 = vpop.xlane.xlu0 %1769
    %vm1771 = vcmp.eq.s32.totalorder %v154, 8
    %v1772 = vsel %vm1771, 1.0, 0.0
    %v1773 = vmul.f32 %v1752, %v1772
    %v1774 = vmul.f32 %v1754, %v1772
    %v1775 = vmul.f32 %v1756, %v1772
    %v1776 = vmul.f32 %v1758, %v1772
    %v1777 = vmul.f32 %v1760, %v1772
    %v1778 = vmul.f32 %v1762, %v1772
    %v1779 = vmul.f32 %v1764, %v1772
    %v1780 = vmul.f32 %v1766, %v1772
    %v1781 = vmul.f32 %v1768, %v1772
    %v1782 = vmul.f32 %v1770, %v1772
    %v1783 = vadd.f32 %v1601, %v1773
    %v1784 = vadd.f32 %v1602, %v1774
    %v1785 = vadd.f32 %v1603, %v1775
    %v1786 = vadd.f32 %v1604, %v1776
    %v1787 = vadd.f32 %v1605, %v1777
    %v1788 = vadd.f32 %v1606, %v1778
    %v1789 = vadd.f32 %v1607, %v1779
    %v1790 = vadd.f32 %v1608, %v1780
    %v1791 = vadd.f32 %v1609, %v1781
    %v1792 = vadd.f32 %v1610, %v1782
    %vm1793 = vcmp.eq.s32.totalorder %v103, 9
    %vm1794 = vcmp.eq.s32.totalorder %v104, 9
    %vm1795 = vcmp.eq.s32.totalorder %v105, 9
    %vm1796 = vcmp.eq.s32.totalorder %v106, 9
    %vm1797 = vcmp.eq.s32.totalorder %v107, 9
    %vm1798 = vcmp.eq.s32.totalorder %v108, 9
    %vm1799 = vcmp.eq.s32.totalorder %v109, 9
    %vm1800 = vcmp.eq.s32.totalorder %v110, 9
    %vm1801 = vcmp.eq.s32.totalorder %v111, 9
    %vm1802 = vcmp.eq.s32.totalorder %v112, 9
    %vm1803 = vcmp.eq.s32.totalorder %v113, 9
    %vm1804 = vcmp.eq.s32.totalorder %v114, 9
    %vm1805 = vcmp.eq.s32.totalorder %v115, 9
    %vm1806 = vcmp.eq.s32.totalorder %v116, 9
    %vm1807 = vcmp.eq.s32.totalorder %v117, 9
    %vm1808 = vcmp.eq.s32.totalorder %v118, 9
    %vm1809 = vcmp.eq.s32.totalorder %v119, 9
    %vm1810 = vcmp.eq.s32.totalorder %v120, 9
    %vm1811 = vcmp.eq.s32.totalorder %v121, 9
    %vm1812 = vcmp.eq.s32.totalorder %v122, 9
    %vm1813 = vcmp.eq.s32.totalorder %v123, 9
    %vm1814 = vcmp.eq.s32.totalorder %v124, 9
    %vm1815 = vcmp.eq.s32.totalorder %v125, 9
    %vm1816 = vcmp.eq.s32.totalorder %v126, 9
    %vm1817 = vcmp.eq.s32.totalorder %v127, 9
    %vm1818 = vcmp.eq.s32.totalorder %v128, 9
    %vm1819 = vcmp.eq.s32.totalorder %v129, 9
    %vm1820 = vcmp.eq.s32.totalorder %v130, 9
    %vm1821 = vcmp.eq.s32.totalorder %v131, 9
    %vm1822 = vcmp.eq.s32.totalorder %v132, 9
    %vm1823 = vcmp.eq.s32.totalorder %v133, 9
    %vm1824 = vcmp.eq.s32.totalorder %v134, 9
    %vm1825 = vcmp.eq.s32.totalorder %v135, 9
    %vm1826 = vcmp.eq.s32.totalorder %v136, 9
    %vm1827 = vcmp.eq.s32.totalorder %v137, 9
    %vm1828 = vcmp.eq.s32.totalorder %v138, 9
    %vm1829 = vcmp.eq.s32.totalorder %v139, 9
    %vm1830 = vcmp.eq.s32.totalorder %v140, 9
    %vm1831 = vcmp.eq.s32.totalorder %v141, 9
    %vm1832 = vcmp.eq.s32.totalorder %v142, 9
    %vm1833 = vcmp.eq.s32.totalorder %v143, 9
    %vm1834 = vcmp.eq.s32.totalorder %v144, 9
    %vm1835 = vcmp.eq.s32.totalorder %v145, 9
    %vm1836 = vcmp.eq.s32.totalorder %v146, 9
    %vm1837 = vcmp.eq.s32.totalorder %v147, 9
    %vm1838 = vcmp.eq.s32.totalorder %v148, 9
    %vm1839 = vcmp.eq.s32.totalorder %v149, 9
    %vm1840 = vcmp.eq.s32.totalorder %v150, 9
    %vm1841 = vcmp.eq.s32.totalorder %v151, 9
    %vm1842 = vcmp.eq.s32.totalorder %v152, 9
    %v1843 = vsel %vm1793, 1.0, 0.0
    %v1844 = vsel %vm1794, 1.0, 0.0
    %v1845 = vsel %vm1795, 1.0, 0.0
    %v1846 = vsel %vm1796, 1.0, 0.0
    %v1847 = vsel %vm1797, 1.0, 0.0
    %v1848 = vsel %vm1798, 1.0, 0.0
    %v1849 = vsel %vm1799, 1.0, 0.0
    %v1850 = vsel %vm1800, 1.0, 0.0
    %v1851 = vsel %vm1801, 1.0, 0.0
    %v1852 = vsel %vm1802, 1.0, 0.0
    %v1853 = vsel %vm1803, 1.0, 0.0
    %v1854 = vsel %vm1804, 1.0, 0.0
    %v1855 = vsel %vm1805, 1.0, 0.0
    %v1856 = vsel %vm1806, 1.0, 0.0
    %v1857 = vsel %vm1807, 1.0, 0.0
    %v1858 = vsel %vm1808, 1.0, 0.0
    %v1859 = vsel %vm1809, 1.0, 0.0
    %v1860 = vsel %vm1810, 1.0, 0.0
    %v1861 = vsel %vm1811, 1.0, 0.0
    %v1862 = vsel %vm1812, 1.0, 0.0
    %v1863 = vsel %vm1813, 1.0, 0.0
    %v1864 = vsel %vm1814, 1.0, 0.0
    %v1865 = vsel %vm1815, 1.0, 0.0
    %v1866 = vsel %vm1816, 1.0, 0.0
    %v1867 = vsel %vm1817, 1.0, 0.0
    %v1868 = vsel %vm1818, 1.0, 0.0
    %v1869 = vsel %vm1819, 1.0, 0.0
    %v1870 = vsel %vm1820, 1.0, 0.0
    %v1871 = vsel %vm1821, 1.0, 0.0
    %v1872 = vsel %vm1822, 1.0, 0.0
    %v1873 = vsel %vm1823, 1.0, 0.0
    %v1874 = vsel %vm1824, 1.0, 0.0
    %v1875 = vsel %vm1825, 1.0, 0.0
    %v1876 = vsel %vm1826, 1.0, 0.0
    %v1877 = vsel %vm1827, 1.0, 0.0
    %v1878 = vsel %vm1828, 1.0, 0.0
    %v1879 = vsel %vm1829, 1.0, 0.0
    %v1880 = vsel %vm1830, 1.0, 0.0
    %v1881 = vsel %vm1831, 1.0, 0.0
    %v1882 = vsel %vm1832, 1.0, 0.0
    %v1883 = vsel %vm1833, 1.0, 0.0
    %v1884 = vsel %vm1834, 1.0, 0.0
    %v1885 = vsel %vm1835, 1.0, 0.0
    %v1886 = vsel %vm1836, 1.0, 0.0
    %v1887 = vsel %vm1837, 1.0, 0.0
    %v1888 = vsel %vm1838, 1.0, 0.0
    %v1889 = vsel %vm1839, 1.0, 0.0
    %v1890 = vsel %vm1840, 1.0, 0.0
    %v1891 = vsel %vm1841, 1.0, 0.0
    %v1892 = vsel %vm1842, 1.0, 0.0
    %v1893 = vadd.f32 %v1843, %v1844
    %v1894 = vadd.f32 %v1848, %v1849
    %v1895 = vadd.f32 %v1853, %v1854
    %v1896 = vadd.f32 %v1858, %v1859
    %v1897 = vadd.f32 %v1863, %v1864
    %v1898 = vadd.f32 %v1868, %v1869
    %v1899 = vadd.f32 %v1873, %v1874
    %v1900 = vadd.f32 %v1878, %v1879
    %v1901 = vadd.f32 %v1883, %v1884
    %v1902 = vadd.f32 %v1888, %v1889
    %v1903 = vadd.f32 %v1893, %v1845
    %v1904 = vadd.f32 %v1894, %v1850
    %v1905 = vadd.f32 %v1895, %v1855
    %v1906 = vadd.f32 %v1896, %v1860
    %v1907 = vadd.f32 %v1897, %v1865
    %v1908 = vadd.f32 %v1898, %v1870
    %v1909 = vadd.f32 %v1899, %v1875
    %v1910 = vadd.f32 %v1900, %v1880
    %v1911 = vadd.f32 %v1901, %v1885
    %v1912 = vadd.f32 %v1902, %v1890
    %v1913 = vadd.f32 %v1903, %v1846
    %v1914 = vadd.f32 %v1904, %v1851
    %v1915 = vadd.f32 %v1905, %v1856
    %v1916 = vadd.f32 %v1906, %v1861
    %v1917 = vadd.f32 %v1907, %v1866
    %v1918 = vadd.f32 %v1908, %v1871
    %v1919 = vadd.f32 %v1909, %v1876
    %v1920 = vadd.f32 %v1910, %v1881
    %v1921 = vadd.f32 %v1911, %v1886
    %v1922 = vadd.f32 %v1912, %v1891
    %v1923 = vadd.f32 %v1913, %v1847
    %v1924 = vadd.f32 %v1914, %v1852
    %v1925 = vadd.f32 %v1915, %v1857
    %v1926 = vadd.f32 %v1916, %v1862
    %v1927 = vadd.f32 %v1917, %v1867
    %v1928 = vadd.f32 %v1918, %v1872
    %v1929 = vadd.f32 %v1919, %v1877
    %v1930 = vadd.f32 %v1920, %v1882
    %v1931 = vadd.f32 %v1921, %v1887
    %v1932 = vadd.f32 %v1922, %v1892
    %1933 = vadd.xlane.f32.xlu0 %v1923
    %v1934 = vpop.xlane.xlu0 %1933
    %1935 = vadd.xlane.f32.xlu0 %v1924
    %v1936 = vpop.xlane.xlu0 %1935
    %1937 = vadd.xlane.f32.xlu0 %v1925
    %v1938 = vpop.xlane.xlu0 %1937
    %1939 = vadd.xlane.f32.xlu0 %v1926
    %v1940 = vpop.xlane.xlu0 %1939
    %1941 = vadd.xlane.f32.xlu0 %v1927
    %v1942 = vpop.xlane.xlu0 %1941
    %1943 = vadd.xlane.f32.xlu0 %v1928
    %v1944 = vpop.xlane.xlu0 %1943
    %1945 = vadd.xlane.f32.xlu0 %v1929
    %v1946 = vpop.xlane.xlu0 %1945
    %1947 = vadd.xlane.f32.xlu0 %v1930
    %v1948 = vpop.xlane.xlu0 %1947
    %1949 = vadd.xlane.f32.xlu0 %v1931
    %v1950 = vpop.xlane.xlu0 %1949
    %1951 = vadd.xlane.f32.xlu0 %v1932
    %v1952 = vpop.xlane.xlu0 %1951
    %vm1953 = vcmp.eq.s32.totalorder %v154, 9
    %v1954 = vsel %vm1953, 1.0, 0.0
    %v1955 = vmul.f32 %v1934, %v1954
    %v1956 = vmul.f32 %v1936, %v1954
    %v1957 = vmul.f32 %v1938, %v1954
    %v1958 = vmul.f32 %v1940, %v1954
    %v1959 = vmul.f32 %v1942, %v1954
    %v1960 = vmul.f32 %v1944, %v1954
    %v1961 = vmul.f32 %v1946, %v1954
    %v1962 = vmul.f32 %v1948, %v1954
    %v1963 = vmul.f32 %v1950, %v1954
    %v1964 = vmul.f32 %v1952, %v1954
    %v1965 = vadd.f32 %v1783, %v1955
    %v1966 = vadd.f32 %v1784, %v1956
    %v1967 = vadd.f32 %v1785, %v1957
    %v1968 = vadd.f32 %v1786, %v1958
    %v1969 = vadd.f32 %v1787, %v1959
    %v1970 = vadd.f32 %v1788, %v1960
    %v1971 = vadd.f32 %v1789, %v1961
    %v1972 = vadd.f32 %v1790, %v1962
    %v1973 = vadd.f32 %v1791, %v1963
    %v1974 = vadd.f32 %v1792, %v1964
    %vm1975 = vcmp.eq.s32.totalorder %v103, 10
    %vm1976 = vcmp.eq.s32.totalorder %v104, 10
    %vm1977 = vcmp.eq.s32.totalorder %v105, 10
    %vm1978 = vcmp.eq.s32.totalorder %v106, 10
    %vm1979 = vcmp.eq.s32.totalorder %v107, 10
    %vm1980 = vcmp.eq.s32.totalorder %v108, 10
    %vm1981 = vcmp.eq.s32.totalorder %v109, 10
    %vm1982 = vcmp.eq.s32.totalorder %v110, 10
    %vm1983 = vcmp.eq.s32.totalorder %v111, 10
    %vm1984 = vcmp.eq.s32.totalorder %v112, 10
    %vm1985 = vcmp.eq.s32.totalorder %v113, 10
    %vm1986 = vcmp.eq.s32.totalorder %v114, 10
    %vm1987 = vcmp.eq.s32.totalorder %v115, 10
    %vm1988 = vcmp.eq.s32.totalorder %v116, 10
    %vm1989 = vcmp.eq.s32.totalorder %v117, 10
    %vm1990 = vcmp.eq.s32.totalorder %v118, 10
    %vm1991 = vcmp.eq.s32.totalorder %v119, 10
    %vm1992 = vcmp.eq.s32.totalorder %v120, 10
    %vm1993 = vcmp.eq.s32.totalorder %v121, 10
    %vm1994 = vcmp.eq.s32.totalorder %v122, 10
    %vm1995 = vcmp.eq.s32.totalorder %v123, 10
    %vm1996 = vcmp.eq.s32.totalorder %v124, 10
    %vm1997 = vcmp.eq.s32.totalorder %v125, 10
    %vm1998 = vcmp.eq.s32.totalorder %v126, 10
    %vm1999 = vcmp.eq.s32.totalorder %v127, 10
    %vm2000 = vcmp.eq.s32.totalorder %v128, 10
    %vm2001 = vcmp.eq.s32.totalorder %v129, 10
    %vm2002 = vcmp.eq.s32.totalorder %v130, 10
    %vm2003 = vcmp.eq.s32.totalorder %v131, 10
    %vm2004 = vcmp.eq.s32.totalorder %v132, 10
    %vm2005 = vcmp.eq.s32.totalorder %v133, 10
    %vm2006 = vcmp.eq.s32.totalorder %v134, 10
    %vm2007 = vcmp.eq.s32.totalorder %v135, 10
    %vm2008 = vcmp.eq.s32.totalorder %v136, 10
    %vm2009 = vcmp.eq.s32.totalorder %v137, 10
    %vm2010 = vcmp.eq.s32.totalorder %v138, 10
    %vm2011 = vcmp.eq.s32.totalorder %v139, 10
    %vm2012 = vcmp.eq.s32.totalorder %v140, 10
    %vm2013 = vcmp.eq.s32.totalorder %v141, 10
    %vm2014 = vcmp.eq.s32.totalorder %v142, 10
    %vm2015 = vcmp.eq.s32.totalorder %v143, 10
    %vm2016 = vcmp.eq.s32.totalorder %v144, 10
    %vm2017 = vcmp.eq.s32.totalorder %v145, 10
    %vm2018 = vcmp.eq.s32.totalorder %v146, 10
    %vm2019 = vcmp.eq.s32.totalorder %v147, 10
    %vm2020 = vcmp.eq.s32.totalorder %v148, 10
    %vm2021 = vcmp.eq.s32.totalorder %v149, 10
    %vm2022 = vcmp.eq.s32.totalorder %v150, 10
    %vm2023 = vcmp.eq.s32.totalorder %v151, 10
    %vm2024 = vcmp.eq.s32.totalorder %v152, 10
    %v2025 = vsel %vm1975, 1.0, 0.0
    %v2026 = vsel %vm1976, 1.0, 0.0
    %v2027 = vsel %vm1977, 1.0, 0.0
    %v2028 = vsel %vm1978, 1.0, 0.0
    %v2029 = vsel %vm1979, 1.0, 0.0
    %v2030 = vsel %vm1980, 1.0, 0.0
    %v2031 = vsel %vm1981, 1.0, 0.0
    %v2032 = vsel %vm1982, 1.0, 0.0
    %v2033 = vsel %vm1983, 1.0, 0.0
    %v2034 = vsel %vm1984, 1.0, 0.0
    %v2035 = vsel %vm1985, 1.0, 0.0
    %v2036 = vsel %vm1986, 1.0, 0.0
    %v2037 = vsel %vm1987, 1.0, 0.0
    %v2038 = vsel %vm1988, 1.0, 0.0
    %v2039 = vsel %vm1989, 1.0, 0.0
    %v2040 = vsel %vm1990, 1.0, 0.0
    %v2041 = vsel %vm1991, 1.0, 0.0
    %v2042 = vsel %vm1992, 1.0, 0.0
    %v2043 = vsel %vm1993, 1.0, 0.0
    %v2044 = vsel %vm1994, 1.0, 0.0
    %v2045 = vsel %vm1995, 1.0, 0.0
    %v2046 = vsel %vm1996, 1.0, 0.0
    %v2047 = vsel %vm1997, 1.0, 0.0
    %v2048 = vsel %vm1998, 1.0, 0.0
    %v2049 = vsel %vm1999, 1.0, 0.0
    %v2050 = vsel %vm2000, 1.0, 0.0
    %v2051 = vsel %vm2001, 1.0, 0.0
    %v2052 = vsel %vm2002, 1.0, 0.0
    %v2053 = vsel %vm2003, 1.0, 0.0
    %v2054 = vsel %vm2004, 1.0, 0.0
    %v2055 = vsel %vm2005, 1.0, 0.0
    %v2056 = vsel %vm2006, 1.0, 0.0
    %v2057 = vsel %vm2007, 1.0, 0.0
    %v2058 = vsel %vm2008, 1.0, 0.0
    %v2059 = vsel %vm2009, 1.0, 0.0
    %v2060 = vsel %vm2010, 1.0, 0.0
    %v2061 = vsel %vm2011, 1.0, 0.0
    %v2062 = vsel %vm2012, 1.0, 0.0
    %v2063 = vsel %vm2013, 1.0, 0.0
    %v2064 = vsel %vm2014, 1.0, 0.0
    %v2065 = vsel %vm2015, 1.0, 0.0
    %v2066 = vsel %vm2016, 1.0, 0.0
    %v2067 = vsel %vm2017, 1.0, 0.0
    %v2068 = vsel %vm2018, 1.0, 0.0
    %v2069 = vsel %vm2019, 1.0, 0.0
    %v2070 = vsel %vm2020, 1.0, 0.0
    %v2071 = vsel %vm2021, 1.0, 0.0
    %v2072 = vsel %vm2022, 1.0, 0.0
    %v2073 = vsel %vm2023, 1.0, 0.0
    %v2074 = vsel %vm2024, 1.0, 0.0
    %v2075 = vadd.f32 %v2025, %v2026
    %v2076 = vadd.f32 %v2030, %v2031
    %v2077 = vadd.f32 %v2035, %v2036
    %v2078 = vadd.f32 %v2040, %v2041
    %v2079 = vadd.f32 %v2045, %v2046
    %v2080 = vadd.f32 %v2050, %v2051
    %v2081 = vadd.f32 %v2055, %v2056
    %v2082 = vadd.f32 %v2060, %v2061
    %v2083 = vadd.f32 %v2065, %v2066
    %v2084 = vadd.f32 %v2070, %v2071
    %v2085 = vadd.f32 %v2075, %v2027
    %v2086 = vadd.f32 %v2076, %v2032
    %v2087 = vadd.f32 %v2077, %v2037
    %v2088 = vadd.f32 %v2078, %v2042
    %v2089 = vadd.f32 %v2079, %v2047
    %v2090 = vadd.f32 %v2080, %v2052
    %v2091 = vadd.f32 %v2081, %v2057
    %v2092 = vadd.f32 %v2082, %v2062
    %v2093 = vadd.f32 %v2083, %v2067
    %v2094 = vadd.f32 %v2084, %v2072
    %v2095 = vadd.f32 %v2085, %v2028
    %v2096 = vadd.f32 %v2086, %v2033
    %v2097 = vadd.f32 %v2087, %v2038
    %v2098 = vadd.f32 %v2088, %v2043
    %v2099 = vadd.f32 %v2089, %v2048
    %v2100 = vadd.f32 %v2090, %v2053
    %v2101 = vadd.f32 %v2091, %v2058
    %v2102 = vadd.f32 %v2092, %v2063
    %v2103 = vadd.f32 %v2093, %v2068
    %v2104 = vadd.f32 %v2094, %v2073
    %v2105 = vadd.f32 %v2095, %v2029
    %v2106 = vadd.f32 %v2096, %v2034
    %v2107 = vadd.f32 %v2097, %v2039
    %v2108 = vadd.f32 %v2098, %v2044
    %v2109 = vadd.f32 %v2099, %v2049
    %v2110 = vadd.f32 %v2100, %v2054
    %v2111 = vadd.f32 %v2101, %v2059
    %v2112 = vadd.f32 %v2102, %v2064
    %v2113 = vadd.f32 %v2103, %v2069
    %v2114 = vadd.f32 %v2104, %v2074
    %2115 = vadd.xlane.f32.xlu0 %v2105
    %v2116 = vpop.xlane.xlu0 %2115
    %2117 = vadd.xlane.f32.xlu0 %v2106
    %v2118 = vpop.xlane.xlu0 %2117
    %2119 = vadd.xlane.f32.xlu0 %v2107
    %v2120 = vpop.xlane.xlu0 %2119
    %2121 = vadd.xlane.f32.xlu0 %v2108
    %v2122 = vpop.xlane.xlu0 %2121
    %2123 = vadd.xlane.f32.xlu0 %v2109
    %v2124 = vpop.xlane.xlu0 %2123
    %2125 = vadd.xlane.f32.xlu0 %v2110
    %v2126 = vpop.xlane.xlu0 %2125
    %2127 = vadd.xlane.f32.xlu0 %v2111
    %v2128 = vpop.xlane.xlu0 %2127
    %2129 = vadd.xlane.f32.xlu0 %v2112
    %v2130 = vpop.xlane.xlu0 %2129
    %2131 = vadd.xlane.f32.xlu0 %v2113
    %v2132 = vpop.xlane.xlu0 %2131
    %2133 = vadd.xlane.f32.xlu0 %v2114
    %v2134 = vpop.xlane.xlu0 %2133
    %vm2135 = vcmp.eq.s32.totalorder %v154, 10
    %v2136 = vsel %vm2135, 1.0, 0.0
    %v2137 = vmul.f32 %v2116, %v2136
    %v2138 = vmul.f32 %v2118, %v2136
    %v2139 = vmul.f32 %v2120, %v2136
    %v2140 = vmul.f32 %v2122, %v2136
    %v2141 = vmul.f32 %v2124, %v2136
    %v2142 = vmul.f32 %v2126, %v2136
    %v2143 = vmul.f32 %v2128, %v2136
    %v2144 = vmul.f32 %v2130, %v2136
    %v2145 = vmul.f32 %v2132, %v2136
    %v2146 = vmul.f32 %v2134, %v2136
    %v2147 = vadd.f32 %v1965, %v2137
    %v2148 = vadd.f32 %v1966, %v2138
    %v2149 = vadd.f32 %v1967, %v2139
    %v2150 = vadd.f32 %v1968, %v2140
    %v2151 = vadd.f32 %v1969, %v2141
    %v2152 = vadd.f32 %v1970, %v2142
    %v2153 = vadd.f32 %v1971, %v2143
    %v2154 = vadd.f32 %v1972, %v2144
    %v2155 = vadd.f32 %v1973, %v2145
    %v2156 = vadd.f32 %v1974, %v2146
    %vm2157 = vcmp.eq.s32.totalorder %v103, 11
    %vm2158 = vcmp.eq.s32.totalorder %v104, 11
    %vm2159 = vcmp.eq.s32.totalorder %v105, 11
    %vm2160 = vcmp.eq.s32.totalorder %v106, 11
    %vm2161 = vcmp.eq.s32.totalorder %v107, 11
    %vm2162 = vcmp.eq.s32.totalorder %v108, 11
    %vm2163 = vcmp.eq.s32.totalorder %v109, 11
    %vm2164 = vcmp.eq.s32.totalorder %v110, 11
    %vm2165 = vcmp.eq.s32.totalorder %v111, 11
    %vm2166 = vcmp.eq.s32.totalorder %v112, 11
    %vm2167 = vcmp.eq.s32.totalorder %v113, 11
    %vm2168 = vcmp.eq.s32.totalorder %v114, 11
    %vm2169 = vcmp.eq.s32.totalorder %v115, 11
    %vm2170 = vcmp.eq.s32.totalorder %v116, 11
    %vm2171 = vcmp.eq.s32.totalorder %v117, 11
    %vm2172 = vcmp.eq.s32.totalorder %v118, 11
    %vm2173 = vcmp.eq.s32.totalorder %v119, 11
    %vm2174 = vcmp.eq.s32.totalorder %v120, 11
    %vm2175 = vcmp.eq.s32.totalorder %v121, 11
    %vm2176 = vcmp.eq.s32.totalorder %v122, 11
    %vm2177 = vcmp.eq.s32.totalorder %v123, 11
    %vm2178 = vcmp.eq.s32.totalorder %v124, 11
    %vm2179 = vcmp.eq.s32.totalorder %v125, 11
    %vm2180 = vcmp.eq.s32.totalorder %v126, 11
    %vm2181 = vcmp.eq.s32.totalorder %v127, 11
    %vm2182 = vcmp.eq.s32.totalorder %v128, 11
    %vm2183 = vcmp.eq.s32.totalorder %v129, 11
    %vm2184 = vcmp.eq.s32.totalorder %v130, 11
    %vm2185 = vcmp.eq.s32.totalorder %v131, 11
    %vm2186 = vcmp.eq.s32.totalorder %v132, 11
    %vm2187 = vcmp.eq.s32.totalorder %v133, 11
    %vm2188 = vcmp.eq.s32.totalorder %v134, 11
    %vm2189 = vcmp.eq.s32.totalorder %v135, 11
    %vm2190 = vcmp.eq.s32.totalorder %v136, 11
    %vm2191 = vcmp.eq.s32.totalorder %v137, 11
    %vm2192 = vcmp.eq.s32.totalorder %v138, 11
    %vm2193 = vcmp.eq.s32.totalorder %v139, 11
    %vm2194 = vcmp.eq.s32.totalorder %v140, 11
    %vm2195 = vcmp.eq.s32.totalorder %v141, 11
    %vm2196 = vcmp.eq.s32.totalorder %v142, 11
    %vm2197 = vcmp.eq.s32.totalorder %v143, 11
    %vm2198 = vcmp.eq.s32.totalorder %v144, 11
    %vm2199 = vcmp.eq.s32.totalorder %v145, 11
    %vm2200 = vcmp.eq.s32.totalorder %v146, 11
    %vm2201 = vcmp.eq.s32.totalorder %v147, 11
    %vm2202 = vcmp.eq.s32.totalorder %v148, 11
    %vm2203 = vcmp.eq.s32.totalorder %v149, 11
    %vm2204 = vcmp.eq.s32.totalorder %v150, 11
    %vm2205 = vcmp.eq.s32.totalorder %v151, 11
    %vm2206 = vcmp.eq.s32.totalorder %v152, 11
    %v2207 = vsel %vm2157, 1.0, 0.0
    %v2208 = vsel %vm2158, 1.0, 0.0
    %v2209 = vsel %vm2159, 1.0, 0.0
    %v2210 = vsel %vm2160, 1.0, 0.0
    %v2211 = vsel %vm2161, 1.0, 0.0
    %v2212 = vsel %vm2162, 1.0, 0.0
    %v2213 = vsel %vm2163, 1.0, 0.0
    %v2214 = vsel %vm2164, 1.0, 0.0
    %v2215 = vsel %vm2165, 1.0, 0.0
    %v2216 = vsel %vm2166, 1.0, 0.0
    %v2217 = vsel %vm2167, 1.0, 0.0
    %v2218 = vsel %vm2168, 1.0, 0.0
    %v2219 = vsel %vm2169, 1.0, 0.0
    %v2220 = vsel %vm2170, 1.0, 0.0
    %v2221 = vsel %vm2171, 1.0, 0.0
    %v2222 = vsel %vm2172, 1.0, 0.0
    %v2223 = vsel %vm2173, 1.0, 0.0
    %v2224 = vsel %vm2174, 1.0, 0.0
    %v2225 = vsel %vm2175, 1.0, 0.0
    %v2226 = vsel %vm2176, 1.0, 0.0
    %v2227 = vsel %vm2177, 1.0, 0.0
    %v2228 = vsel %vm2178, 1.0, 0.0
    %v2229 = vsel %vm2179, 1.0, 0.0
    %v2230 = vsel %vm2180, 1.0, 0.0
    %v2231 = vsel %vm2181, 1.0, 0.0
    %v2232 = vsel %vm2182, 1.0, 0.0
    %v2233 = vsel %vm2183, 1.0, 0.0
    %v2234 = vsel %vm2184, 1.0, 0.0
    %v2235 = vsel %vm2185, 1.0, 0.0
    %v2236 = vsel %vm2186, 1.0, 0.0
    %v2237 = vsel %vm2187, 1.0, 0.0
    %v2238 = vsel %vm2188, 1.0, 0.0
    %v2239 = vsel %vm2189, 1.0, 0.0
    %v2240 = vsel %vm2190, 1.0, 0.0
    %v2241 = vsel %vm2191, 1.0, 0.0
    %v2242 = vsel %vm2192, 1.0, 0.0
    %v2243 = vsel %vm2193, 1.0, 0.0
    %v2244 = vsel %vm2194, 1.0, 0.0
    %v2245 = vsel %vm2195, 1.0, 0.0
    %v2246 = vsel %vm2196, 1.0, 0.0
    %v2247 = vsel %vm2197, 1.0, 0.0
    %v2248 = vsel %vm2198, 1.0, 0.0
    %v2249 = vsel %vm2199, 1.0, 0.0
    %v2250 = vsel %vm2200, 1.0, 0.0
    %v2251 = vsel %vm2201, 1.0, 0.0
    %v2252 = vsel %vm2202, 1.0, 0.0
    %v2253 = vsel %vm2203, 1.0, 0.0
    %v2254 = vsel %vm2204, 1.0, 0.0
    %v2255 = vsel %vm2205, 1.0, 0.0
    %v2256 = vsel %vm2206, 1.0, 0.0
    %v2257 = vadd.f32 %v2207, %v2208
    %v2258 = vadd.f32 %v2212, %v2213
    %v2259 = vadd.f32 %v2217, %v2218
    %v2260 = vadd.f32 %v2222, %v2223
    %v2261 = vadd.f32 %v2227, %v2228
    %v2262 = vadd.f32 %v2232, %v2233
    %v2263 = vadd.f32 %v2237, %v2238
    %v2264 = vadd.f32 %v2242, %v2243
    %v2265 = vadd.f32 %v2247, %v2248
    %v2266 = vadd.f32 %v2252, %v2253
    %v2267 = vadd.f32 %v2257, %v2209
    %v2268 = vadd.f32 %v2258, %v2214
    %v2269 = vadd.f32 %v2259, %v2219
    %v2270 = vadd.f32 %v2260, %v2224
    %v2271 = vadd.f32 %v2261, %v2229
    %v2272 = vadd.f32 %v2262, %v2234
    %v2273 = vadd.f32 %v2263, %v2239
    %v2274 = vadd.f32 %v2264, %v2244
    %v2275 = vadd.f32 %v2265, %v2249
    %v2276 = vadd.f32 %v2266, %v2254
    %v2277 = vadd.f32 %v2267, %v2210
    %v2278 = vadd.f32 %v2268, %v2215
    %v2279 = vadd.f32 %v2269, %v2220
    %v2280 = vadd.f32 %v2270, %v2225
    %v2281 = vadd.f32 %v2271, %v2230
    %v2282 = vadd.f32 %v2272, %v2235
    %v2283 = vadd.f32 %v2273, %v2240
    %v2284 = vadd.f32 %v2274, %v2245
    %v2285 = vadd.f32 %v2275, %v2250
    %v2286 = vadd.f32 %v2276, %v2255
    %v2287 = vadd.f32 %v2277, %v2211
    %v2288 = vadd.f32 %v2278, %v2216
    %v2289 = vadd.f32 %v2279, %v2221
    %v2290 = vadd.f32 %v2280, %v2226
    %v2291 = vadd.f32 %v2281, %v2231
    %v2292 = vadd.f32 %v2282, %v2236
    %v2293 = vadd.f32 %v2283, %v2241
    %v2294 = vadd.f32 %v2284, %v2246
    %v2295 = vadd.f32 %v2285, %v2251
    %v2296 = vadd.f32 %v2286, %v2256
    %2297 = vadd.xlane.f32.xlu0 %v2287
    %v2298 = vpop.xlane.xlu0 %2297
    %2299 = vadd.xlane.f32.xlu0 %v2288
    %v2300 = vpop.xlane.xlu0 %2299
    %2301 = vadd.xlane.f32.xlu0 %v2289
    %v2302 = vpop.xlane.xlu0 %2301
    %2303 = vadd.xlane.f32.xlu0 %v2290
    %v2304 = vpop.xlane.xlu0 %2303
    %2305 = vadd.xlane.f32.xlu0 %v2291
    %v2306 = vpop.xlane.xlu0 %2305
    %2307 = vadd.xlane.f32.xlu0 %v2292
    %v2308 = vpop.xlane.xlu0 %2307
    %2309 = vadd.xlane.f32.xlu0 %v2293
    %v2310 = vpop.xlane.xlu0 %2309
    %2311 = vadd.xlane.f32.xlu0 %v2294
    %v2312 = vpop.xlane.xlu0 %2311
    %2313 = vadd.xlane.f32.xlu0 %v2295
    %v2314 = vpop.xlane.xlu0 %2313
    %2315 = vadd.xlane.f32.xlu0 %v2296
    %v2316 = vpop.xlane.xlu0 %2315
    %vm2317 = vcmp.eq.s32.totalorder %v154, 11
    %v2318 = vsel %vm2317, 1.0, 0.0
    %v2319 = vmul.f32 %v2298, %v2318
    %v2320 = vmul.f32 %v2300, %v2318
    %v2321 = vmul.f32 %v2302, %v2318
    %v2322 = vmul.f32 %v2304, %v2318
    %v2323 = vmul.f32 %v2306, %v2318
    %v2324 = vmul.f32 %v2308, %v2318
    %v2325 = vmul.f32 %v2310, %v2318
    %v2326 = vmul.f32 %v2312, %v2318
    %v2327 = vmul.f32 %v2314, %v2318
    %v2328 = vmul.f32 %v2316, %v2318
    %v2329 = vadd.f32 %v2147, %v2319
    %v2330 = vadd.f32 %v2148, %v2320
    %v2331 = vadd.f32 %v2149, %v2321
    %v2332 = vadd.f32 %v2150, %v2322
    %v2333 = vadd.f32 %v2151, %v2323
    %v2334 = vadd.f32 %v2152, %v2324
    %v2335 = vadd.f32 %v2153, %v2325
    %v2336 = vadd.f32 %v2154, %v2326
    %v2337 = vadd.f32 %v2155, %v2327
    %v2338 = vadd.f32 %v2156, %v2328
    %vm2339 = vcmp.eq.s32.totalorder %v103, 12
    %vm2340 = vcmp.eq.s32.totalorder %v104, 12
    %vm2341 = vcmp.eq.s32.totalorder %v105, 12
    %vm2342 = vcmp.eq.s32.totalorder %v106, 12
    %vm2343 = vcmp.eq.s32.totalorder %v107, 12
    %vm2344 = vcmp.eq.s32.totalorder %v108, 12
    %vm2345 = vcmp.eq.s32.totalorder %v109, 12
    %vm2346 = vcmp.eq.s32.totalorder %v110, 12
    %vm2347 = vcmp.eq.s32.totalorder %v111, 12
    %vm2348 = vcmp.eq.s32.totalorder %v112, 12
    %vm2349 = vcmp.eq.s32.totalorder %v113, 12
    %vm2350 = vcmp.eq.s32.totalorder %v114, 12
    %vm2351 = vcmp.eq.s32.totalorder %v115, 12
    %vm2352 = vcmp.eq.s32.totalorder %v116, 12
    %vm2353 = vcmp.eq.s32.totalorder %v117, 12
    %vm2354 = vcmp.eq.s32.totalorder %v118, 12
    %vm2355 = vcmp.eq.s32.totalorder %v119, 12
    %vm2356 = vcmp.eq.s32.totalorder %v120, 12
    %vm2357 = vcmp.eq.s32.totalorder %v121, 12
    %vm2358 = vcmp.eq.s32.totalorder %v122, 12
    %vm2359 = vcmp.eq.s32.totalorder %v123, 12
    %vm2360 = vcmp.eq.s32.totalorder %v124, 12
    %vm2361 = vcmp.eq.s32.totalorder %v125, 12
    %vm2362 = vcmp.eq.s32.totalorder %v126, 12
    %vm2363 = vcmp.eq.s32.totalorder %v127, 12
    %vm2364 = vcmp.eq.s32.totalorder %v128, 12
    %vm2365 = vcmp.eq.s32.totalorder %v129, 12
    %vm2366 = vcmp.eq.s32.totalorder %v130, 12
    %vm2367 = vcmp.eq.s32.totalorder %v131, 12
    %vm2368 = vcmp.eq.s32.totalorder %v132, 12
    %vm2369 = vcmp.eq.s32.totalorder %v133, 12
    %vm2370 = vcmp.eq.s32.totalorder %v134, 12
    %vm2371 = vcmp.eq.s32.totalorder %v135, 12
    %vm2372 = vcmp.eq.s32.totalorder %v136, 12
    %vm2373 = vcmp.eq.s32.totalorder %v137, 12
    %vm2374 = vcmp.eq.s32.totalorder %v138, 12
    %vm2375 = vcmp.eq.s32.totalorder %v139, 12
    %vm2376 = vcmp.eq.s32.totalorder %v140, 12
    %vm2377 = vcmp.eq.s32.totalorder %v141, 12
    %vm2378 = vcmp.eq.s32.totalorder %v142, 12
    %vm2379 = vcmp.eq.s32.totalorder %v143, 12
    %vm2380 = vcmp.eq.s32.totalorder %v144, 12
    %vm2381 = vcmp.eq.s32.totalorder %v145, 12
    %vm2382 = vcmp.eq.s32.totalorder %v146, 12
    %vm2383 = vcmp.eq.s32.totalorder %v147, 12
    %vm2384 = vcmp.eq.s32.totalorder %v148, 12
    %vm2385 = vcmp.eq.s32.totalorder %v149, 12
    %vm2386 = vcmp.eq.s32.totalorder %v150, 12
    %vm2387 = vcmp.eq.s32.totalorder %v151, 12
    %vm2388 = vcmp.eq.s32.totalorder %v152, 12
    %v2389 = vsel %vm2339, 1.0, 0.0
    %v2390 = vsel %vm2340, 1.0, 0.0
    %v2391 = vsel %vm2341, 1.0, 0.0
    %v2392 = vsel %vm2342, 1.0, 0.0
    %v2393 = vsel %vm2343, 1.0, 0.0
    %v2394 = vsel %vm2344, 1.0, 0.0
    %v2395 = vsel %vm2345, 1.0, 0.0
    %v2396 = vsel %vm2346, 1.0, 0.0
    %v2397 = vsel %vm2347, 1.0, 0.0
    %v2398 = vsel %vm2348, 1.0, 0.0
    %v2399 = vsel %vm2349, 1.0, 0.0
    %v2400 = vsel %vm2350, 1.0, 0.0
    %v2401 = vsel %vm2351, 1.0, 0.0
    %v2402 = vsel %vm2352, 1.0, 0.0
    %v2403 = vsel %vm2353, 1.0, 0.0
    %v2404 = vsel %vm2354, 1.0, 0.0
    %v2405 = vsel %vm2355, 1.0, 0.0
    %v2406 = vsel %vm2356, 1.0, 0.0
    %v2407 = vsel %vm2357, 1.0, 0.0
    %v2408 = vsel %vm2358, 1.0, 0.0
    %v2409 = vsel %vm2359, 1.0, 0.0
    %v2410 = vsel %vm2360, 1.0, 0.0
    %v2411 = vsel %vm2361, 1.0, 0.0
    %v2412 = vsel %vm2362, 1.0, 0.0
    %v2413 = vsel %vm2363, 1.0, 0.0
    %v2414 = vsel %vm2364, 1.0, 0.0
    %v2415 = vsel %vm2365, 1.0, 0.0
    %v2416 = vsel %vm2366, 1.0, 0.0
    %v2417 = vsel %vm2367, 1.0, 0.0
    %v2418 = vsel %vm2368, 1.0, 0.0
    %v2419 = vsel %vm2369, 1.0, 0.0
    %v2420 = vsel %vm2370, 1.0, 0.0
    %v2421 = vsel %vm2371, 1.0, 0.0
    %v2422 = vsel %vm2372, 1.0, 0.0
    %v2423 = vsel %vm2373, 1.0, 0.0
    %v2424 = vsel %vm2374, 1.0, 0.0
    %v2425 = vsel %vm2375, 1.0, 0.0
    %v2426 = vsel %vm2376, 1.0, 0.0
    %v2427 = vsel %vm2377, 1.0, 0.0
    %v2428 = vsel %vm2378, 1.0, 0.0
    %v2429 = vsel %vm2379, 1.0, 0.0
    %v2430 = vsel %vm2380, 1.0, 0.0
    %v2431 = vsel %vm2381, 1.0, 0.0
    %v2432 = vsel %vm2382, 1.0, 0.0
    %v2433 = vsel %vm2383, 1.0, 0.0
    %v2434 = vsel %vm2384, 1.0, 0.0
    %v2435 = vsel %vm2385, 1.0, 0.0
    %v2436 = vsel %vm2386, 1.0, 0.0
    %v2437 = vsel %vm2387, 1.0, 0.0
    %v2438 = vsel %vm2388, 1.0, 0.0
    %v2439 = vadd.f32 %v2389, %v2390
    %v2440 = vadd.f32 %v2394, %v2395
    %v2441 = vadd.f32 %v2399, %v2400
    %v2442 = vadd.f32 %v2404, %v2405
    %v2443 = vadd.f32 %v2409, %v2410
    %v2444 = vadd.f32 %v2414, %v2415
    %v2445 = vadd.f32 %v2419, %v2420
    %v2446 = vadd.f32 %v2424, %v2425
    %v2447 = vadd.f32 %v2429, %v2430
    %v2448 = vadd.f32 %v2434, %v2435
    %v2449 = vadd.f32 %v2439, %v2391
    %v2450 = vadd.f32 %v2440, %v2396
    %v2451 = vadd.f32 %v2441, %v2401
    %v2452 = vadd.f32 %v2442, %v2406
    %v2453 = vadd.f32 %v2443, %v2411
    %v2454 = vadd.f32 %v2444, %v2416
    %v2455 = vadd.f32 %v2445, %v2421
    %v2456 = vadd.f32 %v2446, %v2426
    %v2457 = vadd.f32 %v2447, %v2431
    %v2458 = vadd.f32 %v2448, %v2436
    %v2459 = vadd.f32 %v2449, %v2392
    %v2460 = vadd.f32 %v2450, %v2397
    %v2461 = vadd.f32 %v2451, %v2402
    %v2462 = vadd.f32 %v2452, %v2407
    %v2463 = vadd.f32 %v2453, %v2412
    %v2464 = vadd.f32 %v2454, %v2417
    %v2465 = vadd.f32 %v2455, %v2422
    %v2466 = vadd.f32 %v2456, %v2427
    %v2467 = vadd.f32 %v2457, %v2432
    %v2468 = vadd.f32 %v2458, %v2437
    %v2469 = vadd.f32 %v2459, %v2393
    %v2470 = vadd.f32 %v2460, %v2398
    %v2471 = vadd.f32 %v2461, %v2403
    %v2472 = vadd.f32 %v2462, %v2408
    %v2473 = vadd.f32 %v2463, %v2413
    %v2474 = vadd.f32 %v2464, %v2418
    %v2475 = vadd.f32 %v2465, %v2423
    %v2476 = vadd.f32 %v2466, %v2428
    %v2477 = vadd.f32 %v2467, %v2433
    %v2478 = vadd.f32 %v2468, %v2438
    %2479 = vadd.xlane.f32.xlu0 %v2469
    %v2480 = vpop.xlane.xlu0 %2479
    %2481 = vadd.xlane.f32.xlu0 %v2470
    %v2482 = vpop.xlane.xlu0 %2481
    %2483 = vadd.xlane.f32.xlu0 %v2471
    %v2484 = vpop.xlane.xlu0 %2483
    %2485 = vadd.xlane.f32.xlu0 %v2472
    %v2486 = vpop.xlane.xlu0 %2485
    %2487 = vadd.xlane.f32.xlu0 %v2473
    %v2488 = vpop.xlane.xlu0 %2487
    %2489 = vadd.xlane.f32.xlu0 %v2474
    %v2490 = vpop.xlane.xlu0 %2489
    %2491 = vadd.xlane.f32.xlu0 %v2475
    %v2492 = vpop.xlane.xlu0 %2491
    %2493 = vadd.xlane.f32.xlu0 %v2476
    %v2494 = vpop.xlane.xlu0 %2493
    %2495 = vadd.xlane.f32.xlu0 %v2477
    %v2496 = vpop.xlane.xlu0 %2495
    %2497 = vadd.xlane.f32.xlu0 %v2478
    %v2498 = vpop.xlane.xlu0 %2497
    %vm2499 = vcmp.eq.s32.totalorder %v154, 12
    %v2500 = vsel %vm2499, 1.0, 0.0
    %v2501 = vmul.f32 %v2480, %v2500
    %v2502 = vmul.f32 %v2482, %v2500
    %v2503 = vmul.f32 %v2484, %v2500
    %v2504 = vmul.f32 %v2486, %v2500
    %v2505 = vmul.f32 %v2488, %v2500
    %v2506 = vmul.f32 %v2490, %v2500
    %v2507 = vmul.f32 %v2492, %v2500
    %v2508 = vmul.f32 %v2494, %v2500
    %v2509 = vmul.f32 %v2496, %v2500
    %v2510 = vmul.f32 %v2498, %v2500
    %v2511 = vadd.f32 %v2329, %v2501
    %v2512 = vadd.f32 %v2330, %v2502
    %v2513 = vadd.f32 %v2331, %v2503
    %v2514 = vadd.f32 %v2332, %v2504
    %v2515 = vadd.f32 %v2333, %v2505
    %v2516 = vadd.f32 %v2334, %v2506
    %v2517 = vadd.f32 %v2335, %v2507
    %v2518 = vadd.f32 %v2336, %v2508
    %v2519 = vadd.f32 %v2337, %v2509
    %v2520 = vadd.f32 %v2338, %v2510
    %vm2521 = vcmp.eq.s32.totalorder %v103, 13
    %vm2522 = vcmp.eq.s32.totalorder %v104, 13
    %vm2523 = vcmp.eq.s32.totalorder %v105, 13
    %vm2524 = vcmp.eq.s32.totalorder %v106, 13
    %vm2525 = vcmp.eq.s32.totalorder %v107, 13
    %vm2526 = vcmp.eq.s32.totalorder %v108, 13
    %vm2527 = vcmp.eq.s32.totalorder %v109, 13
    %vm2528 = vcmp.eq.s32.totalorder %v110, 13
    %vm2529 = vcmp.eq.s32.totalorder %v111, 13
    %vm2530 = vcmp.eq.s32.totalorder %v112, 13
    %vm2531 = vcmp.eq.s32.totalorder %v113, 13
    %vm2532 = vcmp.eq.s32.totalorder %v114, 13
    %vm2533 = vcmp.eq.s32.totalorder %v115, 13
    %vm2534 = vcmp.eq.s32.totalorder %v116, 13
    %vm2535 = vcmp.eq.s32.totalorder %v117, 13
    %vm2536 = vcmp.eq.s32.totalorder %v118, 13
    %vm2537 = vcmp.eq.s32.totalorder %v119, 13
    %vm2538 = vcmp.eq.s32.totalorder %v120, 13
    %vm2539 = vcmp.eq.s32.totalorder %v121, 13
    %vm2540 = vcmp.eq.s32.totalorder %v122, 13
    %vm2541 = vcmp.eq.s32.totalorder %v123, 13
    %vm2542 = vcmp.eq.s32.totalorder %v124, 13
    %vm2543 = vcmp.eq.s32.totalorder %v125, 13
    %vm2544 = vcmp.eq.s32.totalorder %v126, 13
    %vm2545 = vcmp.eq.s32.totalorder %v127, 13
    %vm2546 = vcmp.eq.s32.totalorder %v128, 13
    %vm2547 = vcmp.eq.s32.totalorder %v129, 13
    %vm2548 = vcmp.eq.s32.totalorder %v130, 13
    %vm2549 = vcmp.eq.s32.totalorder %v131, 13
    %vm2550 = vcmp.eq.s32.totalorder %v132, 13
    %vm2551 = vcmp.eq.s32.totalorder %v133, 13
    %vm2552 = vcmp.eq.s32.totalorder %v134, 13
    %vm2553 = vcmp.eq.s32.totalorder %v135, 13
    %vm2554 = vcmp.eq.s32.totalorder %v136, 13
    %vm2555 = vcmp.eq.s32.totalorder %v137, 13
    %vm2556 = vcmp.eq.s32.totalorder %v138, 13
    %vm2557 = vcmp.eq.s32.totalorder %v139, 13
    %vm2558 = vcmp.eq.s32.totalorder %v140, 13
    %vm2559 = vcmp.eq.s32.totalorder %v141, 13
    %vm2560 = vcmp.eq.s32.totalorder %v142, 13
    %vm2561 = vcmp.eq.s32.totalorder %v143, 13
    %vm2562 = vcmp.eq.s32.totalorder %v144, 13
    %vm2563 = vcmp.eq.s32.totalorder %v145, 13
    %vm2564 = vcmp.eq.s32.totalorder %v146, 13
    %vm2565 = vcmp.eq.s32.totalorder %v147, 13
    %vm2566 = vcmp.eq.s32.totalorder %v148, 13
    %vm2567 = vcmp.eq.s32.totalorder %v149, 13
    %vm2568 = vcmp.eq.s32.totalorder %v150, 13
    %vm2569 = vcmp.eq.s32.totalorder %v151, 13
    %vm2570 = vcmp.eq.s32.totalorder %v152, 13
    %v2571 = vsel %vm2521, 1.0, 0.0
    %v2572 = vsel %vm2522, 1.0, 0.0
    %v2573 = vsel %vm2523, 1.0, 0.0
    %v2574 = vsel %vm2524, 1.0, 0.0
    %v2575 = vsel %vm2525, 1.0, 0.0
    %v2576 = vsel %vm2526, 1.0, 0.0
    %v2577 = vsel %vm2527, 1.0, 0.0
    %v2578 = vsel %vm2528, 1.0, 0.0
    %v2579 = vsel %vm2529, 1.0, 0.0
    %v2580 = vsel %vm2530, 1.0, 0.0
    %v2581 = vsel %vm2531, 1.0, 0.0
    %v2582 = vsel %vm2532, 1.0, 0.0
    %v2583 = vsel %vm2533, 1.0, 0.0
    %v2584 = vsel %vm2534, 1.0, 0.0
    %v2585 = vsel %vm2535, 1.0, 0.0
    %v2586 = vsel %vm2536, 1.0, 0.0
    %v2587 = vsel %vm2537, 1.0, 0.0
    %v2588 = vsel %vm2538, 1.0, 0.0
    %v2589 = vsel %vm2539, 1.0, 0.0
    %v2590 = vsel %vm2540, 1.0, 0.0
    %v2591 = vsel %vm2541, 1.0, 0.0
    %v2592 = vsel %vm2542, 1.0, 0.0
    %v2593 = vsel %vm2543, 1.0, 0.0
    %v2594 = vsel %vm2544, 1.0, 0.0
    %v2595 = vsel %vm2545, 1.0, 0.0
    %v2596 = vsel %vm2546, 1.0, 0.0
    %v2597 = vsel %vm2547, 1.0, 0.0
    %v2598 = vsel %vm2548, 1.0, 0.0
    %v2599 = vsel %vm2549, 1.0, 0.0
    %v2600 = vsel %vm2550, 1.0, 0.0
    %v2601 = vsel %vm2551, 1.0, 0.0
    %v2602 = vsel %vm2552, 1.0, 0.0
    %v2603 = vsel %vm2553, 1.0, 0.0
    %v2604 = vsel %vm2554, 1.0, 0.0
    %v2605 = vsel %vm2555, 1.0, 0.0
    %v2606 = vsel %vm2556, 1.0, 0.0
    %v2607 = vsel %vm2557, 1.0, 0.0
    %v2608 = vsel %vm2558, 1.0, 0.0
    %v2609 = vsel %vm2559, 1.0, 0.0
    %v2610 = vsel %vm2560, 1.0, 0.0
    %v2611 = vsel %vm2561, 1.0, 0.0
    %v2612 = vsel %vm2562, 1.0, 0.0
    %v2613 = vsel %vm2563, 1.0, 0.0
    %v2614 = vsel %vm2564, 1.0, 0.0
    %v2615 = vsel %vm2565, 1.0, 0.0
    %v2616 = vsel %vm2566, 1.0, 0.0
    %v2617 = vsel %vm2567, 1.0, 0.0
    %v2618 = vsel %vm2568, 1.0, 0.0
    %v2619 = vsel %vm2569, 1.0, 0.0
    %v2620 = vsel %vm2570, 1.0, 0.0
    %v2621 = vadd.f32 %v2571, %v2572
    %v2622 = vadd.f32 %v2576, %v2577
    %v2623 = vadd.f32 %v2581, %v2582
    %v2624 = vadd.f32 %v2586, %v2587
    %v2625 = vadd.f32 %v2591, %v2592
    %v2626 = vadd.f32 %v2596, %v2597
    %v2627 = vadd.f32 %v2601, %v2602
    %v2628 = vadd.f32 %v2606, %v2607
    %v2629 = vadd.f32 %v2611, %v2612
    %v2630 = vadd.f32 %v2616, %v2617
    %v2631 = vadd.f32 %v2621, %v2573
    %v2632 = vadd.f32 %v2622, %v2578
    %v2633 = vadd.f32 %v2623, %v2583
    %v2634 = vadd.f32 %v2624, %v2588
    %v2635 = vadd.f32 %v2625, %v2593
    %v2636 = vadd.f32 %v2626, %v2598
    %v2637 = vadd.f32 %v2627, %v2603
    %v2638 = vadd.f32 %v2628, %v2608
    %v2639 = vadd.f32 %v2629, %v2613
    %v2640 = vadd.f32 %v2630, %v2618
    %v2641 = vadd.f32 %v2631, %v2574
    %v2642 = vadd.f32 %v2632, %v2579
    %v2643 = vadd.f32 %v2633, %v2584
    %v2644 = vadd.f32 %v2634, %v2589
    %v2645 = vadd.f32 %v2635, %v2594
    %v2646 = vadd.f32 %v2636, %v2599
    %v2647 = vadd.f32 %v2637, %v2604
    %v2648 = vadd.f32 %v2638, %v2609
    %v2649 = vadd.f32 %v2639, %v2614
    %v2650 = vadd.f32 %v2640, %v2619
    %v2651 = vadd.f32 %v2641, %v2575
    %v2652 = vadd.f32 %v2642, %v2580
    %v2653 = vadd.f32 %v2643, %v2585
    %v2654 = vadd.f32 %v2644, %v2590
    %v2655 = vadd.f32 %v2645, %v2595
    %v2656 = vadd.f32 %v2646, %v2600
    %v2657 = vadd.f32 %v2647, %v2605
    %v2658 = vadd.f32 %v2648, %v2610
    %v2659 = vadd.f32 %v2649, %v2615
    %v2660 = vadd.f32 %v2650, %v2620
    %2661 = vadd.xlane.f32.xlu0 %v2651
    %v2662 = vpop.xlane.xlu0 %2661
    %2663 = vadd.xlane.f32.xlu0 %v2652
    %v2664 = vpop.xlane.xlu0 %2663
    %2665 = vadd.xlane.f32.xlu0 %v2653
    %v2666 = vpop.xlane.xlu0 %2665
    %2667 = vadd.xlane.f32.xlu0 %v2654
    %v2668 = vpop.xlane.xlu0 %2667
    %2669 = vadd.xlane.f32.xlu0 %v2655
    %v2670 = vpop.xlane.xlu0 %2669
    %2671 = vadd.xlane.f32.xlu0 %v2656
    %v2672 = vpop.xlane.xlu0 %2671
    %2673 = vadd.xlane.f32.xlu0 %v2657
    %v2674 = vpop.xlane.xlu0 %2673
    %2675 = vadd.xlane.f32.xlu0 %v2658
    %v2676 = vpop.xlane.xlu0 %2675
    %2677 = vadd.xlane.f32.xlu0 %v2659
    %v2678 = vpop.xlane.xlu0 %2677
    %2679 = vadd.xlane.f32.xlu0 %v2660
    %v2680 = vpop.xlane.xlu0 %2679
    %vm2681 = vcmp.eq.s32.totalorder %v154, 13
    %v2682 = vsel %vm2681, 1.0, 0.0
    %v2683 = vmul.f32 %v2662, %v2682
    %v2684 = vmul.f32 %v2664, %v2682
    %v2685 = vmul.f32 %v2666, %v2682
    %v2686 = vmul.f32 %v2668, %v2682
    %v2687 = vmul.f32 %v2670, %v2682
    %v2688 = vmul.f32 %v2672, %v2682
    %v2689 = vmul.f32 %v2674, %v2682
    %v2690 = vmul.f32 %v2676, %v2682
    %v2691 = vmul.f32 %v2678, %v2682
    %v2692 = vmul.f32 %v2680, %v2682
    %v2693 = vadd.f32 %v2511, %v2683
    %v2694 = vadd.f32 %v2512, %v2684
    %v2695 = vadd.f32 %v2513, %v2685
    %v2696 = vadd.f32 %v2514, %v2686
    %v2697 = vadd.f32 %v2515, %v2687
    %v2698 = vadd.f32 %v2516, %v2688
    %v2699 = vadd.f32 %v2517, %v2689
    %v2700 = vadd.f32 %v2518, %v2690
    %v2701 = vadd.f32 %v2519, %v2691
    %v2702 = vadd.f32 %v2520, %v2692
    %vm2703 = vcmp.eq.s32.totalorder %v103, 14
    %vm2704 = vcmp.eq.s32.totalorder %v104, 14
    %vm2705 = vcmp.eq.s32.totalorder %v105, 14
    %vm2706 = vcmp.eq.s32.totalorder %v106, 14
    %vm2707 = vcmp.eq.s32.totalorder %v107, 14
    %vm2708 = vcmp.eq.s32.totalorder %v108, 14
    %vm2709 = vcmp.eq.s32.totalorder %v109, 14
    %vm2710 = vcmp.eq.s32.totalorder %v110, 14
    %vm2711 = vcmp.eq.s32.totalorder %v111, 14
    %vm2712 = vcmp.eq.s32.totalorder %v112, 14
    %vm2713 = vcmp.eq.s32.totalorder %v113, 14
    %vm2714 = vcmp.eq.s32.totalorder %v114, 14
    %vm2715 = vcmp.eq.s32.totalorder %v115, 14
    %vm2716 = vcmp.eq.s32.totalorder %v116, 14
    %vm2717 = vcmp.eq.s32.totalorder %v117, 14
    %vm2718 = vcmp.eq.s32.totalorder %v118, 14
    %vm2719 = vcmp.eq.s32.totalorder %v119, 14
    %vm2720 = vcmp.eq.s32.totalorder %v120, 14
    %vm2721 = vcmp.eq.s32.totalorder %v121, 14
    %vm2722 = vcmp.eq.s32.totalorder %v122, 14
    %vm2723 = vcmp.eq.s32.totalorder %v123, 14
    %vm2724 = vcmp.eq.s32.totalorder %v124, 14
    %vm2725 = vcmp.eq.s32.totalorder %v125, 14
    %vm2726 = vcmp.eq.s32.totalorder %v126, 14
    %vm2727 = vcmp.eq.s32.totalorder %v127, 14
    %vm2728 = vcmp.eq.s32.totalorder %v128, 14
    %vm2729 = vcmp.eq.s32.totalorder %v129, 14
    %vm2730 = vcmp.eq.s32.totalorder %v130, 14
    %vm2731 = vcmp.eq.s32.totalorder %v131, 14
    %vm2732 = vcmp.eq.s32.totalorder %v132, 14
    %vm2733 = vcmp.eq.s32.totalorder %v133, 14
    %vm2734 = vcmp.eq.s32.totalorder %v134, 14
    %vm2735 = vcmp.eq.s32.totalorder %v135, 14
    %vm2736 = vcmp.eq.s32.totalorder %v136, 14
    %vm2737 = vcmp.eq.s32.totalorder %v137, 14
    %vm2738 = vcmp.eq.s32.totalorder %v138, 14
    %vm2739 = vcmp.eq.s32.totalorder %v139, 14
    %vm2740 = vcmp.eq.s32.totalorder %v140, 14
    %vm2741 = vcmp.eq.s32.totalorder %v141, 14
    %vm2742 = vcmp.eq.s32.totalorder %v142, 14
    %vm2743 = vcmp.eq.s32.totalorder %v143, 14
    %vm2744 = vcmp.eq.s32.totalorder %v144, 14
    %vm2745 = vcmp.eq.s32.totalorder %v145, 14
    %vm2746 = vcmp.eq.s32.totalorder %v146, 14
    %vm2747 = vcmp.eq.s32.totalorder %v147, 14
    %vm2748 = vcmp.eq.s32.totalorder %v148, 14
    %vm2749 = vcmp.eq.s32.totalorder %v149, 14
    %vm2750 = vcmp.eq.s32.totalorder %v150, 14
    %vm2751 = vcmp.eq.s32.totalorder %v151, 14
    %vm2752 = vcmp.eq.s32.totalorder %v152, 14
    %v2753 = vsel %vm2703, 1.0, 0.0
    %v2754 = vsel %vm2704, 1.0, 0.0
    %v2755 = vsel %vm2705, 1.0, 0.0
    %v2756 = vsel %vm2706, 1.0, 0.0
    %v2757 = vsel %vm2707, 1.0, 0.0
    %v2758 = vsel %vm2708, 1.0, 0.0
    %v2759 = vsel %vm2709, 1.0, 0.0
    %v2760 = vsel %vm2710, 1.0, 0.0
    %v2761 = vsel %vm2711, 1.0, 0.0
    %v2762 = vsel %vm2712, 1.0, 0.0
    %v2763 = vsel %vm2713, 1.0, 0.0
    %v2764 = vsel %vm2714, 1.0, 0.0
    %v2765 = vsel %vm2715, 1.0, 0.0
    %v2766 = vsel %vm2716, 1.0, 0.0
    %v2767 = vsel %vm2717, 1.0, 0.0
    %v2768 = vsel %vm2718, 1.0, 0.0
    %v2769 = vsel %vm2719, 1.0, 0.0
    %v2770 = vsel %vm2720, 1.0, 0.0
    %v2771 = vsel %vm2721, 1.0, 0.0
    %v2772 = vsel %vm2722, 1.0, 0.0
    %v2773 = vsel %vm2723, 1.0, 0.0
    %v2774 = vsel %vm2724, 1.0, 0.0
    %v2775 = vsel %vm2725, 1.0, 0.0
    %v2776 = vsel %vm2726, 1.0, 0.0
    %v2777 = vsel %vm2727, 1.0, 0.0
    %v2778 = vsel %vm2728, 1.0, 0.0
    %v2779 = vsel %vm2729, 1.0, 0.0
    %v2780 = vsel %vm2730, 1.0, 0.0
    %v2781 = vsel %vm2731, 1.0, 0.0
    %v2782 = vsel %vm2732, 1.0, 0.0
    %v2783 = vsel %vm2733, 1.0, 0.0
    %v2784 = vsel %vm2734, 1.0, 0.0
    %v2785 = vsel %vm2735, 1.0, 0.0
    %v2786 = vsel %vm2736, 1.0, 0.0
    %v2787 = vsel %vm2737, 1.0, 0.0
    %v2788 = vsel %vm2738, 1.0, 0.0
    %v2789 = vsel %vm2739, 1.0, 0.0
    %v2790 = vsel %vm2740, 1.0, 0.0
    %v2791 = vsel %vm2741, 1.0, 0.0
    %v2792 = vsel %vm2742, 1.0, 0.0
    %v2793 = vsel %vm2743, 1.0, 0.0
    %v2794 = vsel %vm2744, 1.0, 0.0
    %v2795 = vsel %vm2745, 1.0, 0.0
    %v2796 = vsel %vm2746, 1.0, 0.0
    %v2797 = vsel %vm2747, 1.0, 0.0
    %v2798 = vsel %vm2748, 1.0, 0.0
    %v2799 = vsel %vm2749, 1.0, 0.0
    %v2800 = vsel %vm2750, 1.0, 0.0
    %v2801 = vsel %vm2751, 1.0, 0.0
    %v2802 = vsel %vm2752, 1.0, 0.0
    %v2803 = vadd.f32 %v2753, %v2754
    %v2804 = vadd.f32 %v2758, %v2759
    %v2805 = vadd.f32 %v2763, %v2764
    %v2806 = vadd.f32 %v2768, %v2769
    %v2807 = vadd.f32 %v2773, %v2774
    %v2808 = vadd.f32 %v2778, %v2779
    %v2809 = vadd.f32 %v2783, %v2784
    %v2810 = vadd.f32 %v2788, %v2789
    %v2811 = vadd.f32 %v2793, %v2794
    %v2812 = vadd.f32 %v2798, %v2799
    %v2813 = vadd.f32 %v2803, %v2755
    %v2814 = vadd.f32 %v2804, %v2760
    %v2815 = vadd.f32 %v2805, %v2765
    %v2816 = vadd.f32 %v2806, %v2770
    %v2817 = vadd.f32 %v2807, %v2775
    %v2818 = vadd.f32 %v2808, %v2780
    %v2819 = vadd.f32 %v2809, %v2785
    %v2820 = vadd.f32 %v2810, %v2790
    %v2821 = vadd.f32 %v2811, %v2795
    %v2822 = vadd.f32 %v2812, %v2800
    %v2823 = vadd.f32 %v2813, %v2756
    %v2824 = vadd.f32 %v2814, %v2761
    %v2825 = vadd.f32 %v2815, %v2766
    %v2826 = vadd.f32 %v2816, %v2771
    %v2827 = vadd.f32 %v2817, %v2776
    %v2828 = vadd.f32 %v2818, %v2781
    %v2829 = vadd.f32 %v2819, %v2786
    %v2830 = vadd.f32 %v2820, %v2791
    %v2831 = vadd.f32 %v2821, %v2796
    %v2832 = vadd.f32 %v2822, %v2801
    %v2833 = vadd.f32 %v2823, %v2757
    %v2834 = vadd.f32 %v2824, %v2762
    %v2835 = vadd.f32 %v2825, %v2767
    %v2836 = vadd.f32 %v2826, %v2772
    %v2837 = vadd.f32 %v2827, %v2777
    %v2838 = vadd.f32 %v2828, %v2782
    %v2839 = vadd.f32 %v2829, %v2787
    %v2840 = vadd.f32 %v2830, %v2792
    %v2841 = vadd.f32 %v2831, %v2797
    %v2842 = vadd.f32 %v2832, %v2802
    %2843 = vadd.xlane.f32.xlu0 %v2833
    %v2844 = vpop.xlane.xlu0 %2843
    %2845 = vadd.xlane.f32.xlu0 %v2834
    %v2846 = vpop.xlane.xlu0 %2845
    %2847 = vadd.xlane.f32.xlu0 %v2835
    %v2848 = vpop.xlane.xlu0 %2847
    %2849 = vadd.xlane.f32.xlu0 %v2836
    %v2850 = vpop.xlane.xlu0 %2849
    %2851 = vadd.xlane.f32.xlu0 %v2837
    %v2852 = vpop.xlane.xlu0 %2851
    %2853 = vadd.xlane.f32.xlu0 %v2838
    %v2854 = vpop.xlane.xlu0 %2853
    %2855 = vadd.xlane.f32.xlu0 %v2839
    %v2856 = vpop.xlane.xlu0 %2855
    %2857 = vadd.xlane.f32.xlu0 %v2840
    %v2858 = vpop.xlane.xlu0 %2857
    %2859 = vadd.xlane.f32.xlu0 %v2841
    %v2860 = vpop.xlane.xlu0 %2859
    %2861 = vadd.xlane.f32.xlu0 %v2842
    %v2862 = vpop.xlane.xlu0 %2861
    %vm2863 = vcmp.eq.s32.totalorder %v154, 14
    %v2864 = vsel %vm2863, 1.0, 0.0
    %v2865 = vmul.f32 %v2844, %v2864
    %v2866 = vmul.f32 %v2846, %v2864
    %v2867 = vmul.f32 %v2848, %v2864
    %v2868 = vmul.f32 %v2850, %v2864
    %v2869 = vmul.f32 %v2852, %v2864
    %v2870 = vmul.f32 %v2854, %v2864
    %v2871 = vmul.f32 %v2856, %v2864
    %v2872 = vmul.f32 %v2858, %v2864
    %v2873 = vmul.f32 %v2860, %v2864
    %v2874 = vmul.f32 %v2862, %v2864
    %v2875 = vadd.f32 %v2693, %v2865
    %v2876 = vadd.f32 %v2694, %v2866
    %v2877 = vadd.f32 %v2695, %v2867
    %v2878 = vadd.f32 %v2696, %v2868
    %v2879 = vadd.f32 %v2697, %v2869
    %v2880 = vadd.f32 %v2698, %v2870
    %v2881 = vadd.f32 %v2699, %v2871
    %v2882 = vadd.f32 %v2700, %v2872
    %v2883 = vadd.f32 %v2701, %v2873
    %v2884 = vadd.f32 %v2702, %v2874
    %vm2885 = vcmp.eq.s32.totalorder %v103, 15
    %vm2886 = vcmp.eq.s32.totalorder %v104, 15
    %vm2887 = vcmp.eq.s32.totalorder %v105, 15
    %vm2888 = vcmp.eq.s32.totalorder %v106, 15
    %vm2889 = vcmp.eq.s32.totalorder %v107, 15
    %vm2890 = vcmp.eq.s32.totalorder %v108, 15
    %vm2891 = vcmp.eq.s32.totalorder %v109, 15
    %vm2892 = vcmp.eq.s32.totalorder %v110, 15
    %vm2893 = vcmp.eq.s32.totalorder %v111, 15
    %vm2894 = vcmp.eq.s32.totalorder %v112, 15
    %vm2895 = vcmp.eq.s32.totalorder %v113, 15
    %vm2896 = vcmp.eq.s32.totalorder %v114, 15
    %vm2897 = vcmp.eq.s32.totalorder %v115, 15
    %vm2898 = vcmp.eq.s32.totalorder %v116, 15
    %vm2899 = vcmp.eq.s32.totalorder %v117, 15
    %vm2900 = vcmp.eq.s32.totalorder %v118, 15
    %vm2901 = vcmp.eq.s32.totalorder %v119, 15
    %vm2902 = vcmp.eq.s32.totalorder %v120, 15
    %vm2903 = vcmp.eq.s32.totalorder %v121, 15
    %vm2904 = vcmp.eq.s32.totalorder %v122, 15
    %vm2905 = vcmp.eq.s32.totalorder %v123, 15
    %vm2906 = vcmp.eq.s32.totalorder %v124, 15
    %vm2907 = vcmp.eq.s32.totalorder %v125, 15
    %vm2908 = vcmp.eq.s32.totalorder %v126, 15
    %vm2909 = vcmp.eq.s32.totalorder %v127, 15
    %vm2910 = vcmp.eq.s32.totalorder %v128, 15
    %vm2911 = vcmp.eq.s32.totalorder %v129, 15
    %vm2912 = vcmp.eq.s32.totalorder %v130, 15
    %vm2913 = vcmp.eq.s32.totalorder %v131, 15
    %vm2914 = vcmp.eq.s32.totalorder %v132, 15
    %vm2915 = vcmp.eq.s32.totalorder %v133, 15
    %vm2916 = vcmp.eq.s32.totalorder %v134, 15
    %vm2917 = vcmp.eq.s32.totalorder %v135, 15
    %vm2918 = vcmp.eq.s32.totalorder %v136, 15
    %vm2919 = vcmp.eq.s32.totalorder %v137, 15
    %vm2920 = vcmp.eq.s32.totalorder %v138, 15
    %vm2921 = vcmp.eq.s32.totalorder %v139, 15
    %vm2922 = vcmp.eq.s32.totalorder %v140, 15
    %vm2923 = vcmp.eq.s32.totalorder %v141, 15
    %vm2924 = vcmp.eq.s32.totalorder %v142, 15
    %vm2925 = vcmp.eq.s32.totalorder %v143, 15
    %vm2926 = vcmp.eq.s32.totalorder %v144, 15
    %vm2927 = vcmp.eq.s32.totalorder %v145, 15
    %vm2928 = vcmp.eq.s32.totalorder %v146, 15
    %vm2929 = vcmp.eq.s32.totalorder %v147, 15
    %vm2930 = vcmp.eq.s32.totalorder %v148, 15
    %vm2931 = vcmp.eq.s32.totalorder %v149, 15
    %vm2932 = vcmp.eq.s32.totalorder %v150, 15
    %vm2933 = vcmp.eq.s32.totalorder %v151, 15
    %vm2934 = vcmp.eq.s32.totalorder %v152, 15
    %v2935 = vsel %vm2885, 1.0, 0.0
    %v2936 = vsel %vm2886, 1.0, 0.0
    %v2937 = vsel %vm2887, 1.0, 0.0
    %v2938 = vsel %vm2888, 1.0, 0.0
    %v2939 = vsel %vm2889, 1.0, 0.0
    %v2940 = vsel %vm2890, 1.0, 0.0
    %v2941 = vsel %vm2891, 1.0, 0.0
    %v2942 = vsel %vm2892, 1.0, 0.0
    %v2943 = vsel %vm2893, 1.0, 0.0
    %v2944 = vsel %vm2894, 1.0, 0.0
    %v2945 = vsel %vm2895, 1.0, 0.0
    %v2946 = vsel %vm2896, 1.0, 0.0
    %v2947 = vsel %vm2897, 1.0, 0.0
    %v2948 = vsel %vm2898, 1.0, 0.0
    %v2949 = vsel %vm2899, 1.0, 0.0
    %v2950 = vsel %vm2900, 1.0, 0.0
    %v2951 = vsel %vm2901, 1.0, 0.0
    %v2952 = vsel %vm2902, 1.0, 0.0
    %v2953 = vsel %vm2903, 1.0, 0.0
    %v2954 = vsel %vm2904, 1.0, 0.0
    %v2955 = vsel %vm2905, 1.0, 0.0
    %v2956 = vsel %vm2906, 1.0, 0.0
    %v2957 = vsel %vm2907, 1.0, 0.0
    %v2958 = vsel %vm2908, 1.0, 0.0
    %v2959 = vsel %vm2909, 1.0, 0.0
    %v2960 = vsel %vm2910, 1.0, 0.0
    %v2961 = vsel %vm2911, 1.0, 0.0
    %v2962 = vsel %vm2912, 1.0, 0.0
    %v2963 = vsel %vm2913, 1.0, 0.0
    %v2964 = vsel %vm2914, 1.0, 0.0
    %v2965 = vsel %vm2915, 1.0, 0.0
    %v2966 = vsel %vm2916, 1.0, 0.0
    %v2967 = vsel %vm2917, 1.0, 0.0
    %v2968 = vsel %vm2918, 1.0, 0.0
    %v2969 = vsel %vm2919, 1.0, 0.0
    %v2970 = vsel %vm2920, 1.0, 0.0
    %v2971 = vsel %vm2921, 1.0, 0.0
    %v2972 = vsel %vm2922, 1.0, 0.0
    %v2973 = vsel %vm2923, 1.0, 0.0
    %v2974 = vsel %vm2924, 1.0, 0.0
    %v2975 = vsel %vm2925, 1.0, 0.0
    %v2976 = vsel %vm2926, 1.0, 0.0
    %v2977 = vsel %vm2927, 1.0, 0.0
    %v2978 = vsel %vm2928, 1.0, 0.0
    %v2979 = vsel %vm2929, 1.0, 0.0
    %v2980 = vsel %vm2930, 1.0, 0.0
    %v2981 = vsel %vm2931, 1.0, 0.0
    %v2982 = vsel %vm2932, 1.0, 0.0
    %v2983 = vsel %vm2933, 1.0, 0.0
    %v2984 = vsel %vm2934, 1.0, 0.0
    %v2985 = vadd.f32 %v2935, %v2936
    %v2986 = vadd.f32 %v2940, %v2941
    %v2987 = vadd.f32 %v2945, %v2946
    %v2988 = vadd.f32 %v2950, %v2951
    %v2989 = vadd.f32 %v2955, %v2956
    %v2990 = vadd.f32 %v2960, %v2961
    %v2991 = vadd.f32 %v2965, %v2966
    %v2992 = vadd.f32 %v2970, %v2971
    %v2993 = vadd.f32 %v2975, %v2976
    %v2994 = vadd.f32 %v2980, %v2981
    %v2995 = vadd.f32 %v2985, %v2937
    %v2996 = vadd.f32 %v2986, %v2942
    %v2997 = vadd.f32 %v2987, %v2947
    %v2998 = vadd.f32 %v2988, %v2952
    %v2999 = vadd.f32 %v2989, %v2957
    %v3000 = vadd.f32 %v2990, %v2962
    %v3001 = vadd.f32 %v2991, %v2967
    %v3002 = vadd.f32 %v2992, %v2972
    %v3003 = vadd.f32 %v2993, %v2977
    %v3004 = vadd.f32 %v2994, %v2982
    %v3005 = vadd.f32 %v2995, %v2938
    %v3006 = vadd.f32 %v2996, %v2943
    %v3007 = vadd.f32 %v2997, %v2948
    %v3008 = vadd.f32 %v2998, %v2953
    %v3009 = vadd.f32 %v2999, %v2958
    %v3010 = vadd.f32 %v3000, %v2963
    %v3011 = vadd.f32 %v3001, %v2968
    %v3012 = vadd.f32 %v3002, %v2973
    %v3013 = vadd.f32 %v3003, %v2978
    %v3014 = vadd.f32 %v3004, %v2983
    %v3015 = vadd.f32 %v3005, %v2939
    %v3016 = vadd.f32 %v3006, %v2944
    %v3017 = vadd.f32 %v3007, %v2949
    %v3018 = vadd.f32 %v3008, %v2954
    %v3019 = vadd.f32 %v3009, %v2959
    %v3020 = vadd.f32 %v3010, %v2964
    %v3021 = vadd.f32 %v3011, %v2969
    %v3022 = vadd.f32 %v3012, %v2974
    %v3023 = vadd.f32 %v3013, %v2979
    %v3024 = vadd.f32 %v3014, %v2984
    %3025 = vadd.xlane.f32.xlu0 %v3015
    %v3026 = vpop.xlane.xlu0 %3025
    %3027 = vadd.xlane.f32.xlu0 %v3016
    %v3028 = vpop.xlane.xlu0 %3027
    %3029 = vadd.xlane.f32.xlu0 %v3017
    %v3030 = vpop.xlane.xlu0 %3029
    %3031 = vadd.xlane.f32.xlu0 %v3018
    %v3032 = vpop.xlane.xlu0 %3031
    %3033 = vadd.xlane.f32.xlu0 %v3019
    %v3034 = vpop.xlane.xlu0 %3033
    %3035 = vadd.xlane.f32.xlu0 %v3020
    %v3036 = vpop.xlane.xlu0 %3035
    %3037 = vadd.xlane.f32.xlu0 %v3021
    %v3038 = vpop.xlane.xlu0 %3037
    %3039 = vadd.xlane.f32.xlu0 %v3022
    %v3040 = vpop.xlane.xlu0 %3039
    %3041 = vadd.xlane.f32.xlu0 %v3023
    %v3042 = vpop.xlane.xlu0 %3041
    %3043 = vadd.xlane.f32.xlu0 %v3024
    %v3044 = vpop.xlane.xlu0 %3043
    %vm3045 = vcmp.eq.s32.totalorder %v154, 15
    %v3046 = vsel %vm3045, 1.0, 0.0
    %v3047 = vmul.f32 %v3026, %v3046
    %v3048 = vmul.f32 %v3028, %v3046
    %v3049 = vmul.f32 %v3030, %v3046
    %v3050 = vmul.f32 %v3032, %v3046
    %v3051 = vmul.f32 %v3034, %v3046
    %v3052 = vmul.f32 %v3036, %v3046
    %v3053 = vmul.f32 %v3038, %v3046
    %v3054 = vmul.f32 %v3040, %v3046
    %v3055 = vmul.f32 %v3042, %v3046
    %v3056 = vmul.f32 %v3044, %v3046
    %v3057 = vadd.f32 %v2875, %v3047
    %v3058 = vadd.f32 %v2876, %v3048
    %v3059 = vadd.f32 %v2877, %v3049
    %v3060 = vadd.f32 %v2878, %v3050
    %v3061 = vadd.f32 %v2879, %v3051
    %v3062 = vadd.f32 %v2880, %v3052
    %v3063 = vadd.f32 %v2881, %v3053
    %v3064 = vadd.f32 %v2882, %v3054
    %v3065 = vadd.f32 %v2883, %v3055
    %v3066 = vadd.f32 %v2884, %v3056
    %vm3067 = vcmp.eq.s32.totalorder %v103, 16
    %vm3068 = vcmp.eq.s32.totalorder %v104, 16
    %vm3069 = vcmp.eq.s32.totalorder %v105, 16
    %vm3070 = vcmp.eq.s32.totalorder %v106, 16
    %vm3071 = vcmp.eq.s32.totalorder %v107, 16
    %vm3072 = vcmp.eq.s32.totalorder %v108, 16
    %vm3073 = vcmp.eq.s32.totalorder %v109, 16
    %vm3074 = vcmp.eq.s32.totalorder %v110, 16
    %vm3075 = vcmp.eq.s32.totalorder %v111, 16
    %vm3076 = vcmp.eq.s32.totalorder %v112, 16
    %vm3077 = vcmp.eq.s32.totalorder %v113, 16
    %vm3078 = vcmp.eq.s32.totalorder %v114, 16
    %vm3079 = vcmp.eq.s32.totalorder %v115, 16
    %vm3080 = vcmp.eq.s32.totalorder %v116, 16
    %vm3081 = vcmp.eq.s32.totalorder %v117, 16
    %vm3082 = vcmp.eq.s32.totalorder %v118, 16
    %vm3083 = vcmp.eq.s32.totalorder %v119, 16
    %vm3084 = vcmp.eq.s32.totalorder %v120, 16
    %vm3085 = vcmp.eq.s32.totalorder %v121, 16
    %vm3086 = vcmp.eq.s32.totalorder %v122, 16
    %vm3087 = vcmp.eq.s32.totalorder %v123, 16
    %vm3088 = vcmp.eq.s32.totalorder %v124, 16
    %vm3089 = vcmp.eq.s32.totalorder %v125, 16
    %vm3090 = vcmp.eq.s32.totalorder %v126, 16
    %vm3091 = vcmp.eq.s32.totalorder %v127, 16
    %vm3092 = vcmp.eq.s32.totalorder %v128, 16
    %vm3093 = vcmp.eq.s32.totalorder %v129, 16
    %vm3094 = vcmp.eq.s32.totalorder %v130, 16
    %vm3095 = vcmp.eq.s32.totalorder %v131, 16
    %vm3096 = vcmp.eq.s32.totalorder %v132, 16
    %vm3097 = vcmp.eq.s32.totalorder %v133, 16
    %vm3098 = vcmp.eq.s32.totalorder %v134, 16
    %vm3099 = vcmp.eq.s32.totalorder %v135, 16
    %vm3100 = vcmp.eq.s32.totalorder %v136, 16
    %vm3101 = vcmp.eq.s32.totalorder %v137, 16
    %vm3102 = vcmp.eq.s32.totalorder %v138, 16
    %vm3103 = vcmp.eq.s32.totalorder %v139, 16
    %vm3104 = vcmp.eq.s32.totalorder %v140, 16
    %vm3105 = vcmp.eq.s32.totalorder %v141, 16
    %vm3106 = vcmp.eq.s32.totalorder %v142, 16
    %vm3107 = vcmp.eq.s32.totalorder %v143, 16
    %vm3108 = vcmp.eq.s32.totalorder %v144, 16
    %vm3109 = vcmp.eq.s32.totalorder %v145, 16
    %vm3110 = vcmp.eq.s32.totalorder %v146, 16
    %vm3111 = vcmp.eq.s32.totalorder %v147, 16
    %vm3112 = vcmp.eq.s32.totalorder %v148, 16
    %vm3113 = vcmp.eq.s32.totalorder %v149, 16
    %vm3114 = vcmp.eq.s32.totalorder %v150, 16
    %vm3115 = vcmp.eq.s32.totalorder %v151, 16
    %vm3116 = vcmp.eq.s32.totalorder %v152, 16
    %v3117 = vsel %vm3067, 1.0, 0.0
    %v3118 = vsel %vm3068, 1.0, 0.0
    %v3119 = vsel %vm3069, 1.0, 0.0
    %v3120 = vsel %vm3070, 1.0, 0.0
    %v3121 = vsel %vm3071, 1.0, 0.0
    %v3122 = vsel %vm3072, 1.0, 0.0
    %v3123 = vsel %vm3073, 1.0, 0.0
    %v3124 = vsel %vm3074, 1.0, 0.0
    %v3125 = vsel %vm3075, 1.0, 0.0
    %v3126 = vsel %vm3076, 1.0, 0.0
    %v3127 = vsel %vm3077, 1.0, 0.0
    %v3128 = vsel %vm3078, 1.0, 0.0
    %v3129 = vsel %vm3079, 1.0, 0.0
    %v3130 = vsel %vm3080, 1.0, 0.0
    %v3131 = vsel %vm3081, 1.0, 0.0
    %v3132 = vsel %vm3082, 1.0, 0.0
    %v3133 = vsel %vm3083, 1.0, 0.0
    %v3134 = vsel %vm3084, 1.0, 0.0
    %v3135 = vsel %vm3085, 1.0, 0.0
    %v3136 = vsel %vm3086, 1.0, 0.0
    %v3137 = vsel %vm3087, 1.0, 0.0
    %v3138 = vsel %vm3088, 1.0, 0.0
    %v3139 = vsel %vm3089, 1.0, 0.0
    %v3140 = vsel %vm3090, 1.0, 0.0
    %v3141 = vsel %vm3091, 1.0, 0.0
    %v3142 = vsel %vm3092, 1.0, 0.0
    %v3143 = vsel %vm3093, 1.0, 0.0
    %v3144 = vsel %vm3094, 1.0, 0.0
    %v3145 = vsel %vm3095, 1.0, 0.0
    %v3146 = vsel %vm3096, 1.0, 0.0
    %v3147 = vsel %vm3097, 1.0, 0.0
    %v3148 = vsel %vm3098, 1.0, 0.0
    %v3149 = vsel %vm3099, 1.0, 0.0
    %v3150 = vsel %vm3100, 1.0, 0.0
    %v3151 = vsel %vm3101, 1.0, 0.0
    %v3152 = vsel %vm3102, 1.0, 0.0
    %v3153 = vsel %vm3103, 1.0, 0.0
    %v3154 = vsel %vm3104, 1.0, 0.0
    %v3155 = vsel %vm3105, 1.0, 0.0
    %v3156 = vsel %vm3106, 1.0, 0.0
    %v3157 = vsel %vm3107, 1.0, 0.0
    %v3158 = vsel %vm3108, 1.0, 0.0
    %v3159 = vsel %vm3109, 1.0, 0.0
    %v3160 = vsel %vm3110, 1.0, 0.0
    %v3161 = vsel %vm3111, 1.0, 0.0
    %v3162 = vsel %vm3112, 1.0, 0.0
    %v3163 = vsel %vm3113, 1.0, 0.0
    %v3164 = vsel %vm3114, 1.0, 0.0
    %v3165 = vsel %vm3115, 1.0, 0.0
    %v3166 = vsel %vm3116, 1.0, 0.0
    %v3167 = vadd.f32 %v3117, %v3118
    %v3168 = vadd.f32 %v3122, %v3123
    %v3169 = vadd.f32 %v3127, %v3128
    %v3170 = vadd.f32 %v3132, %v3133
    %v3171 = vadd.f32 %v3137, %v3138
    %v3172 = vadd.f32 %v3142, %v3143
    %v3173 = vadd.f32 %v3147, %v3148
    %v3174 = vadd.f32 %v3152, %v3153
    %v3175 = vadd.f32 %v3157, %v3158
    %v3176 = vadd.f32 %v3162, %v3163
    %v3177 = vadd.f32 %v3167, %v3119
    %v3178 = vadd.f32 %v3168, %v3124
    %v3179 = vadd.f32 %v3169, %v3129
    %v3180 = vadd.f32 %v3170, %v3134
    %v3181 = vadd.f32 %v3171, %v3139
    %v3182 = vadd.f32 %v3172, %v3144
    %v3183 = vadd.f32 %v3173, %v3149
    %v3184 = vadd.f32 %v3174, %v3154
    %v3185 = vadd.f32 %v3175, %v3159
    %v3186 = vadd.f32 %v3176, %v3164
    %v3187 = vadd.f32 %v3177, %v3120
    %v3188 = vadd.f32 %v3178, %v3125
    %v3189 = vadd.f32 %v3179, %v3130
    %v3190 = vadd.f32 %v3180, %v3135
    %v3191 = vadd.f32 %v3181, %v3140
    %v3192 = vadd.f32 %v3182, %v3145
    %v3193 = vadd.f32 %v3183, %v3150
    %v3194 = vadd.f32 %v3184, %v3155
    %v3195 = vadd.f32 %v3185, %v3160
    %v3196 = vadd.f32 %v3186, %v3165
    %v3197 = vadd.f32 %v3187, %v3121
    %v3198 = vadd.f32 %v3188, %v3126
    %v3199 = vadd.f32 %v3189, %v3131
    %v3200 = vadd.f32 %v3190, %v3136
    %v3201 = vadd.f32 %v3191, %v3141
    %v3202 = vadd.f32 %v3192, %v3146
    %v3203 = vadd.f32 %v3193, %v3151
    %v3204 = vadd.f32 %v3194, %v3156
    %v3205 = vadd.f32 %v3195, %v3161
    %v3206 = vadd.f32 %v3196, %v3166
    %3207 = vadd.xlane.f32.xlu0 %v3197
    %v3208 = vpop.xlane.xlu0 %3207
    %3209 = vadd.xlane.f32.xlu0 %v3198
    %v3210 = vpop.xlane.xlu0 %3209
    %3211 = vadd.xlane.f32.xlu0 %v3199
    %v3212 = vpop.xlane.xlu0 %3211
    %3213 = vadd.xlane.f32.xlu0 %v3200
    %v3214 = vpop.xlane.xlu0 %3213
    %3215 = vadd.xlane.f32.xlu0 %v3201
    %v3216 = vpop.xlane.xlu0 %3215
    %3217 = vadd.xlane.f32.xlu0 %v3202
    %v3218 = vpop.xlane.xlu0 %3217
    %3219 = vadd.xlane.f32.xlu0 %v3203
    %v3220 = vpop.xlane.xlu0 %3219
    %3221 = vadd.xlane.f32.xlu0 %v3204
    %v3222 = vpop.xlane.xlu0 %3221
    %3223 = vadd.xlane.f32.xlu0 %v3205
    %v3224 = vpop.xlane.xlu0 %3223
    %3225 = vadd.xlane.f32.xlu0 %v3206
    %v3226 = vpop.xlane.xlu0 %3225
    %vm3227 = vcmp.eq.s32.totalorder %v154, 16
    %v3228 = vsel %vm3227, 1.0, 0.0
    %v3229 = vmul.f32 %v3208, %v3228
    %v3230 = vmul.f32 %v3210, %v3228
    %v3231 = vmul.f32 %v3212, %v3228
    %v3232 = vmul.f32 %v3214, %v3228
    %v3233 = vmul.f32 %v3216, %v3228
    %v3234 = vmul.f32 %v3218, %v3228
    %v3235 = vmul.f32 %v3220, %v3228
    %v3236 = vmul.f32 %v3222, %v3228
    %v3237 = vmul.f32 %v3224, %v3228
    %v3238 = vmul.f32 %v3226, %v3228
    %v3239 = vadd.f32 %v3057, %v3229
    %v3240 = vadd.f32 %v3058, %v3230
    %v3241 = vadd.f32 %v3059, %v3231
    %v3242 = vadd.f32 %v3060, %v3232
    %v3243 = vadd.f32 %v3061, %v3233
    %v3244 = vadd.f32 %v3062, %v3234
    %v3245 = vadd.f32 %v3063, %v3235
    %v3246 = vadd.f32 %v3064, %v3236
    %v3247 = vadd.f32 %v3065, %v3237
    %v3248 = vadd.f32 %v3066, %v3238
    %3249 = vst [vmem:[#allocation5] sm:$0xff] %v3239
    %3250 = vst [vmem:[#allocation5 + $0x8] sm:$0xff] %v3240
    %3251 = vst [vmem:[#allocation5 + $0x10] sm:$0xff] %v3241
    %3252 = vst [vmem:[#allocation5 + $0x18] sm:$0xff] %v3242
    %3253 = vst [vmem:[#allocation5 + $0x20] sm:$0xff] %v3243
    %3254 = vst [vmem:[#allocation5 + $0x28] sm:$0xff] %v3244
    %3255 = vst [vmem:[#allocation5 + $0x30] sm:$0xff] %v3245
    %3256 = vst [vmem:[#allocation5 + $0x38] sm:$0xff] %v3246
    %3257 = vst [vmem:[#allocation5 + $0x40] sm:$0xff] %v3247
    %3258 = vst [vmem:[#allocation5 + $0x48] sm:$0xff] %v3248
    // Predicated region
    $region10: #{tpu_custom_call.1} parent=1 // pred_check
      _
    $region11: #{tpu_custom_call.1} parent=1 // pred_check_branch
      %3260 = sbr.rel (0) target = $region13
    $region12: #{tpu_custom_call.1} parent=1 // pred_region
      %s3262 = ssub.s32 1280, 1280
      %3263 = vsyncadd [#allocation4], %s3262
      %s3264 = sshll.u32 [#allocation5], 4
      %s3265 = int_to_ptr.vmem [resolvable:$true] %s3264
      %3270 = dma.vmem_to_hbm [thread:$0]  %s3265, 1280, %s1, [#allocation4], 128, 128, 8
    $region13: #{tpu_custom_call.1} parent=1 // pred_fallthru
      _
    // Predicated region
    $region14: #{tpu_custom_call.1} parent=1 // pred_check
      _
    $region15: #{tpu_custom_call.1} parent=1 // pred_check_branch
      %3272 = sbr.rel (0) target = $region17
    $region16: #{tpu_custom_call.1} parent=1 // pred_region
      %3273 = dma.done [#allocation4], 1280
    $region17: #{tpu_custom_call.1} parent=1 // pred_fallthru
      _
    %3274 = vsyncpa [#allocation3], 1
    %3275 = vsyncpa [#allocation4], 1

</llo_original>
